<compile_context>
chip_gen: v7x
topology: tpu7x:2x2x1
jax: 0.10.0
libtpu: 0.0.40
codegen_flags: <defaults>
</compile_context>

<pallas_src>
import jax
import jax.numpy as jnp
from jax.experimental import pallas as pl
from jax.experimental.pallas import tpu as pltpu


# ----------------------------------------------------------------------------
# Fused conv3x3(pad=1, stride=s) + bias + BatchNorm2d(train) + ReLU kernel
# ----------------------------------------------------------------------------
def _make_conv_bn_relu_kernel(KH, KW, pad, stride, eps):
    def kernel(x_ref, w_ref, b_ref, gamma_ref, beta_ref, o_ref, xp_ref, cols_ref):
        # x_ref    : (N, H, W, Cin)            unpadded NHWC input
        # w_ref    : (KH*KW*Cin, Cout)          im2col-ordered weights (MXU dtype)
        # b_ref    : (1, Cout)  gamma_ref/beta_ref : (1, Cout)   (f32)
        # o_ref    : (N*OH*OW, Cout)            flat, lane-dense output slab
        # xp_ref   : (N, Hp, Wp, Cin)           VMEM scratch: zero-padded input
        # cols_ref : (N*OH*OW, KH*KW*Cin)       VMEM scratch: im2col buffer
        N, H, W, Cin = x_ref.shape
        M, Cout = o_ref.shape
        _, Hp, Wp, _ = xp_ref.shape
        OH = (Hp - KH) // stride + 1
        OW = (Wp - KW) // stride + 1

        # ---- in-kernel zero padding (VMEM only, no HBM round trip) ----------
        xp_ref[...] = jnp.zeros(xp_ref.shape, xp_ref.dtype)
        xp_ref[:, pad:pad + H, pad:pad + W, :] = x_ref[...].astype(xp_ref.dtype)

        # ---- im2col into VMEM scratch: (M, KH*KW*Cin) ------------------------
        for kh in range(KH):
            for kw in range(KW):
                if stride == 1:
                    patch = xp_ref[:, kh:kh + OH, kw:kw + OW, :]
                else:
                    # strided window -> compute only the outputs we keep
                    patch = xp_ref[:, pl.ds(kh, OH, stride), pl.ds(kw, OW, stride), :]
                t = kh * KW + kw
                cols_ref[:, t * Cin:(t + 1) * Cin] = patch.reshape(M, Cin)

        # ---- single MXU matmul (bf16 or f32 operands, f32 accumulation) ------
        y = jnp.dot(cols_ref[...].astype(w_ref.dtype), w_ref[...],
                    preferred_element_type=jnp.float32)          # (M, Cout) f32
        y = y + b_ref[...].astype(jnp.float32)                   # broadcast bias

        # ---- fused BatchNorm2d (training mode: biased batch stats) + ReLU ----
        inv_m = 1.0 / M
        mean = jnp.sum(y, axis=0, keepdims=True) * inv_m          # (1, Cout)
        centered = y - mean
        var = jnp.sum(centered * centered, axis=0, keepdims=True) * inv_m
        scale = jax.lax.rsqrt(var + eps) * gamma_ref[...].astype(jnp.float32)
        y = centered * scale + beta_ref[...].astype(jnp.float32)
        y = jnp.maximum(y, 0.0)                                   # ReLU

        o_ref[...] = y.astype(o_ref.dtype)

    return kernel


# ----------------------------------------------------------------------------
# Public wrapper (NCHW in / NCHW out, matching the PyTorch module)
# ----------------------------------------------------------------------------
def conv_block_forward(params, x_nchw, *, stride=1, eps=1e-5,
                       matmul_dtype=jnp.bfloat16):
    """ConvBlock forward.  params: {'w': (KH,KW,Cin,Cout), 'b','gamma','beta': (Cout,)}.

    TODO(synk): BatchNorm2d running_mean/running_var momentum buffer updates are
    not tracked (stateful buffers); they do not affect the training-mode output.
    """
    w = params["w"]
    KH, KW, Cin, Cout = w.shape
    N, Cx, H, W = x_nchw.shape
    assert Cx == Cin, (Cx, Cin)
    pad = 1
    Hp, Wp = H + 2 * pad, W + 2 * pad
    OH = (Hp - KH) // stride + 1
    OW = (Wp - KW) // stride + 1
    M = N * OH * OW

    x_nhwc = jnp.transpose(x_nchw, (0, 2, 3, 1))          # channels -> TPU lanes
    w2d = w.reshape(KH * KW * Cin, Cout).astype(matmul_dtype)   # im2col order
    b2d = params["b"].reshape(1, Cout).astype(jnp.float32)
    g2d = params["gamma"].reshape(1, Cout).astype(jnp.float32)
    beta2d = params["beta"].reshape(1, Cout).astype(jnp.float32)

    out_flat = pl.pallas_call(
        _make_conv_bn_relu_kernel(KH, KW, pad, stride, eps),
        out_shape=jax.ShapeDtypeStruct((M, Cout), x_nchw.dtype),
        scratch_shapes=[
            pltpu.VMEM((N, Hp, Wp, Cin), x_nchw.dtype),          # padded input
            pltpu.VMEM((M, KH * KW * Cin), x_nchw.dtype),        # im2col buffer
        ],
    )(x_nhwc, w2d, b2d, g2d, beta2d)

    out = out_flat.reshape(N, OH, OW, Cout)                # free (row-major) reshape
    return jnp.transpose(out, (0, 3, 1, 2))                # NHWC -> NCHW


# ----------------------------------------------------------------------------
# Pure-JAX reference (for correctness check)
# ----------------------------------------------------------------------------
def conv_block_reference(params, x_nchw, stride=1, eps=1e-5):
    w_oihw = jnp.transpose(params["w"], (3, 2, 0, 1))      # (Cout, Cin, KH, KW)
    y = jax.lax.conv_general_dilated(
        x_nchw, w_oihw, window_strides=(stride, stride),
        padding=((1, 1), (1, 1)),
        dimension_numbers=("NCHW", "OIHW", "NCHW"),
        precision=jax.lax.Precision.HIGHEST)
    y = y + params["b"].reshape(1, -1, 1, 1)
    mean = jnp.mean(y, axis=(0, 2, 3), keepdims=True)
    var = jnp.mean(jnp.square(y - mean), axis=(0, 2, 3), keepdims=True)
    y = (y - mean) * jax.lax.rsqrt(var + eps)
    y = y * params["gamma"].reshape(1, -1, 1, 1) + params["beta"].reshape(1, -1, 1, 1)
    return jnp.maximum(y, 0.0)


# ----------------------------------------------------------------------------
# Deterministic synthetic parameters (matches PyTorch module's shapes)
# ----------------------------------------------------------------------------
def init_conv_block_params(key, in_channels, out_channels, kernel_size=3):
    kw, kb = jax.random.split(key)
    fan_in = in_channels * kernel_size * kernel_size
    bound = 1.0 / (fan_in ** 0.5)
    w = jax.random.uniform(kw, (kernel_size, kernel_size, in_channels, out_channels),
                           jnp.float32, -bound, bound)
    b = jax.random.uniform(kb, (out_channels,), jnp.float32, -bound, bound)
    return {"w": w, "b": b,
            "gamma": jnp.ones((out_channels,), jnp.float32),
            "beta": jnp.zeros((out_channels,), jnp.float32)}


# ----------------------------------------------------------------------------
if __name__ == "__main__":
    root = jax.random.PRNGKey(0)
    k_params, k_x = jax.random.split(root)

    IN_C, OUT_C = 4, 128          # Cout multiple of 128 -> lane-dense output store
    params = init_conv_block_params(k_params, IN_C, OUT_C, kernel_size=3)
    x = jax.random.normal(k_x, (2, IN_C, 16, 16), dtype=jnp.float32)   # NCHW

    # Default path: bf16-fed MXU with f32 accumulation (fast path on all gens).
    fwd = jax.jit(lambda p, xx: conv_block_forward(p, xx, stride=1))
    out = fwd(params, x)
    jax.block_until_ready(out)

    ref = conv_block_reference(params, x, stride=1)
    jax.block_until_ready(ref)

    assert out.shape == (2, OUT_C, 16, 16), out.shape
    assert out.dtype == jnp.float32
    assert bool(jnp.all(jnp.isfinite(out)))
    assert bool(jnp.all(out >= 0.0))                     # ReLU range
    max_err = float(jnp.max(jnp.abs(out - ref)))
    assert max_err < 0.15, f"max abs err vs reference = {max_err}"  # bf16-MXU tolerance

    print("KERNEL_OK")
</pallas_src>

<mosaic_0001>
module attributes {stable_mosaic.version = 11 : i64} {
  func.func @kernel(%arg0: memref<2x16x16x4xf32, #tpu.memory_space<vmem>>, %arg1: memref<36x128xbf16, #tpu.memory_space<vmem>>, %arg2: memref<1x128xf32, #tpu.memory_space<vmem>>, %arg3: memref<1x128xf32, #tpu.memory_space<vmem>>, %arg4: memref<1x128xf32, #tpu.memory_space<vmem>>, %arg5: memref<512x128xf32, #tpu.memory_space<vmem>>, %arg6: memref<2x18x18x4xf32, #tpu.memory_space<vmem>>, %arg7: memref<512x36xf32, #tpu.memory_space<vmem>>) attributes {dimension_semantics = [], scalar_prefetch = 0 : i64, scratch_operands = 2 : i64, tpu.core_type = #tpu.core_type<tc>} {
    %cst = arith.constant 0.000000e+00 : f32
    %0 = vector.broadcast %cst : f32 to vector<2x18x18x4xf32>
    %c0 = arith.constant 0 : index
    %c0_0 = arith.constant 0 : index
    %c0_1 = arith.constant 0 : index
    %c0_2 = arith.constant 0 : index
    %1 = vector.load %arg6[%c0, %c0_0, %c0_1, %c0_2] : memref<2x18x18x4xf32, #tpu.memory_space<vmem>>, vector<2x18x18x4xf32>
    tpu.vector_store %arg6[%c0, %c0_0, %c0_1, %c0_2], %0 {strides = array<i32>} : memref<2x18x18x4xf32, #tpu.memory_space<vmem>>, vector<2x18x18x4xf32>,
    %c0_3 = arith.constant 0 : index
    %c0_4 = arith.constant 0 : index
    %c0_5 = arith.constant 0 : index
    %c0_6 = arith.constant 0 : index
    %2 = vector.load %arg0[%c0_3, %c0_4, %c0_5, %c0_6] : memref<2x16x16x4xf32, #tpu.memory_space<vmem>>, vector<2x16x16x4xf32>
    %c0_7 = arith.constant 0 : index
    %c1 = arith.constant 1 : index
    %c1_8 = arith.constant 1 : index
    %c0_9 = arith.constant 0 : index
    %3 = vector.load %arg6[%c0_7, %c1, %c1_8, %c0_9] : memref<2x18x18x4xf32, #tpu.memory_space<vmem>>, vector<2x16x16x4xf32>
    tpu.vector_store %arg6[%c0_7, %c1, %c1_8, %c0_9], %2 {strides = array<i32>} : memref<2x18x18x4xf32, #tpu.memory_space<vmem>>, vector<2x16x16x4xf32>,
    %c0_10 = arith.constant 0 : index
    %c0_11 = arith.constant 0 : index
    %c0_12 = arith.constant 0 : index
    %c0_13 = arith.constant 0 : index
    %4 = vector.load %arg6[%c0_10, %c0_11, %c0_12, %c0_13] : memref<2x18x18x4xf32, #tpu.memory_space<vmem>>, vector<2x16x16x4xf32>
    %5 = vector.shape_cast %4 : vector<2x16x16x4xf32> to vector<512x4xf32>
    %c0_14 = arith.constant 0 : index
    %c0_15 = arith.constant 0 : index
    %6 = vector.load %arg7[%c0_14, %c0_15] : memref<512x36xf32, #tpu.memory_space<vmem>>, vector<512x4xf32>
    tpu.vector_store %arg7[%c0_14, %c0_15], %5 {strides = array<i32>} : memref<512x36xf32, #tpu.memory_space<vmem>>, vector<512x4xf32>,
    %c0_16 = arith.constant 0 : index
    %c0_17 = arith.constant 0 : index
    %c1_18 = arith.constant 1 : index
    %c0_19 = arith.constant 0 : index
    %7 = vector.load %arg6[%c0_16, %c0_17, %c1_18, %c0_19] : memref<2x18x18x4xf32, #tpu.memory_space<vmem>>, vector<2x16x16x4xf32>
    %8 = vector.shape_cast %7 : vector<2x16x16x4xf32> to vector<512x4xf32>
    %c0_20 = arith.constant 0 : index
    %c4 = arith.constant 4 : index
    %9 = vector.load %arg7[%c0_20, %c4] : memref<512x36xf32, #tpu.memory_space<vmem>>, vector<512x4xf32>
    tpu.vector_store %arg7[%c0_20, %c4], %8 {strides = array<i32>} : memref<512x36xf32, #tpu.memory_space<vmem>>, vector<512x4xf32>,
    %c0_21 = arith.constant 0 : index
    %c0_22 = arith.constant 0 : index
    %c2 = arith.constant 2 : index
    %c0_23 = arith.constant 0 : index
    %10 = vector.load %arg6[%c0_21, %c0_22, %c2, %c0_23] : memref<2x18x18x4xf32, #tpu.memory_space<vmem>>, vector<2x16x16x4xf32>
    %11 = vector.shape_cast %10 : vector<2x16x16x4xf32> to vector<512x4xf32>
    %c0_24 = arith.constant 0 : index
    %c8 = arith.constant 8 : index
    %12 = vector.load %arg7[%c0_24, %c8] : memref<512x36xf32, #tpu.memory_space<vmem>>, vector<512x4xf32>
    tpu.vector_store %arg7[%c0_24, %c8], %11 {strides = array<i32>} : memref<512x36xf32, #tpu.memory_space<vmem>>, vector<512x4xf32>,
    %c0_25 = arith.constant 0 : index
    %c1_26 = arith.constant 1 : index
    %c0_27 = arith.constant 0 : index
    %c0_28 = arith.constant 0 : index
    %13 = vector.load %arg6[%c0_25, %c1_26, %c0_27, %c0_28] : memref<2x18x18x4xf32, #tpu.memory_space<vmem>>, vector<2x16x16x4xf32>
    %14 = vector.shape_cast %13 : vector<2x16x16x4xf32> to vector<512x4xf32>
    %c0_29 = arith.constant 0 : index
    %c12 = arith.constant 12 : index
    %15 = vector.load %arg7[%c0_29, %c12] : memref<512x36xf32, #tpu.memory_space<vmem>>, vector<512x4xf32>
    tpu.vector_store %arg7[%c0_29, %c12], %14 {strides = array<i32>} : memref<512x36xf32, #tpu.memory_space<vmem>>, vector<512x4xf32>,
    %c0_30 = arith.constant 0 : index
    %c1_31 = arith.constant 1 : index
    %c1_32 = arith.constant 1 : index
    %c0_33 = arith.constant 0 : index
    %16 = vector.load %arg6[%c0_30, %c1_31, %c1_32, %c0_33] : memref<2x18x18x4xf32, #tpu.memory_space<vmem>>, vector<2x16x16x4xf32>
    %17 = vector.shape_cast %16 : vector<2x16x16x4xf32> to vector<512x4xf32>
    %c0_34 = arith.constant 0 : index
    %c16 = arith.constant 16 : index
    %18 = vector.load %arg7[%c0_34, %c16] : memref<512x36xf32, #tpu.memory_space<vmem>>, vector<512x4xf32>
    tpu.vector_store %arg7[%c0_34, %c16], %17 {strides = array<i32>} : memref<512x36xf32, #tpu.memory_space<vmem>>, vector<512x4xf32>,
    %c0_35 = arith.constant 0 : index
    %c1_36 = arith.constant 1 : index
    %c2_37 = arith.constant 2 : index
    %c0_38 = arith.constant 0 : index
    %19 = vector.load %arg6[%c0_35, %c1_36, %c2_37, %c0_38] : memref<2x18x18x4xf32, #tpu.memory_space<vmem>>, vector<2x16x16x4xf32>
    %20 = vector.shape_cast %19 : vector<2x16x16x4xf32> to vector<512x4xf32>
    %c0_39 = arith.constant 0 : index
    %c20 = arith.constant 20 : index
    %21 = vector.load %arg7[%c0_39, %c20] : memref<512x36xf32, #tpu.memory_space<vmem>>, vector<512x4xf32>
    tpu.vector_store %arg7[%c0_39, %c20], %20 {strides = array<i32>} : memref<512x36xf32, #tpu.memory_space<vmem>>, vector<512x4xf32>,
    %c0_40 = arith.constant 0 : index
    %c2_41 = arith.constant 2 : index
    %c0_42 = arith.constant 0 : index
    %c0_43 = arith.constant 0 : index
    %22 = vector.load %arg6[%c0_40, %c2_41, %c0_42, %c0_43] : memref<2x18x18x4xf32, #tpu.memory_space<vmem>>, vector<2x16x16x4xf32>
    %23 = vector.shape_cast %22 : vector<2x16x16x4xf32> to vector<512x4xf32>
    %c0_44 = arith.constant 0 : index
    %c24 = arith.constant 24 : index
    %24 = vector.load %arg7[%c0_44, %c24] : memref<512x36xf32, #tpu.memory_space<vmem>>, vector<512x4xf32>
    tpu.vector_store %arg7[%c0_44, %c24], %23 {strides = array<i32>} : memref<512x36xf32, #tpu.memory_space<vmem>>, vector<512x4xf32>,
    %c0_45 = arith.constant 0 : index
    %c2_46 = arith.constant 2 : index
    %c1_47 = arith.constant 1 : index
    %c0_48 = arith.constant 0 : index
    %25 = vector.load %arg6[%c0_45, %c2_46, %c1_47, %c0_48] : memref<2x18x18x4xf32, #tpu.memory_space<vmem>>, vector<2x16x16x4xf32>
    %26 = vector.shape_cast %25 : vector<2x16x16x4xf32> to vector<512x4xf32>
    %c0_49 = arith.constant 0 : index
    %c28 = arith.constant 28 : index
    %27 = vector.load %arg7[%c0_49, %c28] : memref<512x36xf32, #tpu.memory_space<vmem>>, vector<512x4xf32>
    tpu.vector_store %arg7[%c0_49, %c28], %26 {strides = array<i32>} : memref<512x36xf32, #tpu.memory_space<vmem>>, vector<512x4xf32>,
    %c0_50 = arith.constant 0 : index
    %c2_51 = arith.constant 2 : index
    %c2_52 = arith.constant 2 : index
    %c0_53 = arith.constant 0 : index
    %28 = vector.load %arg6[%c0_50, %c2_51, %c2_52, %c0_53] : memref<2x18x18x4xf32, #tpu.memory_space<vmem>>, vector<2x16x16x4xf32>
    %29 = vector.shape_cast %28 : vector<2x16x16x4xf32> to vector<512x4xf32>
    %c0_54 = arith.constant 0 : index
    %c32 = arith.constant 32 : index
    %30 = vector.load %arg7[%c0_54, %c32] : memref<512x36xf32, #tpu.memory_space<vmem>>, vector<512x4xf32>
    tpu.vector_store %arg7[%c0_54, %c32], %29 {strides = array<i32>} : memref<512x36xf32, #tpu.memory_space<vmem>>, vector<512x4xf32>,
    %c0_55 = arith.constant 0 : index
    %c0_56 = arith.constant 0 : index
    %31 = vector.load %arg7[%c0_55, %c0_56] : memref<512x36xf32, #tpu.memory_space<vmem>>, vector<512x36xf32>
    %32 = arith.truncf %31 : vector<512x36xf32> to vector<512x36xbf16>
    %c0_57 = arith.constant 0 : index
    %c0_58 = arith.constant 0 : index
    %33 = vector.load %arg1[%c0_57, %c0_58] : memref<36x128xbf16, #tpu.memory_space<vmem>>, vector<36x128xbf16>
    %cst_59 = arith.constant dense<0.000000e+00> : vector<512x128xf32>
    %34 = tpu.matmul %32, %33, %cst_59 {dimension_numbers = #tpu.dot_dimension_numbers<[1], [0], [0], [1], [0, 0, 1, 1], [], []>} : vector<512x36xbf16>, vector<36x128xbf16>, vector<512x128xf32> -> vector<512x128xf32>
    %c0_60 = arith.constant 0 : index
    %c0_61 = arith.constant 0 : index
    %35 = vector.load %arg2[%c0_60, %c0_61] : memref<1x128xf32, #tpu.memory_space<vmem>>, vector<1x128xf32>
    %36 = vector.broadcast %35 : vector<1x128xf32> to vector<512x128xf32>
    %37 = arith.addf %34, %36 : vector<512x128xf32>
    %cst_62 = arith.constant dense<0.000000e+00> : vector<128xf32>
    %38 = vector.multi_reduction <add>, %37, %cst_62 [0] : vector<512x128xf32> to vector<128xf32>
    %39 = vector.shape_cast %38 : vector<128xf32> to vector<1x128xf32>
    %cst_63 = arith.constant 0.001953125 : f32
    %40 = vector.broadcast %cst_63 : f32 to vector<1x128xf32>
    %41 = arith.mulf %39, %40 : vector<1x128xf32>
    %42 = vector.broadcast %41 : vector<1x128xf32> to vector<512x128xf32>
    %43 = arith.subf %37, %42 : vector<512x128xf32>
    %44 = arith.mulf %43, %43 : vector<512x128xf32>
    %cst_64 = arith.constant dense<0.000000e+00> : vector<128xf32>
    %45 = vector.multi_reduction <add>, %44, %cst_64 [0] : vector<512x128xf32> to vector<128xf32>
    %46 = vector.shape_cast %45 : vector<128xf32> to vector<1x128xf32>
    %cst_65 = arith.constant 0.001953125 : f32
    %47 = vector.broadcast %cst_65 : f32 to vector<1x128xf32>
    %48 = arith.mulf %46, %47 : vector<1x128xf32>
    %cst_66 = arith.constant 9.99999974E-6 : f32
    %49 = vector.broadcast %cst_66 : f32 to vector<1x128xf32>
    %50 = arith.addf %48, %49 : vector<1x128xf32>
    %51 = math.rsqrt %50 : vector<1x128xf32>
    %c0_67 = arith.constant 0 : index
    %c0_68 = arith.constant 0 : index
    %52 = vector.load %arg3[%c0_67, %c0_68] : memref<1x128xf32, #tpu.memory_space<vmem>>, vector<1x128xf32>
    %53 = arith.mulf %51, %52 : vector<1x128xf32>
    %54 = vector.broadcast %53 : vector<1x128xf32> to vector<512x128xf32>
    %55 = arith.mulf %43, %54 : vector<512x128xf32>
    %c0_69 = arith.constant 0 : index
    %c0_70 = arith.constant 0 : index
    %56 = vector.load %arg4[%c0_69, %c0_70] : memref<1x128xf32, #tpu.memory_space<vmem>>, vector<1x128xf32>
    %57 = vector.broadcast %56 : vector<1x128xf32> to vector<512x128xf32>
    %58 = arith.addf %55, %57 : vector<512x128xf32>
    %cst_71 = arith.constant 0.000000e+00 : f32
    %59 = vector.broadcast %cst_71 : f32 to vector<512x128xf32>
    %60 = arith.maximumf %58, %59 : vector<512x128xf32>
    %c0_72 = arith.constant 0 : index
    %c0_73 = arith.constant 0 : index
    %61 = vector.load %arg5[%c0_72, %c0_73] : memref<512x128xf32, #tpu.memory_space<vmem>>, vector<512x128xf32>
    tpu.vector_store %arg5[%c0_72, %c0_73], %60 {strides = array<i32>} : memref<512x128xf32, #tpu.memory_space<vmem>>, vector<512x128xf32>,
    return
  }
}

</mosaic_0001>

<llo_original>
// kernel: _lambda_.1
$region0: #{_lambda_.1}
  #allocation0 [shape = 'u32[]', space=smem, size = 0x4, offset = 0x4, fixed_abs, tag = 'smem constant byte address 0x4 - core index']
  #allocation1 [shape = 'u32[144,128]{1,0:T(1,128)}', space=vmem, size = 0x12000, scoped, tag = 'internal scratch']
  #allocation2 [shape = 'f32[2,18,18,4]{3,2,1,0:T(8,128)}', space=vmem, size = 0x6c000, scoped, tag = 'scratch operand']
  #allocation3 [shape = 'f32[512,36]{1,0:T(8,128)}', space=vmem, size = 0x40000, scoped, tag = 'scratch operand']
  %s0 = inlined_call_operand.vmem [shape: f32[2,16,16,4], index: 0, kind: input, shape index: {}]
  %s1 = inlined_call_operand.vmem [shape: bf16[36,128], index: 1, kind: input, shape index: {}]
  %s2 = inlined_call_operand.vmem [shape: f32[1,128], index: 2, kind: input, shape index: {}]
  %s3 = inlined_call_operand.vmem [shape: f32[1,128], index: 3, kind: input, shape index: {}]
  %s4 = inlined_call_operand.vmem [shape: f32[1,128], index: 4, kind: input, shape index: {}]
  %s5 = inlined_call_operand.hbm [shape: f32[512,128], index: 5, kind: output, shape index: {}]
  %s6 = sld [smem:[#allocation0]]
  $region30: #{_lambda_.1} parent=0
    _
  %s8 = ssub.s32 1, %s6
  %s9 = scalar_select 0, %s8, %s6
  $region1: #{_lambda_.1} parent=0
    #allocation4 [shape = 'u8[262144]{0}', space=vmem, size = 0x40000, scoped, tag = 'output window, operand 0, single buffered']
    #allocation5 [shape = 's32[1]{0}', space=sflag, size = 0x4, scoped, tag = 'scoped memory for _lambda_.1']
    %10 = vsyncpa [#allocation5], 0
    // Predicated region
    $region2: #{_lambda_.1} parent=1 // pred_check
      _
    $region3: #{_lambda_.1} parent=1 // pred_check_branch
      %12 = sbr.rel (0) target = $region5
    $region4: #{_lambda_.1} parent=1 // pred_region
      _
    $region5: #{_lambda_.1} parent=1 // pred_fallthru
      _
    // Predicated region
    $region6: #{_lambda_.1} parent=1 // pred_check
      _
    $region7: #{_lambda_.1} parent=1 // pred_check_branch
      %14 = sbr.rel (0) target = $region9
    $region8: #{_lambda_.1} parent=1 // pred_region
      _
    $region9: #{_lambda_.1} parent=1 // pred_fallthru
      _
    // Predicated region
    $region10: #{_lambda_.1} parent=1 // pred_check
      _
    $region11: #{_lambda_.1} parent=1 // pred_check_branch
      %16 = sbr.rel (0) target = $region13
    $region12: #{_lambda_.1} parent=1 // pred_region
      _
    $region13: #{_lambda_.1} parent=1 // pred_fallthru
      _
    // Predicated region
    $region14: #{_lambda_.1} parent=1 // pred_check
      _
    $region15: #{_lambda_.1} parent=1 // pred_check_branch
      %18 = sbr.rel (0) target = $region17
    $region16: #{_lambda_.1} parent=1 // pred_region
      _
    $region17: #{_lambda_.1} parent=1 // pred_fallthru
      _
    // Predicated region
    $region18: #{_lambda_.1} parent=1 // pred_check
      _
    $region19: #{_lambda_.1} parent=1 // pred_check_branch
      %20 = sbr.rel (0) target = $region21
    $region20: #{_lambda_.1} parent=1 // pred_region
      _
    $region21: #{_lambda_.1} parent=1 // pred_fallthru
      _
    %vm22 = vcmask 31744
    %23 = vst.msk [vmem:[#allocation2] sm:$0xff] %vm22, 0.0
    %24 = vst.msk [vmem:[#allocation2 + $0x8] sm:$0xff] %vm22, 0.0
    %vm25 = vcmask 25600
    %26 = vst.msk [vmem:[#allocation2 + $0x10] sm:$0x3] %vm25, 0.0
    %27 = vst.msk [vmem:[#allocation2 + $0x18] sm:$0xff] %vm22, 0.0
    %28 = vst.msk [vmem:[#allocation2 + $0x20] sm:$0xff] %vm22, 0.0
    %29 = vst.msk [vmem:[#allocation2 + $0x28] sm:$0x3] %vm25, 0.0
    %30 = vst.msk [vmem:[#allocation2 + $0x30] sm:$0xff] %vm22, 0.0
    %31 = vst.msk [vmem:[#allocation2 + $0x38] sm:$0xff] %vm22, 0.0
    %32 = vst.msk [vmem:[#allocation2 + $0x40] sm:$0x3] %vm25, 0.0
    %33 = vst.msk [vmem:[#allocation2 + $0x48] sm:$0xff] %vm22, 0.0
    %34 = vst.msk [vmem:[#allocation2 + $0x50] sm:$0xff] %vm22, 0.0
    %35 = vst.msk [vmem:[#allocation2 + $0x58] sm:$0x3] %vm25, 0.0
    %36 = vst.msk [vmem:[#allocation2 + $0x60] sm:$0xff] %vm22, 0.0
    %37 = vst.msk [vmem:[#allocation2 + $0x68] sm:$0xff] %vm22, 0.0
    %38 = vst.msk [vmem:[#allocation2 + $0x70] sm:$0x3] %vm25, 0.0
    %39 = vst.msk [vmem:[#allocation2 + $0x78] sm:$0xff] %vm22, 0.0
    %40 = vst.msk [vmem:[#allocation2 + $0x80] sm:$0xff] %vm22, 0.0
    %41 = vst.msk [vmem:[#allocation2 + $0x88] sm:$0x3] %vm25, 0.0
    %42 = vst.msk [vmem:[#allocation2 + $0x90] sm:$0xff] %vm22, 0.0
    %43 = vst.msk [vmem:[#allocation2 + $0x98] sm:$0xff] %vm22, 0.0
    %44 = vst.msk [vmem:[#allocation2 + $0xa0] sm:$0x3] %vm25, 0.0
    %45 = vst.msk [vmem:[#allocation2 + $0xa8] sm:$0xff] %vm22, 0.0
    %46 = vst.msk [vmem:[#allocation2 + $0xb0] sm:$0xff] %vm22, 0.0
    %47 = vst.msk [vmem:[#allocation2 + $0xb8] sm:$0x3] %vm25, 0.0
    %48 = vst.msk [vmem:[#allocation2 + $0xc0] sm:$0xff] %vm22, 0.0
    %49 = vst.msk [vmem:[#allocation2 + $0xc8] sm:$0xff] %vm22, 0.0
    %50 = vst.msk [vmem:[#allocation2 + $0xd0] sm:$0x3] %vm25, 0.0
    %51 = vst.msk [vmem:[#allocation2 + $0xd8] sm:$0xff] %vm22, 0.0
    %52 = vst.msk [vmem:[#allocation2 + $0xe0] sm:$0xff] %vm22, 0.0
    %53 = vst.msk [vmem:[#allocation2 + $0xe8] sm:$0x3] %vm25, 0.0
    %54 = vst.msk [vmem:[#allocation2 + $0xf0] sm:$0xff] %vm22, 0.0
    %55 = vst.msk [vmem:[#allocation2 + $0xf8] sm:$0xff] %vm22, 0.0
    %56 = vst.msk [vmem:[#allocation2 + $0x100] sm:$0x3] %vm25, 0.0
    %57 = vst.msk [vmem:[#allocation2 + $0x108] sm:$0xff] %vm22, 0.0
    %58 = vst.msk [vmem:[#allocation2 + $0x110] sm:$0xff] %vm22, 0.0
    %59 = vst.msk [vmem:[#allocation2 + $0x118] sm:$0x3] %vm25, 0.0
    %60 = vst.msk [vmem:[#allocation2 + $0x120] sm:$0xff] %vm22, 0.0
    %61 = vst.msk [vmem:[#allocation2 + $0x128] sm:$0xff] %vm22, 0.0
    %62 = vst.msk [vmem:[#allocation2 + $0x130] sm:$0x3] %vm25, 0.0
    %63 = vst.msk [vmem:[#allocation2 + $0x138] sm:$0xff] %vm22, 0.0
    %64 = vst.msk [vmem:[#allocation2 + $0x140] sm:$0xff] %vm22, 0.0
    %65 = vst.msk [vmem:[#allocation2 + $0x148] sm:$0x3] %vm25, 0.0
    %66 = vst.msk [vmem:[#allocation2 + $0x150] sm:$0xff] %vm22, 0.0
    %67 = vst.msk [vmem:[#allocation2 + $0x158] sm:$0xff] %vm22, 0.0
    %68 = vst.msk [vmem:[#allocation2 + $0x160] sm:$0x3] %vm25, 0.0
    %69 = vst.msk [vmem:[#allocation2 + $0x168] sm:$0xff] %vm22, 0.0
    %70 = vst.msk [vmem:[#allocation2 + $0x170] sm:$0xff] %vm22, 0.0
    %71 = vst.msk [vmem:[#allocation2 + $0x178] sm:$0x3] %vm25, 0.0
    %72 = vst.msk [vmem:[#allocation2 + $0x180] sm:$0xff] %vm22, 0.0
    %73 = vst.msk [vmem:[#allocation2 + $0x188] sm:$0xff] %vm22, 0.0
    %74 = vst.msk [vmem:[#allocation2 + $0x190] sm:$0x3] %vm25, 0.0
    %75 = vst.msk [vmem:[#allocation2 + $0x198] sm:$0xff] %vm22, 0.0
    %76 = vst.msk [vmem:[#allocation2 + $0x1a0] sm:$0xff] %vm22, 0.0
    %77 = vst.msk [vmem:[#allocation2 + $0x1a8] sm:$0x3] %vm25, 0.0
    %78 = vst.msk [vmem:[#allocation2 + $0x1b0] sm:$0xff] %vm22, 0.0
    %79 = vst.msk [vmem:[#allocation2 + $0x1b8] sm:$0xff] %vm22, 0.0
    %80 = vst.msk [vmem:[#allocation2 + $0x1c0] sm:$0x3] %vm25, 0.0
    %81 = vst.msk [vmem:[#allocation2 + $0x1c8] sm:$0xff] %vm22, 0.0
    %82 = vst.msk [vmem:[#allocation2 + $0x1d0] sm:$0xff] %vm22, 0.0
    %83 = vst.msk [vmem:[#allocation2 + $0x1d8] sm:$0x3] %vm25, 0.0
    %84 = vst.msk [vmem:[#allocation2 + $0x1e0] sm:$0xff] %vm22, 0.0
    %85 = vst.msk [vmem:[#allocation2 + $0x1e8] sm:$0xff] %vm22, 0.0
    %86 = vst.msk [vmem:[#allocation2 + $0x1f0] sm:$0x3] %vm25, 0.0
    %87 = vst.msk [vmem:[#allocation2 + $0x1f8] sm:$0xff] %vm22, 0.0
    %88 = vst.msk [vmem:[#allocation2 + $0x200] sm:$0xff] %vm22, 0.0
    %89 = vst.msk [vmem:[#allocation2 + $0x208] sm:$0x3] %vm25, 0.0
    %90 = vst.msk [vmem:[#allocation2 + $0x210] sm:$0xff] %vm22, 0.0
    %91 = vst.msk [vmem:[#allocation2 + $0x218] sm:$0xff] %vm22, 0.0
    %92 = vst.msk [vmem:[#allocation2 + $0x220] sm:$0x3] %vm25, 0.0
    %93 = vst.msk [vmem:[#allocation2 + $0x228] sm:$0xff] %vm22, 0.0
    %94 = vst.msk [vmem:[#allocation2 + $0x230] sm:$0xff] %vm22, 0.0
    %95 = vst.msk [vmem:[#allocation2 + $0x238] sm:$0x3] %vm25, 0.0
    %96 = vst.msk [vmem:[#allocation2 + $0x240] sm:$0xff] %vm22, 0.0
    %97 = vst.msk [vmem:[#allocation2 + $0x248] sm:$0xff] %vm22, 0.0
    %98 = vst.msk [vmem:[#allocation2 + $0x250] sm:$0x3] %vm25, 0.0
    %99 = vst.msk [vmem:[#allocation2 + $0x258] sm:$0xff] %vm22, 0.0
    %100 = vst.msk [vmem:[#allocation2 + $0x260] sm:$0xff] %vm22, 0.0
    %101 = vst.msk [vmem:[#allocation2 + $0x268] sm:$0x3] %vm25, 0.0
    %102 = vst.msk [vmem:[#allocation2 + $0x270] sm:$0xff] %vm22, 0.0
    %103 = vst.msk [vmem:[#allocation2 + $0x278] sm:$0xff] %vm22, 0.0
    %104 = vst.msk [vmem:[#allocation2 + $0x280] sm:$0x3] %vm25, 0.0
    %105 = vst.msk [vmem:[#allocation2 + $0x288] sm:$0xff] %vm22, 0.0
    %106 = vst.msk [vmem:[#allocation2 + $0x290] sm:$0xff] %vm22, 0.0
    %107 = vst.msk [vmem:[#allocation2 + $0x298] sm:$0x3] %vm25, 0.0
    %108 = vst.msk [vmem:[#allocation2 + $0x2a0] sm:$0xff] %vm22, 0.0
    %109 = vst.msk [vmem:[#allocation2 + $0x2a8] sm:$0xff] %vm22, 0.0
    %110 = vst.msk [vmem:[#allocation2 + $0x2b0] sm:$0x3] %vm25, 0.0
    %111 = vst.msk [vmem:[#allocation2 + $0x2b8] sm:$0xff] %vm22, 0.0
    %112 = vst.msk [vmem:[#allocation2 + $0x2c0] sm:$0xff] %vm22, 0.0
    %113 = vst.msk [vmem:[#allocation2 + $0x2c8] sm:$0x3] %vm25, 0.0
    %114 = vst.msk [vmem:[#allocation2 + $0x2d0] sm:$0xff] %vm22, 0.0
    %115 = vst.msk [vmem:[#allocation2 + $0x2d8] sm:$0xff] %vm22, 0.0
    %116 = vst.msk [vmem:[#allocation2 + $0x2e0] sm:$0x3] %vm25, 0.0
    %117 = vst.msk [vmem:[#allocation2 + $0x2e8] sm:$0xff] %vm22, 0.0
    %118 = vst.msk [vmem:[#allocation2 + $0x2f0] sm:$0xff] %vm22, 0.0
    %119 = vst.msk [vmem:[#allocation2 + $0x2f8] sm:$0x3] %vm25, 0.0
    %120 = vst.msk [vmem:[#allocation2 + $0x300] sm:$0xff] %vm22, 0.0
    %121 = vst.msk [vmem:[#allocation2 + $0x308] sm:$0xff] %vm22, 0.0
    %122 = vst.msk [vmem:[#allocation2 + $0x310] sm:$0x3] %vm25, 0.0
    %123 = vst.msk [vmem:[#allocation2 + $0x318] sm:$0xff] %vm22, 0.0
    %124 = vst.msk [vmem:[#allocation2 + $0x320] sm:$0xff] %vm22, 0.0
    %125 = vst.msk [vmem:[#allocation2 + $0x328] sm:$0x3] %vm25, 0.0
    %126 = vst.msk [vmem:[#allocation2 + $0x330] sm:$0xff] %vm22, 0.0
    %127 = vst.msk [vmem:[#allocation2 + $0x338] sm:$0xff] %vm22, 0.0
    %128 = vst.msk [vmem:[#allocation2 + $0x340] sm:$0x3] %vm25, 0.0
    %129 = vst.msk [vmem:[#allocation2 + $0x348] sm:$0xff] %vm22, 0.0
    %130 = vst.msk [vmem:[#allocation2 + $0x350] sm:$0xff] %vm22, 0.0
    %131 = vst.msk [vmem:[#allocation2 + $0x358] sm:$0x3] %vm25, 0.0
    %v132 = vld [vmem:[%s0] sm:$0xff]
    %v133 = vld [vmem:[%s0 + $0x8] sm:$0xff]
    %v134 = vld [vmem:[%s0 + $0x10] sm:$0xff]
    %v135 = vld [vmem:[%s0 + $0x18] sm:$0xff]
    %v136 = vld [vmem:[%s0 + $0x20] sm:$0xff]
    %v137 = vld [vmem:[%s0 + $0x28] sm:$0xff]
    %v138 = vld [vmem:[%s0 + $0x30] sm:$0xff]
    %v139 = vld [vmem:[%s0 + $0x38] sm:$0xff]
    %v140 = vld [vmem:[%s0 + $0x40] sm:$0xff]
    %v141 = vld [vmem:[%s0 + $0x48] sm:$0xff]
    %v142 = vld [vmem:[%s0 + $0x50] sm:$0xff]
    %v143 = vld [vmem:[%s0 + $0x58] sm:$0xff]
    %v144 = vld [vmem:[%s0 + $0x60] sm:$0xff]
    %v145 = vld [vmem:[%s0 + $0x68] sm:$0xff]
    %v146 = vld [vmem:[%s0 + $0x70] sm:$0xff]
    %v147 = vld [vmem:[%s0 + $0x78] sm:$0xff]
    %v148 = vld [vmem:[%s0 + $0x80] sm:$0xff]
    %v149 = vld [vmem:[%s0 + $0x88] sm:$0xff]
    %v150 = vld [vmem:[%s0 + $0x90] sm:$0xff]
    %v151 = vld [vmem:[%s0 + $0x98] sm:$0xff]
    %v152 = vld [vmem:[%s0 + $0xa0] sm:$0xff]
    %v153 = vld [vmem:[%s0 + $0xa8] sm:$0xff]
    %v154 = vld [vmem:[%s0 + $0xb0] sm:$0xff]
    %v155 = vld [vmem:[%s0 + $0xb8] sm:$0xff]
    %v156 = vld [vmem:[%s0 + $0xc0] sm:$0xff]
    %v157 = vld [vmem:[%s0 + $0xc8] sm:$0xff]
    %v158 = vld [vmem:[%s0 + $0xd0] sm:$0xff]
    %v159 = vld [vmem:[%s0 + $0xd8] sm:$0xff]
    %v160 = vld [vmem:[%s0 + $0xe0] sm:$0xff]
    %v161 = vld [vmem:[%s0 + $0xe8] sm:$0xff]
    %v162 = vld [vmem:[%s0 + $0xf0] sm:$0xff]
    %v163 = vld [vmem:[%s0 + $0xf8] sm:$0xff]
    %v164 = vld [vmem:[%s0 + $0x100] sm:$0xff]
    %v165 = vld [vmem:[%s0 + $0x108] sm:$0xff]
    %v166 = vld [vmem:[%s0 + $0x110] sm:$0xff]
    %v167 = vld [vmem:[%s0 + $0x118] sm:$0xff]
    %v168 = vld [vmem:[%s0 + $0x120] sm:$0xff]
    %v169 = vld [vmem:[%s0 + $0x128] sm:$0xff]
    %v170 = vld [vmem:[%s0 + $0x130] sm:$0xff]
    %v171 = vld [vmem:[%s0 + $0x138] sm:$0xff]
    %v172 = vld [vmem:[%s0 + $0x140] sm:$0xff]
    %v173 = vld [vmem:[%s0 + $0x148] sm:$0xff]
    %v174 = vld [vmem:[%s0 + $0x150] sm:$0xff]
    %v175 = vld [vmem:[%s0 + $0x158] sm:$0xff]
    %v176 = vld [vmem:[%s0 + $0x160] sm:$0xff]
    %v177 = vld [vmem:[%s0 + $0x168] sm:$0xff]
    %v178 = vld [vmem:[%s0 + $0x170] sm:$0xff]
    %v179 = vld [vmem:[%s0 + $0x178] sm:$0xff]
    %v180 = vld [vmem:[%s0 + $0x180] sm:$0xff]
    %v181 = vld [vmem:[%s0 + $0x188] sm:$0xff]
    %v182 = vld [vmem:[%s0 + $0x190] sm:$0xff]
    %v183 = vld [vmem:[%s0 + $0x198] sm:$0xff]
    %v184 = vld [vmem:[%s0 + $0x1a0] sm:$0xff]
    %v185 = vld [vmem:[%s0 + $0x1a8] sm:$0xff]
    %v186 = vld [vmem:[%s0 + $0x1b0] sm:$0xff]
    %v187 = vld [vmem:[%s0 + $0x1b8] sm:$0xff]
    %v188 = vld [vmem:[%s0 + $0x1c0] sm:$0xff]
    %v189 = vld [vmem:[%s0 + $0x1c8] sm:$0xff]
    %v190 = vld [vmem:[%s0 + $0x1d0] sm:$0xff]
    %v191 = vld [vmem:[%s0 + $0x1d8] sm:$0xff]
    %v192 = vld [vmem:[%s0 + $0x1e0] sm:$0xff]
    %v193 = vld [vmem:[%s0 + $0x1e8] sm:$0xff]
    %v194 = vld [vmem:[%s0 + $0x1f0] sm:$0xff]
    %v195 = vld [vmem:[%s0 + $0x1f8] sm:$0xff]
    %s196 = scalar_lea.vmem [#allocation2], 24
    %197 = vst.msk [vmem:[%s196 + $0x1] sm:$0xff] %vm22, %v132
    %198 = vst.msk [vmem:[%s196 + $0x9] sm:$0xff] %vm22, %v133
    %199 = vst.msk [vmem:[%s196 + $0x19] sm:$0xff] %vm22, %v134
    %200 = vst.msk [vmem:[%s196 + $0x21] sm:$0xff] %vm22, %v135
    %201 = vst.msk [vmem:[%s196 + $0x31] sm:$0xff] %vm22, %v136
    %202 = vst.msk [vmem:[%s196 + $0x39] sm:$0xff] %vm22, %v137
    %203 = vst.msk [vmem:[%s196 + $0x49] sm:$0xff] %vm22, %v138
    %204 = vst.msk [vmem:[%s196 + $0x51] sm:$0xff] %vm22, %v139
    %205 = vst.msk [vmem:[%s196 + $0x61] sm:$0xff] %vm22, %v140
    %206 = vst.msk [vmem:[%s196 + $0x69] sm:$0xff] %vm22, %v141
    %207 = vst.msk [vmem:[%s196 + $0x79] sm:$0xff] %vm22, %v142
    %208 = vst.msk [vmem:[%s196 + $0x81] sm:$0xff] %vm22, %v143
    %209 = vst.msk [vmem:[%s196 + $0x91] sm:$0xff] %vm22, %v144
    %210 = vst.msk [vmem:[%s196 + $0x99] sm:$0xff] %vm22, %v145
    %211 = vst.msk [vmem:[%s196 + $0xa9] sm:$0xff] %vm22, %v146
    %212 = vst.msk [vmem:[%s196 + $0xb1] sm:$0xff] %vm22, %v147
    %213 = vst.msk [vmem:[%s196 + $0xc1] sm:$0xff] %vm22, %v148
    %214 = vst.msk [vmem:[%s196 + $0xc9] sm:$0xff] %vm22, %v149
    %215 = vst.msk [vmem:[%s196 + $0xd9] sm:$0xff] %vm22, %v150
    %216 = vst.msk [vmem:[%s196 + $0xe1] sm:$0xff] %vm22, %v151
    %217 = vst.msk [vmem:[%s196 + $0xf1] sm:$0xff] %vm22, %v152
    %218 = vst.msk [vmem:[%s196 + $0xf9] sm:$0xff] %vm22, %v153
    %219 = vst.msk [vmem:[%s196 + $0x109] sm:$0xff] %vm22, %v154
    %220 = vst.msk [vmem:[%s196 + $0x111] sm:$0xff] %vm22, %v155
    %221 = vst.msk [vmem:[%s196 + $0x121] sm:$0xff] %vm22, %v156
    %222 = vst.msk [vmem:[%s196 + $0x129] sm:$0xff] %vm22, %v157
    %223 = vst.msk [vmem:[%s196 + $0x139] sm:$0xff] %vm22, %v158
    %224 = vst.msk [vmem:[%s196 + $0x141] sm:$0xff] %vm22, %v159
    %225 = vst.msk [vmem:[%s196 + $0x151] sm:$0xff] %vm22, %v160
    %226 = vst.msk [vmem:[%s196 + $0x159] sm:$0xff] %vm22, %v161
    %227 = vst.msk [vmem:[%s196 + $0x169] sm:$0xff] %vm22, %v162
    %228 = vst.msk [vmem:[%s196 + $0x171] sm:$0xff] %vm22, %v163
    %229 = vst.msk [vmem:[%s196 + $0x1b1] sm:$0xff] %vm22, %v164
    %230 = vst.msk [vmem:[%s196 + $0x1b9] sm:$0xff] %vm22, %v165
    %231 = vst.msk [vmem:[%s196 + $0x1c9] sm:$0xff] %vm22, %v166
    %232 = vst.msk [vmem:[%s196 + $0x1d1] sm:$0xff] %vm22, %v167
    %233 = vst.msk [vmem:[%s196 + $0x1e1] sm:$0xff] %vm22, %v168
    %234 = vst.msk [vmem:[%s196 + $0x1e9] sm:$0xff] %vm22, %v169
    %235 = vst.msk [vmem:[%s196 + $0x1f9] sm:$0xff] %vm22, %v170
    %236 = vst.msk [vmem:[%s196 + $0x201] sm:$0xff] %vm22, %v171
    %237 = vst.msk [vmem:[%s196 + $0x211] sm:$0xff] %vm22, %v172
    %238 = vst.msk [vmem:[%s196 + $0x219] sm:$0xff] %vm22, %v173
    %239 = vst.msk [vmem:[%s196 + $0x229] sm:$0xff] %vm22, %v174
    %240 = vst.msk [vmem:[%s196 + $0x231] sm:$0xff] %vm22, %v175
    %241 = vst.msk [vmem:[%s196 + $0x241] sm:$0xff] %vm22, %v176
    %242 = vst.msk [vmem:[%s196 + $0x249] sm:$0xff] %vm22, %v177
    %243 = vst.msk [vmem:[%s196 + $0x259] sm:$0xff] %vm22, %v178
    %244 = vst.msk [vmem:[%s196 + $0x261] sm:$0xff] %vm22, %v179
    %245 = vst.msk [vmem:[%s196 + $0x271] sm:$0xff] %vm22, %v180
    %246 = vst.msk [vmem:[%s196 + $0x279] sm:$0xff] %vm22, %v181
    %247 = vst.msk [vmem:[%s196 + $0x289] sm:$0xff] %vm22, %v182
    %248 = vst.msk [vmem:[%s196 + $0x291] sm:$0xff] %vm22, %v183
    %249 = vst.msk [vmem:[%s196 + $0x2a1] sm:$0xff] %vm22, %v184
    %250 = vst.msk [vmem:[%s196 + $0x2a9] sm:$0xff] %vm22, %v185
    %251 = vst.msk [vmem:[%s196 + $0x2b9] sm:$0xff] %vm22, %v186
    %252 = vst.msk [vmem:[%s196 + $0x2c1] sm:$0xff] %vm22, %v187
    %253 = vst.msk [vmem:[%s196 + $0x2d1] sm:$0xff] %vm22, %v188
    %254 = vst.msk [vmem:[%s196 + $0x2d9] sm:$0xff] %vm22, %v189
    %255 = vst.msk [vmem:[%s196 + $0x2e9] sm:$0xff] %vm22, %v190
    %256 = vst.msk [vmem:[%s196 + $0x2f1] sm:$0xff] %vm22, %v191
    %257 = vst.msk [vmem:[%s196 + $0x301] sm:$0xff] %vm22, %v192
    %258 = vst.msk [vmem:[%s196 + $0x309] sm:$0xff] %vm22, %v193
    %259 = vst.msk [vmem:[%s196 + $0x319] sm:$0xff] %vm22, %v194
    %260 = vst.msk [vmem:[%s196 + $0x321] sm:$0xff] %vm22, %v195
    %v261 = vld [vmem:[#allocation2] sm:$0xff]
    %v262 = vld [vmem:[#allocation2 + $0x8] sm:$0xff]
    %v263 = vld [vmem:[#allocation2 + $0x18] sm:$0xff]
    %v264 = vld [vmem:[#allocation2 + $0x20] sm:$0xff]
    %v265 = vld [vmem:[#allocation2 + $0x30] sm:$0xff]
    %v266 = vld [vmem:[#allocation2 + $0x38] sm:$0xff]
    %v267 = vld [vmem:[#allocation2 + $0x48] sm:$0xff]
    %v268 = vld [vmem:[#allocation2 + $0x50] sm:$0xff]
    %v269 = vld [vmem:[#allocation2 + $0x60] sm:$0xff]
    %v270 = vld [vmem:[#allocation2 + $0x68] sm:$0xff]
    %v271 = vld [vmem:[#allocation2 + $0x78] sm:$0xff]
    %v272 = vld [vmem:[#allocation2 + $0x80] sm:$0xff]
    %v273 = vld [vmem:[#allocation2 + $0x90] sm:$0xff]
    %v274 = vld [vmem:[#allocation2 + $0x98] sm:$0xff]
    %v275 = vld [vmem:[#allocation2 + $0xa8] sm:$0xff]
    %v276 = vld [vmem:[#allocation2 + $0xb0] sm:$0xff]
    %v277 = vld [vmem:[#allocation2 + $0xc0] sm:$0xff]
    %v278 = vld [vmem:[#allocation2 + $0xc8] sm:$0xff]
    %v279 = vld [vmem:[#allocation2 + $0xd8] sm:$0xff]
    %v280 = vld [vmem:[#allocation2 + $0xe0] sm:$0xff]
    %v281 = vld [vmem:[#allocation2 + $0xf0] sm:$0xff]
    %v282 = vld [vmem:[#allocation2 + $0xf8] sm:$0xff]
    %v283 = vld [vmem:[#allocation2 + $0x108] sm:$0xff]
    %v284 = vld [vmem:[#allocation2 + $0x110] sm:$0xff]
    %v285 = vld [vmem:[#allocation2 + $0x120] sm:$0xff]
    %v286 = vld [vmem:[#allocation2 + $0x128] sm:$0xff]
    %v287 = vld [vmem:[#allocation2 + $0x138] sm:$0xff]
    %v288 = vld [vmem:[#allocation2 + $0x140] sm:$0xff]
    %v289 = vld [vmem:[#allocation2 + $0x150] sm:$0xff]
    %v290 = vld [vmem:[#allocation2 + $0x158] sm:$0xff]
    %v291 = vld [vmem:[#allocation2 + $0x168] sm:$0xff]
    %v292 = vld [vmem:[#allocation2 + $0x170] sm:$0xff]
    %v293 = vld [vmem:[#allocation2 + $0x1b0] sm:$0xff]
    %v294 = vld [vmem:[#allocation2 + $0x1b8] sm:$0xff]
    %v295 = vld [vmem:[#allocation2 + $0x1c8] sm:$0xff]
    %v296 = vld [vmem:[#allocation2 + $0x1d0] sm:$0xff]
    %v297 = vld [vmem:[#allocation2 + $0x1e0] sm:$0xff]
    %v298 = vld [vmem:[#allocation2 + $0x1e8] sm:$0xff]
    %v299 = vld [vmem:[#allocation2 + $0x1f8] sm:$0xff]
    %v300 = vld [vmem:[#allocation2 + $0x200] sm:$0xff]
    %v301 = vld [vmem:[#allocation2 + $0x210] sm:$0xff]
    %v302 = vld [vmem:[#allocation2 + $0x218] sm:$0xff]
    %v303 = vld [vmem:[#allocation2 + $0x228] sm:$0xff]
    %v304 = vld [vmem:[#allocation2 + $0x230] sm:$0xff]
    %v305 = vld [vmem:[#allocation2 + $0x240] sm:$0xff]
    %v306 = vld [vmem:[#allocation2 + $0x248] sm:$0xff]
    %v307 = vld [vmem:[#allocation2 + $0x258] sm:$0xff]
    %v308 = vld [vmem:[#allocation2 + $0x260] sm:$0xff]
    %v309 = vld [vmem:[#allocation2 + $0x270] sm:$0xff]
    %v310 = vld [vmem:[#allocation2 + $0x278] sm:$0xff]
    %v311 = vld [vmem:[#allocation2 + $0x288] sm:$0xff]
    %v312 = vld [vmem:[#allocation2 + $0x290] sm:$0xff]
    %v313 = vld [vmem:[#allocation2 + $0x2a0] sm:$0xff]
    %v314 = vld [vmem:[#allocation2 + $0x2a8] sm:$0xff]
    %v315 = vld [vmem:[#allocation2 + $0x2b8] sm:$0xff]
    %v316 = vld [vmem:[#allocation2 + $0x2c0] sm:$0xff]
    %v317 = vld [vmem:[#allocation2 + $0x2d0] sm:$0xff]
    %v318 = vld [vmem:[#allocation2 + $0x2d8] sm:$0xff]
    %v319 = vld [vmem:[#allocation2 + $0x2e8] sm:$0xff]
    %v320 = vld [vmem:[#allocation2 + $0x2f0] sm:$0xff]
    %v321 = vld [vmem:[#allocation2 + $0x300] sm:$0xff]
    %v322 = vld [vmem:[#allocation2 + $0x308] sm:$0xff]
    %v323 = vld [vmem:[#allocation2 + $0x318] sm:$0xff]
    %v324 = vld [vmem:[#allocation2 + $0x320] sm:$0xff]
    %325 = vst.msk [vmem:[#allocation3] sm:$0xff] %vm22, %v261
    %326 = vst.msk [vmem:[#allocation3 + $0x8] sm:$0xff] %vm22, %v262
    %327 = vst.msk [vmem:[#allocation3 + $0x10] sm:$0xff] %vm22, %v263
    %328 = vst.msk [vmem:[#allocation3 + $0x18] sm:$0xff] %vm22, %v264
    %329 = vst.msk [vmem:[#allocation3 + $0x20] sm:$0xff] %vm22, %v265
    %330 = vst.msk [vmem:[#allocation3 + $0x28] sm:$0xff] %vm22, %v266
    %331 = vst.msk [vmem:[#allocation3 + $0x30] sm:$0xff] %vm22, %v267
    %332 = vst.msk [vmem:[#allocation3 + $0x38] sm:$0xff] %vm22, %v268
    %333 = vst.msk [vmem:[#allocation3 + $0x40] sm:$0xff] %vm22, %v269
    %334 = vst.msk [vmem:[#allocation3 + $0x48] sm:$0xff] %vm22, %v270
    %335 = vst.msk [vmem:[#allocation3 + $0x50] sm:$0xff] %vm22, %v271
    %336 = vst.msk [vmem:[#allocation3 + $0x58] sm:$0xff] %vm22, %v272
    %337 = vst.msk [vmem:[#allocation3 + $0x60] sm:$0xff] %vm22, %v273
    %338 = vst.msk [vmem:[#allocation3 + $0x68] sm:$0xff] %vm22, %v274
    %339 = vst.msk [vmem:[#allocation3 + $0x70] sm:$0xff] %vm22, %v275
    %340 = vst.msk [vmem:[#allocation3 + $0x78] sm:$0xff] %vm22, %v276
    %341 = vst.msk [vmem:[#allocation3 + $0x80] sm:$0xff] %vm22, %v277
    %342 = vst.msk [vmem:[#allocation3 + $0x88] sm:$0xff] %vm22, %v278
    %343 = vst.msk [vmem:[#allocation3 + $0x90] sm:$0xff] %vm22, %v279
    %344 = vst.msk [vmem:[#allocation3 + $0x98] sm:$0xff] %vm22, %v280
    %345 = vst.msk [vmem:[#allocation3 + $0xa0] sm:$0xff] %vm22, %v281
    %346 = vst.msk [vmem:[#allocation3 + $0xa8] sm:$0xff] %vm22, %v282
    %347 = vst.msk [vmem:[#allocation3 + $0xb0] sm:$0xff] %vm22, %v283
    %348 = vst.msk [vmem:[#allocation3 + $0xb8] sm:$0xff] %vm22, %v284
    %349 = vst.msk [vmem:[#allocation3 + $0xc0] sm:$0xff] %vm22, %v285
    %350 = vst.msk [vmem:[#allocation3 + $0xc8] sm:$0xff] %vm22, %v286
    %351 = vst.msk [vmem:[#allocation3 + $0xd0] sm:$0xff] %vm22, %v287
    %352 = vst.msk [vmem:[#allocation3 + $0xd8] sm:$0xff] %vm22, %v288
    %353 = vst.msk [vmem:[#allocation3 + $0xe0] sm:$0xff] %vm22, %v289
    %354 = vst.msk [vmem:[#allocation3 + $0xe8] sm:$0xff] %vm22, %v290
    %355 = vst.msk [vmem:[#allocation3 + $0xf0] sm:$0xff] %vm22, %v291
    %356 = vst.msk [vmem:[#allocation3 + $0xf8] sm:$0xff] %vm22, %v292
    %357 = vst.msk [vmem:[#allocation3 + $0x100] sm:$0xff] %vm22, %v293
    %358 = vst.msk [vmem:[#allocation3 + $0x108] sm:$0xff] %vm22, %v294
    %359 = vst.msk [vmem:[#allocation3 + $0x110] sm:$0xff] %vm22, %v295
    %360 = vst.msk [vmem:[#allocation3 + $0x118] sm:$0xff] %vm22, %v296
    %361 = vst.msk [vmem:[#allocation3 + $0x120] sm:$0xff] %vm22, %v297
    %362 = vst.msk [vmem:[#allocation3 + $0x128] sm:$0xff] %vm22, %v298
    %363 = vst.msk [vmem:[#allocation3 + $0x130] sm:$0xff] %vm22, %v299
    %364 = vst.msk [vmem:[#allocation3 + $0x138] sm:$0xff] %vm22, %v300
    %365 = vst.msk [vmem:[#allocation3 + $0x140] sm:$0xff] %vm22, %v301
    %366 = vst.msk [vmem:[#allocation3 + $0x148] sm:$0xff] %vm22, %v302
    %367 = vst.msk [vmem:[#allocation3 + $0x150] sm:$0xff] %vm22, %v303
    %368 = vst.msk [vmem:[#allocation3 + $0x158] sm:$0xff] %vm22, %v304
    %369 = vst.msk [vmem:[#allocation3 + $0x160] sm:$0xff] %vm22, %v305
    %370 = vst.msk [vmem:[#allocation3 + $0x168] sm:$0xff] %vm22, %v306
    %371 = vst.msk [vmem:[#allocation3 + $0x170] sm:$0xff] %vm22, %v307
    %372 = vst.msk [vmem:[#allocation3 + $0x178] sm:$0xff] %vm22, %v308
    %373 = vst.msk [vmem:[#allocation3 + $0x180] sm:$0xff] %vm22, %v309
    %374 = vst.msk [vmem:[#allocation3 + $0x188] sm:$0xff] %vm22, %v310
    %375 = vst.msk [vmem:[#allocation3 + $0x190] sm:$0xff] %vm22, %v311
    %376 = vst.msk [vmem:[#allocation3 + $0x198] sm:$0xff] %vm22, %v312
    %377 = vst.msk [vmem:[#allocation3 + $0x1a0] sm:$0xff] %vm22, %v313
    %378 = vst.msk [vmem:[#allocation3 + $0x1a8] sm:$0xff] %vm22, %v314
    %379 = vst.msk [vmem:[#allocation3 + $0x1b0] sm:$0xff] %vm22, %v315
    %380 = vst.msk [vmem:[#allocation3 + $0x1b8] sm:$0xff] %vm22, %v316
    %381 = vst.msk [vmem:[#allocation3 + $0x1c0] sm:$0xff] %vm22, %v317
    %382 = vst.msk [vmem:[#allocation3 + $0x1c8] sm:$0xff] %vm22, %v318
    %383 = vst.msk [vmem:[#allocation3 + $0x1d0] sm:$0xff] %vm22, %v319
    %384 = vst.msk [vmem:[#allocation3 + $0x1d8] sm:$0xff] %vm22, %v320
    %385 = vst.msk [vmem:[#allocation3 + $0x1e0] sm:$0xff] %vm22, %v321
    %386 = vst.msk [vmem:[#allocation3 + $0x1e8] sm:$0xff] %vm22, %v322
    %387 = vst.msk [vmem:[#allocation3 + $0x1f0] sm:$0xff] %vm22, %v323
    %388 = vst.msk [vmem:[#allocation3 + $0x1f8] sm:$0xff] %vm22, %v324
    %v389 = vld [vmem:[#allocation2 + $0x1] sm:$0xff]
    %v390 = vld [vmem:[#allocation2 + $0x9] sm:$0xff]
    %v391 = vld [vmem:[#allocation2 + $0x19] sm:$0xff]
    %v392 = vld [vmem:[#allocation2 + $0x21] sm:$0xff]
    %v393 = vld [vmem:[#allocation2 + $0x31] sm:$0xff]
    %v394 = vld [vmem:[#allocation2 + $0x39] sm:$0xff]
    %v395 = vld [vmem:[#allocation2 + $0x49] sm:$0xff]
    %v396 = vld [vmem:[#allocation2 + $0x51] sm:$0xff]
    %v397 = vld [vmem:[#allocation2 + $0x61] sm:$0xff]
    %v398 = vld [vmem:[#allocation2 + $0x69] sm:$0xff]
    %v399 = vld [vmem:[#allocation2 + $0x79] sm:$0xff]
    %v400 = vld [vmem:[#allocation2 + $0x81] sm:$0xff]
    %v401 = vld [vmem:[#allocation2 + $0x91] sm:$0xff]
    %v402 = vld [vmem:[#allocation2 + $0x99] sm:$0xff]
    %v403 = vld [vmem:[#allocation2 + $0xa9] sm:$0xff]
    %v404 = vld [vmem:[#allocation2 + $0xb1] sm:$0xff]
    %v405 = vld [vmem:[#allocation2 + $0xc1] sm:$0xff]
    %v406 = vld [vmem:[#allocation2 + $0xc9] sm:$0xff]
    %v407 = vld [vmem:[#allocation2 + $0xd9] sm:$0xff]
    %v408 = vld [vmem:[#allocation2 + $0xe1] sm:$0xff]
    %v409 = vld [vmem:[#allocation2 + $0xf1] sm:$0xff]
    %v410 = vld [vmem:[#allocation2 + $0xf9] sm:$0xff]
    %v411 = vld [vmem:[#allocation2 + $0x109] sm:$0xff]
    %v412 = vld [vmem:[#allocation2 + $0x111] sm:$0xff]
    %v413 = vld [vmem:[#allocation2 + $0x121] sm:$0xff]
    %v414 = vld [vmem:[#allocation2 + $0x129] sm:$0xff]
    %v415 = vld [vmem:[#allocation2 + $0x139] sm:$0xff]
    %v416 = vld [vmem:[#allocation2 + $0x141] sm:$0xff]
    %v417 = vld [vmem:[#allocation2 + $0x151] sm:$0xff]
    %v418 = vld [vmem:[#allocation2 + $0x159] sm:$0xff]
    %v419 = vld [vmem:[#allocation2 + $0x169] sm:$0xff]
    %v420 = vld [vmem:[#allocation2 + $0x171] sm:$0xff]
    %v421 = vld [vmem:[#allocation2 + $0x1b1] sm:$0xff]
    %v422 = vld [vmem:[#allocation2 + $0x1b9] sm:$0xff]
    %v423 = vld [vmem:[#allocation2 + $0x1c9] sm:$0xff]
    %v424 = vld [vmem:[#allocation2 + $0x1d1] sm:$0xff]
    %v425 = vld [vmem:[#allocation2 + $0x1e1] sm:$0xff]
    %v426 = vld [vmem:[#allocation2 + $0x1e9] sm:$0xff]
    %v427 = vld [vmem:[#allocation2 + $0x1f9] sm:$0xff]
    %v428 = vld [vmem:[#allocation2 + $0x201] sm:$0xff]
    %v429 = vld [vmem:[#allocation2 + $0x211] sm:$0xff]
    %v430 = vld [vmem:[#allocation2 + $0x219] sm:$0xff]
    %v431 = vld [vmem:[#allocation2 + $0x229] sm:$0xff]
    %v432 = vld [vmem:[#allocation2 + $0x231] sm:$0xff]
    %v433 = vld [vmem:[#allocation2 + $0x241] sm:$0xff]
    %v434 = vld [vmem:[#allocation2 + $0x249] sm:$0xff]
    %v435 = vld [vmem:[#allocation2 + $0x259] sm:$0xff]
    %v436 = vld [vmem:[#allocation2 + $0x261] sm:$0xff]
    %v437 = vld [vmem:[#allocation2 + $0x271] sm:$0xff]
    %v438 = vld [vmem:[#allocation2 + $0x279] sm:$0xff]
    %v439 = vld [vmem:[#allocation2 + $0x289] sm:$0xff]
    %v440 = vld [vmem:[#allocation2 + $0x291] sm:$0xff]
    %v441 = vld [vmem:[#allocation2 + $0x2a1] sm:$0xff]
    %v442 = vld [vmem:[#allocation2 + $0x2a9] sm:$0xff]
    %v443 = vld [vmem:[#allocation2 + $0x2b9] sm:$0xff]
    %v444 = vld [vmem:[#allocation2 + $0x2c1] sm:$0xff]
    %v445 = vld [vmem:[#allocation2 + $0x2d1] sm:$0xff]
    %v446 = vld [vmem:[#allocation2 + $0x2d9] sm:$0xff]
    %v447 = vld [vmem:[#allocation2 + $0x2e9] sm:$0xff]
    %v448 = vld [vmem:[#allocation2 + $0x2f1] sm:$0xff]
    %v449 = vld [vmem:[#allocation2 + $0x301] sm:$0xff]
    %v450 = vld [vmem:[#allocation2 + $0x309] sm:$0xff]
    %v451 = vld [vmem:[#allocation2 + $0x319] sm:$0xff]
    %v452 = vld [vmem:[#allocation2 + $0x321] sm:$0xff]
    %517 = vrot.lane.b32.xlu0 %v389, 4
    %v518 = vpop.permute.xlu0 %517
    %519 = vrot.lane.b32.xlu0 %v390, 4
    %v520 = vpop.permute.xlu0 %519
    %521 = vrot.lane.b32.xlu0 %v391, 4
    %v522 = vpop.permute.xlu0 %521
    %523 = vrot.lane.b32.xlu0 %v392, 4
    %v524 = vpop.permute.xlu0 %523
    %525 = vrot.lane.b32.xlu0 %v393, 4
    %v526 = vpop.permute.xlu0 %525
    %527 = vrot.lane.b32.xlu0 %v394, 4
    %v528 = vpop.permute.xlu0 %527
    %529 = vrot.lane.b32.xlu0 %v395, 4
    %v530 = vpop.permute.xlu0 %529
    %531 = vrot.lane.b32.xlu0 %v396, 4
    %v532 = vpop.permute.xlu0 %531
    %533 = vrot.lane.b32.xlu0 %v397, 4
    %v534 = vpop.permute.xlu0 %533
    %535 = vrot.lane.b32.xlu0 %v398, 4
    %v536 = vpop.permute.xlu0 %535
    %537 = vrot.lane.b32.xlu0 %v399, 4
    %v538 = vpop.permute.xlu0 %537
    %539 = vrot.lane.b32.xlu0 %v400, 4
    %v540 = vpop.permute.xlu0 %539
    %541 = vrot.lane.b32.xlu0 %v401, 4
    %v542 = vpop.permute.xlu0 %541
    %543 = vrot.lane.b32.xlu0 %v402, 4
    %v544 = vpop.permute.xlu0 %543
    %545 = vrot.lane.b32.xlu0 %v403, 4
    %v546 = vpop.permute.xlu0 %545
    %547 = vrot.lane.b32.xlu0 %v404, 4
    %v548 = vpop.permute.xlu0 %547
    %549 = vrot.lane.b32.xlu0 %v405, 4
    %v550 = vpop.permute.xlu0 %549
    %551 = vrot.lane.b32.xlu0 %v406, 4
    %v552 = vpop.permute.xlu0 %551
    %553 = vrot.lane.b32.xlu0 %v407, 4
    %v554 = vpop.permute.xlu0 %553
    %555 = vrot.lane.b32.xlu0 %v408, 4
    %v556 = vpop.permute.xlu0 %555
    %557 = vrot.lane.b32.xlu0 %v409, 4
    %v558 = vpop.permute.xlu0 %557
    %559 = vrot.lane.b32.xlu0 %v410, 4
    %v560 = vpop.permute.xlu0 %559
    %561 = vrot.lane.b32.xlu0 %v411, 4
    %v562 = vpop.permute.xlu0 %561
    %563 = vrot.lane.b32.xlu0 %v412, 4
    %v564 = vpop.permute.xlu0 %563
    %565 = vrot.lane.b32.xlu0 %v413, 4
    %v566 = vpop.permute.xlu0 %565
    %567 = vrot.lane.b32.xlu0 %v414, 4
    %v568 = vpop.permute.xlu0 %567
    %569 = vrot.lane.b32.xlu0 %v415, 4
    %v570 = vpop.permute.xlu0 %569
    %571 = vrot.lane.b32.xlu0 %v416, 4
    %v572 = vpop.permute.xlu0 %571
    %573 = vrot.lane.b32.xlu0 %v417, 4
    %v574 = vpop.permute.xlu0 %573
    %575 = vrot.lane.b32.xlu0 %v418, 4
    %v576 = vpop.permute.xlu0 %575
    %577 = vrot.lane.b32.xlu0 %v419, 4
    %v578 = vpop.permute.xlu0 %577
    %579 = vrot.lane.b32.xlu0 %v420, 4
    %v580 = vpop.permute.xlu0 %579
    %581 = vrot.lane.b32.xlu0 %v421, 4
    %v582 = vpop.permute.xlu0 %581
    %583 = vrot.lane.b32.xlu0 %v422, 4
    %v584 = vpop.permute.xlu0 %583
    %585 = vrot.lane.b32.xlu0 %v423, 4
    %v586 = vpop.permute.xlu0 %585
    %587 = vrot.lane.b32.xlu0 %v424, 4
    %v588 = vpop.permute.xlu0 %587
    %589 = vrot.lane.b32.xlu0 %v425, 4
    %v590 = vpop.permute.xlu0 %589
    %591 = vrot.lane.b32.xlu0 %v426, 4
    %v592 = vpop.permute.xlu0 %591
    %593 = vrot.lane.b32.xlu0 %v427, 4
    %v594 = vpop.permute.xlu0 %593
    %595 = vrot.lane.b32.xlu0 %v428, 4
    %v596 = vpop.permute.xlu0 %595
    %597 = vrot.lane.b32.xlu0 %v429, 4
    %v598 = vpop.permute.xlu0 %597
    %599 = vrot.lane.b32.xlu0 %v430, 4
    %v600 = vpop.permute.xlu0 %599
    %601 = vrot.lane.b32.xlu0 %v431, 4
    %v602 = vpop.permute.xlu0 %601
    %603 = vrot.lane.b32.xlu0 %v432, 4
    %v604 = vpop.permute.xlu0 %603
    %605 = vrot.lane.b32.xlu0 %v433, 4
    %v606 = vpop.permute.xlu0 %605
    %607 = vrot.lane.b32.xlu0 %v434, 4
    %v608 = vpop.permute.xlu0 %607
    %609 = vrot.lane.b32.xlu0 %v435, 4
    %v610 = vpop.permute.xlu0 %609
    %611 = vrot.lane.b32.xlu0 %v436, 4
    %v612 = vpop.permute.xlu0 %611
    %613 = vrot.lane.b32.xlu0 %v437, 4
    %v614 = vpop.permute.xlu0 %613
    %615 = vrot.lane.b32.xlu0 %v438, 4
    %v616 = vpop.permute.xlu0 %615
    %617 = vrot.lane.b32.xlu0 %v439, 4
    %v618 = vpop.permute.xlu0 %617
    %619 = vrot.lane.b32.xlu0 %v440, 4
    %v620 = vpop.permute.xlu0 %619
    %621 = vrot.lane.b32.xlu0 %v441, 4
    %v622 = vpop.permute.xlu0 %621
    %623 = vrot.lane.b32.xlu0 %v442, 4
    %v624 = vpop.permute.xlu0 %623
    %625 = vrot.lane.b32.xlu0 %v443, 4
    %v626 = vpop.permute.xlu0 %625
    %627 = vrot.lane.b32.xlu0 %v444, 4
    %v628 = vpop.permute.xlu0 %627
    %629 = vrot.lane.b32.xlu0 %v445, 4
    %v630 = vpop.permute.xlu0 %629
    %631 = vrot.lane.b32.xlu0 %v446, 4
    %v632 = vpop.permute.xlu0 %631
    %633 = vrot.lane.b32.xlu0 %v447, 4
    %v634 = vpop.permute.xlu0 %633
    %635 = vrot.lane.b32.xlu0 %v448, 4
    %v636 = vpop.permute.xlu0 %635
    %637 = vrot.lane.b32.xlu0 %v449, 4
    %v638 = vpop.permute.xlu0 %637
    %639 = vrot.lane.b32.xlu0 %v450, 4
    %v640 = vpop.permute.xlu0 %639
    %641 = vrot.lane.b32.xlu0 %v451, 4
    %v642 = vpop.permute.xlu0 %641
    %643 = vrot.lane.b32.xlu0 %v452, 4
    %v644 = vpop.permute.xlu0 %643
    %vm709 = vcmask 64544
    %710 = vst.msk [vmem:[#allocation3] sm:$0xff] %vm709, %v518
    %711 = vst.msk [vmem:[#allocation3 + $0x8] sm:$0xff] %vm709, %v520
    %712 = vst.msk [vmem:[#allocation3 + $0x10] sm:$0xff] %vm709, %v522
    %713 = vst.msk [vmem:[#allocation3 + $0x18] sm:$0xff] %vm709, %v524
    %714 = vst.msk [vmem:[#allocation3 + $0x20] sm:$0xff] %vm709, %v526
    %715 = vst.msk [vmem:[#allocation3 + $0x28] sm:$0xff] %vm709, %v528
    %716 = vst.msk [vmem:[#allocation3 + $0x30] sm:$0xff] %vm709, %v530
    %717 = vst.msk [vmem:[#allocation3 + $0x38] sm:$0xff] %vm709, %v532
    %718 = vst.msk [vmem:[#allocation3 + $0x40] sm:$0xff] %vm709, %v534
    %719 = vst.msk [vmem:[#allocation3 + $0x48] sm:$0xff] %vm709, %v536
    %720 = vst.msk [vmem:[#allocation3 + $0x50] sm:$0xff] %vm709, %v538
    %721 = vst.msk [vmem:[#allocation3 + $0x58] sm:$0xff] %vm709, %v540
    %722 = vst.msk [vmem:[#allocation3 + $0x60] sm:$0xff] %vm709, %v542
    %723 = vst.msk [vmem:[#allocation3 + $0x68] sm:$0xff] %vm709, %v544
    %724 = vst.msk [vmem:[#allocation3 + $0x70] sm:$0xff] %vm709, %v546
    %725 = vst.msk [vmem:[#allocation3 + $0x78] sm:$0xff] %vm709, %v548
    %726 = vst.msk [vmem:[#allocation3 + $0x80] sm:$0xff] %vm709, %v550
    %727 = vst.msk [vmem:[#allocation3 + $0x88] sm:$0xff] %vm709, %v552
    %728 = vst.msk [vmem:[#allocation3 + $0x90] sm:$0xff] %vm709, %v554
    %729 = vst.msk [vmem:[#allocation3 + $0x98] sm:$0xff] %vm709, %v556
    %730 = vst.msk [vmem:[#allocation3 + $0xa0] sm:$0xff] %vm709, %v558
    %731 = vst.msk [vmem:[#allocation3 + $0xa8] sm:$0xff] %vm709, %v560
    %732 = vst.msk [vmem:[#allocation3 + $0xb0] sm:$0xff] %vm709, %v562
    %733 = vst.msk [vmem:[#allocation3 + $0xb8] sm:$0xff] %vm709, %v564
    %734 = vst.msk [vmem:[#allocation3 + $0xc0] sm:$0xff] %vm709, %v566
    %735 = vst.msk [vmem:[#allocation3 + $0xc8] sm:$0xff] %vm709, %v568
    %736 = vst.msk [vmem:[#allocation3 + $0xd0] sm:$0xff] %vm709, %v570
    %737 = vst.msk [vmem:[#allocation3 + $0xd8] sm:$0xff] %vm709, %v572
    %738 = vst.msk [vmem:[#allocation3 + $0xe0] sm:$0xff] %vm709, %v574
    %739 = vst.msk [vmem:[#allocation3 + $0xe8] sm:$0xff] %vm709, %v576
    %740 = vst.msk [vmem:[#allocation3 + $0xf0] sm:$0xff] %vm709, %v578
    %741 = vst.msk [vmem:[#allocation3 + $0xf8] sm:$0xff] %vm709, %v580
    %742 = vst.msk [vmem:[#allocation3 + $0x100] sm:$0xff] %vm709, %v582
    %743 = vst.msk [vmem:[#allocation3 + $0x108] sm:$0xff] %vm709, %v584
    %744 = vst.msk [vmem:[#allocation3 + $0x110] sm:$0xff] %vm709, %v586
    %745 = vst.msk [vmem:[#allocation3 + $0x118] sm:$0xff] %vm709, %v588
    %746 = vst.msk [vmem:[#allocation3 + $0x120] sm:$0xff] %vm709, %v590
    %747 = vst.msk [vmem:[#allocation3 + $0x128] sm:$0xff] %vm709, %v592
    %748 = vst.msk [vmem:[#allocation3 + $0x130] sm:$0xff] %vm709, %v594
    %749 = vst.msk [vmem:[#allocation3 + $0x138] sm:$0xff] %vm709, %v596
    %750 = vst.msk [vmem:[#allocation3 + $0x140] sm:$0xff] %vm709, %v598
    %751 = vst.msk [vmem:[#allocation3 + $0x148] sm:$0xff] %vm709, %v600
    %752 = vst.msk [vmem:[#allocation3 + $0x150] sm:$0xff] %vm709, %v602
    %753 = vst.msk [vmem:[#allocation3 + $0x158] sm:$0xff] %vm709, %v604
    %754 = vst.msk [vmem:[#allocation3 + $0x160] sm:$0xff] %vm709, %v606
    %755 = vst.msk [vmem:[#allocation3 + $0x168] sm:$0xff] %vm709, %v608
    %756 = vst.msk [vmem:[#allocation3 + $0x170] sm:$0xff] %vm709, %v610
    %757 = vst.msk [vmem:[#allocation3 + $0x178] sm:$0xff] %vm709, %v612
    %758 = vst.msk [vmem:[#allocation3 + $0x180] sm:$0xff] %vm709, %v614
    %759 = vst.msk [vmem:[#allocation3 + $0x188] sm:$0xff] %vm709, %v616
    %760 = vst.msk [vmem:[#allocation3 + $0x190] sm:$0xff] %vm709, %v618
    %761 = vst.msk [vmem:[#allocation3 + $0x198] sm:$0xff] %vm709, %v620
    %762 = vst.msk [vmem:[#allocation3 + $0x1a0] sm:$0xff] %vm709, %v622
    %763 = vst.msk [vmem:[#allocation3 + $0x1a8] sm:$0xff] %vm709, %v624
    %764 = vst.msk [vmem:[#allocation3 + $0x1b0] sm:$0xff] %vm709, %v626
    %765 = vst.msk [vmem:[#allocation3 + $0x1b8] sm:$0xff] %vm709, %v628
    %766 = vst.msk [vmem:[#allocation3 + $0x1c0] sm:$0xff] %vm709, %v630
    %767 = vst.msk [vmem:[#allocation3 + $0x1c8] sm:$0xff] %vm709, %v632
    %768 = vst.msk [vmem:[#allocation3 + $0x1d0] sm:$0xff] %vm709, %v634
    %769 = vst.msk [vmem:[#allocation3 + $0x1d8] sm:$0xff] %vm709, %v636
    %770 = vst.msk [vmem:[#allocation3 + $0x1e0] sm:$0xff] %vm709, %v638
    %771 = vst.msk [vmem:[#allocation3 + $0x1e8] sm:$0xff] %vm709, %v640
    %772 = vst.msk [vmem:[#allocation3 + $0x1f0] sm:$0xff] %vm709, %v642
    %773 = vst.msk [vmem:[#allocation3 + $0x1f8] sm:$0xff] %vm709, %v644
    %v774 = vld [vmem:[#allocation2 + $0x2] sm:$0xff]
    %v775 = vld [vmem:[#allocation2 + $0xa] sm:$0xff]
    %v776 = vld [vmem:[#allocation2 + $0x1a] sm:$0xff]
    %v777 = vld [vmem:[#allocation2 + $0x22] sm:$0xff]
    %v778 = vld [vmem:[#allocation2 + $0x32] sm:$0xff]
    %v779 = vld [vmem:[#allocation2 + $0x3a] sm:$0xff]
    %v780 = vld [vmem:[#allocation2 + $0x4a] sm:$0xff]
    %v781 = vld [vmem:[#allocation2 + $0x52] sm:$0xff]
    %v782 = vld [vmem:[#allocation2 + $0x62] sm:$0xff]
    %v783 = vld [vmem:[#allocation2 + $0x6a] sm:$0xff]
    %v784 = vld [vmem:[#allocation2 + $0x7a] sm:$0xff]
    %v785 = vld [vmem:[#allocation2 + $0x82] sm:$0xff]
    %v786 = vld [vmem:[#allocation2 + $0x92] sm:$0xff]
    %v787 = vld [vmem:[#allocation2 + $0x9a] sm:$0xff]
    %v788 = vld [vmem:[#allocation2 + $0xaa] sm:$0xff]
    %v789 = vld [vmem:[#allocation2 + $0xb2] sm:$0xff]
    %v790 = vld [vmem:[#allocation2 + $0xc2] sm:$0xff]
    %v791 = vld [vmem:[#allocation2 + $0xca] sm:$0xff]
    %v792 = vld [vmem:[#allocation2 + $0xda] sm:$0xff]
    %v793 = vld [vmem:[#allocation2 + $0xe2] sm:$0xff]
    %v794 = vld [vmem:[#allocation2 + $0xf2] sm:$0xff]
    %v795 = vld [vmem:[#allocation2 + $0xfa] sm:$0xff]
    %v796 = vld [vmem:[#allocation2 + $0x10a] sm:$0xff]
    %v797 = vld [vmem:[#allocation2 + $0x112] sm:$0xff]
    %v798 = vld [vmem:[#allocation2 + $0x122] sm:$0xff]
    %v799 = vld [vmem:[#allocation2 + $0x12a] sm:$0xff]
    %v800 = vld [vmem:[#allocation2 + $0x13a] sm:$0xff]
    %v801 = vld [vmem:[#allocation2 + $0x142] sm:$0xff]
    %v802 = vld [vmem:[#allocation2 + $0x152] sm:$0xff]
    %v803 = vld [vmem:[#allocation2 + $0x15a] sm:$0xff]
    %v804 = vld [vmem:[#allocation2 + $0x16a] sm:$0xff]
    %v805 = vld [vmem:[#allocation2 + $0x172] sm:$0xff]
    %v806 = vld [vmem:[#allocation2 + $0x1b2] sm:$0xff]
    %v807 = vld [vmem:[#allocation2 + $0x1ba] sm:$0xff]
    %v808 = vld [vmem:[#allocation2 + $0x1ca] sm:$0xff]
    %v809 = vld [vmem:[#allocation2 + $0x1d2] sm:$0xff]
    %v810 = vld [vmem:[#allocation2 + $0x1e2] sm:$0xff]
    %v811 = vld [vmem:[#allocation2 + $0x1ea] sm:$0xff]
    %v812 = vld [vmem:[#allocation2 + $0x1fa] sm:$0xff]
    %v813 = vld [vmem:[#allocation2 + $0x202] sm:$0xff]
    %v814 = vld [vmem:[#allocation2 + $0x212] sm:$0xff]
    %v815 = vld [vmem:[#allocation2 + $0x21a] sm:$0xff]
    %v816 = vld [vmem:[#allocation2 + $0x22a] sm:$0xff]
    %v817 = vld [vmem:[#allocation2 + $0x232] sm:$0xff]
    %v818 = vld [vmem:[#allocation2 + $0x242] sm:$0xff]
    %v819 = vld [vmem:[#allocation2 + $0x24a] sm:$0xff]
    %v820 = vld [vmem:[#allocation2 + $0x25a] sm:$0xff]
    %v821 = vld [vmem:[#allocation2 + $0x262] sm:$0xff]
    %v822 = vld [vmem:[#allocation2 + $0x272] sm:$0xff]
    %v823 = vld [vmem:[#allocation2 + $0x27a] sm:$0xff]
    %v824 = vld [vmem:[#allocation2 + $0x28a] sm:$0xff]
    %v825 = vld [vmem:[#allocation2 + $0x292] sm:$0xff]
    %v826 = vld [vmem:[#allocation2 + $0x2a2] sm:$0xff]
    %v827 = vld [vmem:[#allocation2 + $0x2aa] sm:$0xff]
    %v828 = vld [vmem:[#allocation2 + $0x2ba] sm:$0xff]
    %v829 = vld [vmem:[#allocation2 + $0x2c2] sm:$0xff]
    %v830 = vld [vmem:[#allocation2 + $0x2d2] sm:$0xff]
    %v831 = vld [vmem:[#allocation2 + $0x2da] sm:$0xff]
    %v832 = vld [vmem:[#allocation2 + $0x2ea] sm:$0xff]
    %v833 = vld [vmem:[#allocation2 + $0x2f2] sm:$0xff]
    %v834 = vld [vmem:[#allocation2 + $0x302] sm:$0xff]
    %v835 = vld [vmem:[#allocation2 + $0x30a] sm:$0xff]
    %v836 = vld [vmem:[#allocation2 + $0x31a] sm:$0xff]
    %v837 = vld [vmem:[#allocation2 + $0x322] sm:$0xff]
    %902 = vrot.lane.b32.xlu0 %v774, 8
    %v903 = vpop.permute.xlu0 %902
    %904 = vrot.lane.b32.xlu0 %v775, 8
    %v905 = vpop.permute.xlu0 %904
    %906 = vrot.lane.b32.xlu0 %v776, 8
    %v907 = vpop.permute.xlu0 %906
    %908 = vrot.lane.b32.xlu0 %v777, 8
    %v909 = vpop.permute.xlu0 %908
    %910 = vrot.lane.b32.xlu0 %v778, 8
    %v911 = vpop.permute.xlu0 %910
    %912 = vrot.lane.b32.xlu0 %v779, 8
    %v913 = vpop.permute.xlu0 %912
    %914 = vrot.lane.b32.xlu0 %v780, 8
    %v915 = vpop.permute.xlu0 %914
    %916 = vrot.lane.b32.xlu0 %v781, 8
    %v917 = vpop.permute.xlu0 %916
    %918 = vrot.lane.b32.xlu0 %v782, 8
    %v919 = vpop.permute.xlu0 %918
    %920 = vrot.lane.b32.xlu0 %v783, 8
    %v921 = vpop.permute.xlu0 %920
    %922 = vrot.lane.b32.xlu0 %v784, 8
    %v923 = vpop.permute.xlu0 %922
    %924 = vrot.lane.b32.xlu0 %v785, 8
    %v925 = vpop.permute.xlu0 %924
    %926 = vrot.lane.b32.xlu0 %v786, 8
    %v927 = vpop.permute.xlu0 %926
    %928 = vrot.lane.b32.xlu0 %v787, 8
    %v929 = vpop.permute.xlu0 %928
    %930 = vrot.lane.b32.xlu0 %v788, 8
    %v931 = vpop.permute.xlu0 %930
    %932 = vrot.lane.b32.xlu0 %v789, 8
    %v933 = vpop.permute.xlu0 %932
    %934 = vrot.lane.b32.xlu0 %v790, 8
    %v935 = vpop.permute.xlu0 %934
    %936 = vrot.lane.b32.xlu0 %v791, 8
    %v937 = vpop.permute.xlu0 %936
    %938 = vrot.lane.b32.xlu0 %v792, 8
    %v939 = vpop.permute.xlu0 %938
    %940 = vrot.lane.b32.xlu0 %v793, 8
    %v941 = vpop.permute.xlu0 %940
    %942 = vrot.lane.b32.xlu0 %v794, 8
    %v943 = vpop.permute.xlu0 %942
    %944 = vrot.lane.b32.xlu0 %v795, 8
    %v945 = vpop.permute.xlu0 %944
    %946 = vrot.lane.b32.xlu0 %v796, 8
    %v947 = vpop.permute.xlu0 %946
    %948 = vrot.lane.b32.xlu0 %v797, 8
    %v949 = vpop.permute.xlu0 %948
    %950 = vrot.lane.b32.xlu0 %v798, 8
    %v951 = vpop.permute.xlu0 %950
    %952 = vrot.lane.b32.xlu0 %v799, 8
    %v953 = vpop.permute.xlu0 %952
    %954 = vrot.lane.b32.xlu0 %v800, 8
    %v955 = vpop.permute.xlu0 %954
    %956 = vrot.lane.b32.xlu0 %v801, 8
    %v957 = vpop.permute.xlu0 %956
    %958 = vrot.lane.b32.xlu0 %v802, 8
    %v959 = vpop.permute.xlu0 %958
    %960 = vrot.lane.b32.xlu0 %v803, 8
    %v961 = vpop.permute.xlu0 %960
    %962 = vrot.lane.b32.xlu0 %v804, 8
    %v963 = vpop.permute.xlu0 %962
    %964 = vrot.lane.b32.xlu0 %v805, 8
    %v965 = vpop.permute.xlu0 %964
    %966 = vrot.lane.b32.xlu0 %v806, 8
    %v967 = vpop.permute.xlu0 %966
    %968 = vrot.lane.b32.xlu0 %v807, 8
    %v969 = vpop.permute.xlu0 %968
    %970 = vrot.lane.b32.xlu0 %v808, 8
    %v971 = vpop.permute.xlu0 %970
    %972 = vrot.lane.b32.xlu0 %v809, 8
    %v973 = vpop.permute.xlu0 %972
    %974 = vrot.lane.b32.xlu0 %v810, 8
    %v975 = vpop.permute.xlu0 %974
    %976 = vrot.lane.b32.xlu0 %v811, 8
    %v977 = vpop.permute.xlu0 %976
    %978 = vrot.lane.b32.xlu0 %v812, 8
    %v979 = vpop.permute.xlu0 %978
    %980 = vrot.lane.b32.xlu0 %v813, 8
    %v981 = vpop.permute.xlu0 %980
    %982 = vrot.lane.b32.xlu0 %v814, 8
    %v983 = vpop.permute.xlu0 %982
    %984 = vrot.lane.b32.xlu0 %v815, 8
    %v985 = vpop.permute.xlu0 %984
    %986 = vrot.lane.b32.xlu0 %v816, 8
    %v987 = vpop.permute.xlu0 %986
    %988 = vrot.lane.b32.xlu0 %v817, 8
    %v989 = vpop.permute.xlu0 %988
    %990 = vrot.lane.b32.xlu0 %v818, 8
    %v991 = vpop.permute.xlu0 %990
    %992 = vrot.lane.b32.xlu0 %v819, 8
    %v993 = vpop.permute.xlu0 %992
    %994 = vrot.lane.b32.xlu0 %v820, 8
    %v995 = vpop.permute.xlu0 %994
    %996 = vrot.lane.b32.xlu0 %v821, 8
    %v997 = vpop.permute.xlu0 %996
    %998 = vrot.lane.b32.xlu0 %v822, 8
    %v999 = vpop.permute.xlu0 %998
    %1000 = vrot.lane.b32.xlu0 %v823, 8
    %v1001 = vpop.permute.xlu0 %1000
    %1002 = vrot.lane.b32.xlu0 %v824, 8
    %v1003 = vpop.permute.xlu0 %1002
    %1004 = vrot.lane.b32.xlu0 %v825, 8
    %v1005 = vpop.permute.xlu0 %1004
    %1006 = vrot.lane.b32.xlu0 %v826, 8
    %v1007 = vpop.permute.xlu0 %1006
    %1008 = vrot.lane.b32.xlu0 %v827, 8
    %v1009 = vpop.permute.xlu0 %1008
    %1010 = vrot.lane.b32.xlu0 %v828, 8
    %v1011 = vpop.permute.xlu0 %1010
    %1012 = vrot.lane.b32.xlu0 %v829, 8
    %v1013 = vpop.permute.xlu0 %1012
    %1014 = vrot.lane.b32.xlu0 %v830, 8
    %v1015 = vpop.permute.xlu0 %1014
    %1016 = vrot.lane.b32.xlu0 %v831, 8
    %v1017 = vpop.permute.xlu0 %1016
    %1018 = vrot.lane.b32.xlu0 %v832, 8
    %v1019 = vpop.permute.xlu0 %1018
    %1020 = vrot.lane.b32.xlu0 %v833, 8
    %v1021 = vpop.permute.xlu0 %1020
    %1022 = vrot.lane.b32.xlu0 %v834, 8
    %v1023 = vpop.permute.xlu0 %1022
    %1024 = vrot.lane.b32.xlu0 %v835, 8
    %v1025 = vpop.permute.xlu0 %1024
    %1026 = vrot.lane.b32.xlu0 %v836, 8
    %v1027 = vpop.permute.xlu0 %1026
    %1028 = vrot.lane.b32.xlu0 %v837, 8
    %v1029 = vpop.permute.xlu0 %1028
    %vm1094 = vcmask 97344
    %1095 = vst.msk [vmem:[#allocation3] sm:$0xff] %vm1094, %v903
    %1096 = vst.msk [vmem:[#allocation3 + $0x8] sm:$0xff] %vm1094, %v905
    %1097 = vst.msk [vmem:[#allocation3 + $0x10] sm:$0xff] %vm1094, %v907
    %1098 = vst.msk [vmem:[#allocation3 + $0x18] sm:$0xff] %vm1094, %v909
    %1099 = vst.msk [vmem:[#allocation3 + $0x20] sm:$0xff] %vm1094, %v911
    %1100 = vst.msk [vmem:[#allocation3 + $0x28] sm:$0xff] %vm1094, %v913
    %1101 = vst.msk [vmem:[#allocation3 + $0x30] sm:$0xff] %vm1094, %v915
    %1102 = vst.msk [vmem:[#allocation3 + $0x38] sm:$0xff] %vm1094, %v917
    %1103 = vst.msk [vmem:[#allocation3 + $0x40] sm:$0xff] %vm1094, %v919
    %1104 = vst.msk [vmem:[#allocation3 + $0x48] sm:$0xff] %vm1094, %v921
    %1105 = vst.msk [vmem:[#allocation3 + $0x50] sm:$0xff] %vm1094, %v923
    %1106 = vst.msk [vmem:[#allocation3 + $0x58] sm:$0xff] %vm1094, %v925
    %1107 = vst.msk [vmem:[#allocation3 + $0x60] sm:$0xff] %vm1094, %v927
    %1108 = vst.msk [vmem:[#allocation3 + $0x68] sm:$0xff] %vm1094, %v929
    %1109 = vst.msk [vmem:[#allocation3 + $0x70] sm:$0xff] %vm1094, %v931
    %1110 = vst.msk [vmem:[#allocation3 + $0x78] sm:$0xff] %vm1094, %v933
    %1111 = vst.msk [vmem:[#allocation3 + $0x80] sm:$0xff] %vm1094, %v935
    %1112 = vst.msk [vmem:[#allocation3 + $0x88] sm:$0xff] %vm1094, %v937
    %1113 = vst.msk [vmem:[#allocation3 + $0x90] sm:$0xff] %vm1094, %v939
    %1114 = vst.msk [vmem:[#allocation3 + $0x98] sm:$0xff] %vm1094, %v941
    %1115 = vst.msk [vmem:[#allocation3 + $0xa0] sm:$0xff] %vm1094, %v943
    %1116 = vst.msk [vmem:[#allocation3 + $0xa8] sm:$0xff] %vm1094, %v945
    %1117 = vst.msk [vmem:[#allocation3 + $0xb0] sm:$0xff] %vm1094, %v947
    %1118 = vst.msk [vmem:[#allocation3 + $0xb8] sm:$0xff] %vm1094, %v949
    %1119 = vst.msk [vmem:[#allocation3 + $0xc0] sm:$0xff] %vm1094, %v951
    %1120 = vst.msk [vmem:[#allocation3 + $0xc8] sm:$0xff] %vm1094, %v953
    %1121 = vst.msk [vmem:[#allocation3 + $0xd0] sm:$0xff] %vm1094, %v955
    %1122 = vst.msk [vmem:[#allocation3 + $0xd8] sm:$0xff] %vm1094, %v957
    %1123 = vst.msk [vmem:[#allocation3 + $0xe0] sm:$0xff] %vm1094, %v959
    %1124 = vst.msk [vmem:[#allocation3 + $0xe8] sm:$0xff] %vm1094, %v961
    %1125 = vst.msk [vmem:[#allocation3 + $0xf0] sm:$0xff] %vm1094, %v963
    %1126 = vst.msk [vmem:[#allocation3 + $0xf8] sm:$0xff] %vm1094, %v965
    %1127 = vst.msk [vmem:[#allocation3 + $0x100] sm:$0xff] %vm1094, %v967
    %1128 = vst.msk [vmem:[#allocation3 + $0x108] sm:$0xff] %vm1094, %v969
    %1129 = vst.msk [vmem:[#allocation3 + $0x110] sm:$0xff] %vm1094, %v971
    %1130 = vst.msk [vmem:[#allocation3 + $0x118] sm:$0xff] %vm1094, %v973
    %1131 = vst.msk [vmem:[#allocation3 + $0x120] sm:$0xff] %vm1094, %v975
    %1132 = vst.msk [vmem:[#allocation3 + $0x128] sm:$0xff] %vm1094, %v977
    %1133 = vst.msk [vmem:[#allocation3 + $0x130] sm:$0xff] %vm1094, %v979
    %1134 = vst.msk [vmem:[#allocation3 + $0x138] sm:$0xff] %vm1094, %v981
    %1135 = vst.msk [vmem:[#allocation3 + $0x140] sm:$0xff] %vm1094, %v983
    %1136 = vst.msk [vmem:[#allocation3 + $0x148] sm:$0xff] %vm1094, %v985
    %1137 = vst.msk [vmem:[#allocation3 + $0x150] sm:$0xff] %vm1094, %v987
    %1138 = vst.msk [vmem:[#allocation3 + $0x158] sm:$0xff] %vm1094, %v989
    %1139 = vst.msk [vmem:[#allocation3 + $0x160] sm:$0xff] %vm1094, %v991
    %1140 = vst.msk [vmem:[#allocation3 + $0x168] sm:$0xff] %vm1094, %v993
    %1141 = vst.msk [vmem:[#allocation3 + $0x170] sm:$0xff] %vm1094, %v995
    %1142 = vst.msk [vmem:[#allocation3 + $0x178] sm:$0xff] %vm1094, %v997
    %1143 = vst.msk [vmem:[#allocation3 + $0x180] sm:$0xff] %vm1094, %v999
    %1144 = vst.msk [vmem:[#allocation3 + $0x188] sm:$0xff] %vm1094, %v1001
    %1145 = vst.msk [vmem:[#allocation3 + $0x190] sm:$0xff] %vm1094, %v1003
    %1146 = vst.msk [vmem:[#allocation3 + $0x198] sm:$0xff] %vm1094, %v1005
    %1147 = vst.msk [vmem:[#allocation3 + $0x1a0] sm:$0xff] %vm1094, %v1007
    %1148 = vst.msk [vmem:[#allocation3 + $0x1a8] sm:$0xff] %vm1094, %v1009
    %1149 = vst.msk [vmem:[#allocation3 + $0x1b0] sm:$0xff] %vm1094, %v1011
    %1150 = vst.msk [vmem:[#allocation3 + $0x1b8] sm:$0xff] %vm1094, %v1013
    %1151 = vst.msk [vmem:[#allocation3 + $0x1c0] sm:$0xff] %vm1094, %v1015
    %1152 = vst.msk [vmem:[#allocation3 + $0x1c8] sm:$0xff] %vm1094, %v1017
    %1153 = vst.msk [vmem:[#allocation3 + $0x1d0] sm:$0xff] %vm1094, %v1019
    %1154 = vst.msk [vmem:[#allocation3 + $0x1d8] sm:$0xff] %vm1094, %v1021
    %1155 = vst.msk [vmem:[#allocation3 + $0x1e0] sm:$0xff] %vm1094, %v1023
    %1156 = vst.msk [vmem:[#allocation3 + $0x1e8] sm:$0xff] %vm1094, %v1025
    %1157 = vst.msk [vmem:[#allocation3 + $0x1f0] sm:$0xff] %vm1094, %v1027
    %1158 = vst.msk [vmem:[#allocation3 + $0x1f8] sm:$0xff] %vm1094, %v1029
    %v1159 = vld [vmem:[%s196] sm:$0xff]
    %v1160 = vld [vmem:[%s196 + $0x8] sm:$0xff]
    %v1161 = vld [vmem:[%s196 + $0x18] sm:$0xff]
    %v1162 = vld [vmem:[%s196 + $0x20] sm:$0xff]
    %v1163 = vld [vmem:[%s196 + $0x30] sm:$0xff]
    %v1164 = vld [vmem:[%s196 + $0x38] sm:$0xff]
    %v1165 = vld [vmem:[%s196 + $0x48] sm:$0xff]
    %v1166 = vld [vmem:[%s196 + $0x50] sm:$0xff]
    %v1167 = vld [vmem:[%s196 + $0x60] sm:$0xff]
    %v1168 = vld [vmem:[%s196 + $0x68] sm:$0xff]
    %v1169 = vld [vmem:[%s196 + $0x78] sm:$0xff]
    %v1170 = vld [vmem:[%s196 + $0x80] sm:$0xff]
    %v1171 = vld [vmem:[%s196 + $0x90] sm:$0xff]
    %v1172 = vld [vmem:[%s196 + $0x98] sm:$0xff]
    %v1173 = vld [vmem:[%s196 + $0xa8] sm:$0xff]
    %v1174 = vld [vmem:[%s196 + $0xb0] sm:$0xff]
    %v1175 = vld [vmem:[%s196 + $0xc0] sm:$0xff]
    %v1176 = vld [vmem:[%s196 + $0xc8] sm:$0xff]
    %v1177 = vld [vmem:[%s196 + $0xd8] sm:$0xff]
    %v1178 = vld [vmem:[%s196 + $0xe0] sm:$0xff]
    %v1179 = vld [vmem:[%s196 + $0xf0] sm:$0xff]
    %v1180 = vld [vmem:[%s196 + $0xf8] sm:$0xff]
    %v1181 = vld [vmem:[%s196 + $0x108] sm:$0xff]
    %v1182 = vld [vmem:[%s196 + $0x110] sm:$0xff]
    %v1183 = vld [vmem:[%s196 + $0x120] sm:$0xff]
    %v1184 = vld [vmem:[%s196 + $0x128] sm:$0xff]
    %v1185 = vld [vmem:[%s196 + $0x138] sm:$0xff]
    %v1186 = vld [vmem:[%s196 + $0x140] sm:$0xff]
    %v1187 = vld [vmem:[%s196 + $0x150] sm:$0xff]
    %v1188 = vld [vmem:[%s196 + $0x158] sm:$0xff]
    %v1189 = vld [vmem:[%s196 + $0x168] sm:$0xff]
    %v1190 = vld [vmem:[%s196 + $0x170] sm:$0xff]
    %v1191 = vld [vmem:[%s196 + $0x1b0] sm:$0xff]
    %v1192 = vld [vmem:[%s196 + $0x1b8] sm:$0xff]
    %v1193 = vld [vmem:[%s196 + $0x1c8] sm:$0xff]
    %v1194 = vld [vmem:[%s196 + $0x1d0] sm:$0xff]
    %v1195 = vld [vmem:[%s196 + $0x1e0] sm:$0xff]
    %v1196 = vld [vmem:[%s196 + $0x1e8] sm:$0xff]
    %v1197 = vld [vmem:[%s196 + $0x1f8] sm:$0xff]
    %v1198 = vld [vmem:[%s196 + $0x200] sm:$0xff]
    %v1199 = vld [vmem:[%s196 + $0x210] sm:$0xff]
    %v1200 = vld [vmem:[%s196 + $0x218] sm:$0xff]
    %v1201 = vld [vmem:[%s196 + $0x228] sm:$0xff]
    %v1202 = vld [vmem:[%s196 + $0x230] sm:$0xff]
    %v1203 = vld [vmem:[%s196 + $0x240] sm:$0xff]
    %v1204 = vld [vmem:[%s196 + $0x248] sm:$0xff]
    %v1205 = vld [vmem:[%s196 + $0x258] sm:$0xff]
    %v1206 = vld [vmem:[%s196 + $0x260] sm:$0xff]
    %v1207 = vld [vmem:[%s196 + $0x270] sm:$0xff]
    %v1208 = vld [vmem:[%s196 + $0x278] sm:$0xff]
    %v1209 = vld [vmem:[%s196 + $0x288] sm:$0xff]
    %v1210 = vld [vmem:[%s196 + $0x290] sm:$0xff]
    %v1211 = vld [vmem:[%s196 + $0x2a0] sm:$0xff]
    %v1212 = vld [vmem:[%s196 + $0x2a8] sm:$0xff]
    %v1213 = vld [vmem:[%s196 + $0x2b8] sm:$0xff]
    %v1214 = vld [vmem:[%s196 + $0x2c0] sm:$0xff]
    %v1215 = vld [vmem:[%s196 + $0x2d0] sm:$0xff]
    %v1216 = vld [vmem:[%s196 + $0x2d8] sm:$0xff]
    %v1217 = vld [vmem:[%s196 + $0x2e8] sm:$0xff]
    %v1218 = vld [vmem:[%s196 + $0x2f0] sm:$0xff]
    %v1219 = vld [vmem:[%s196 + $0x300] sm:$0xff]
    %v1220 = vld [vmem:[%s196 + $0x308] sm:$0xff]
    %v1221 = vld [vmem:[%s196 + $0x318] sm:$0xff]
    %v1222 = vld [vmem:[%s196 + $0x320] sm:$0xff]
    %1287 = vrot.lane.b32.xlu0 %v1159, 12
    %v1288 = vpop.permute.xlu0 %1287
    %1289 = vrot.lane.b32.xlu0 %v1160, 12
    %v1290 = vpop.permute.xlu0 %1289
    %1291 = vrot.lane.b32.xlu0 %v1161, 12
    %v1292 = vpop.permute.xlu0 %1291
    %1293 = vrot.lane.b32.xlu0 %v1162, 12
    %v1294 = vpop.permute.xlu0 %1293
    %1295 = vrot.lane.b32.xlu0 %v1163, 12
    %v1296 = vpop.permute.xlu0 %1295
    %1297 = vrot.lane.b32.xlu0 %v1164, 12
    %v1298 = vpop.permute.xlu0 %1297
    %1299 = vrot.lane.b32.xlu0 %v1165, 12
    %v1300 = vpop.permute.xlu0 %1299
    %1301 = vrot.lane.b32.xlu0 %v1166, 12
    %v1302 = vpop.permute.xlu0 %1301
    %1303 = vrot.lane.b32.xlu0 %v1167, 12
    %v1304 = vpop.permute.xlu0 %1303
    %1305 = vrot.lane.b32.xlu0 %v1168, 12
    %v1306 = vpop.permute.xlu0 %1305
    %1307 = vrot.lane.b32.xlu0 %v1169, 12
    %v1308 = vpop.permute.xlu0 %1307
    %1309 = vrot.lane.b32.xlu0 %v1170, 12
    %v1310 = vpop.permute.xlu0 %1309
    %1311 = vrot.lane.b32.xlu0 %v1171, 12
    %v1312 = vpop.permute.xlu0 %1311
    %1313 = vrot.lane.b32.xlu0 %v1172, 12
    %v1314 = vpop.permute.xlu0 %1313
    %1315 = vrot.lane.b32.xlu0 %v1173, 12
    %v1316 = vpop.permute.xlu0 %1315
    %1317 = vrot.lane.b32.xlu0 %v1174, 12
    %v1318 = vpop.permute.xlu0 %1317
    %1319 = vrot.lane.b32.xlu0 %v1175, 12
    %v1320 = vpop.permute.xlu0 %1319
    %1321 = vrot.lane.b32.xlu0 %v1176, 12
    %v1322 = vpop.permute.xlu0 %1321
    %1323 = vrot.lane.b32.xlu0 %v1177, 12
    %v1324 = vpop.permute.xlu0 %1323
    %1325 = vrot.lane.b32.xlu0 %v1178, 12
    %v1326 = vpop.permute.xlu0 %1325
    %1327 = vrot.lane.b32.xlu0 %v1179, 12
    %v1328 = vpop.permute.xlu0 %1327
    %1329 = vrot.lane.b32.xlu0 %v1180, 12
    %v1330 = vpop.permute.xlu0 %1329
    %1331 = vrot.lane.b32.xlu0 %v1181, 12
    %v1332 = vpop.permute.xlu0 %1331
    %1333 = vrot.lane.b32.xlu0 %v1182, 12
    %v1334 = vpop.permute.xlu0 %1333
    %1335 = vrot.lane.b32.xlu0 %v1183, 12
    %v1336 = vpop.permute.xlu0 %1335
    %1337 = vrot.lane.b32.xlu0 %v1184, 12
    %v1338 = vpop.permute.xlu0 %1337
    %1339 = vrot.lane.b32.xlu0 %v1185, 12
    %v1340 = vpop.permute.xlu0 %1339
    %1341 = vrot.lane.b32.xlu0 %v1186, 12
    %v1342 = vpop.permute.xlu0 %1341
    %1343 = vrot.lane.b32.xlu0 %v1187, 12
    %v1344 = vpop.permute.xlu0 %1343
    %1345 = vrot.lane.b32.xlu0 %v1188, 12
    %v1346 = vpop.permute.xlu0 %1345
    %1347 = vrot.lane.b32.xlu0 %v1189, 12
    %v1348 = vpop.permute.xlu0 %1347
    %1349 = vrot.lane.b32.xlu0 %v1190, 12
    %v1350 = vpop.permute.xlu0 %1349
    %1351 = vrot.lane.b32.xlu0 %v1191, 12
    %v1352 = vpop.permute.xlu0 %1351
    %1353 = vrot.lane.b32.xlu0 %v1192, 12
    %v1354 = vpop.permute.xlu0 %1353
    %1355 = vrot.lane.b32.xlu0 %v1193, 12
    %v1356 = vpop.permute.xlu0 %1355
    %1357 = vrot.lane.b32.xlu0 %v1194, 12
    %v1358 = vpop.permute.xlu0 %1357
    %1359 = vrot.lane.b32.xlu0 %v1195, 12
    %v1360 = vpop.permute.xlu0 %1359
    %1361 = vrot.lane.b32.xlu0 %v1196, 12
    %v1362 = vpop.permute.xlu0 %1361
    %1363 = vrot.lane.b32.xlu0 %v1197, 12
    %v1364 = vpop.permute.xlu0 %1363
    %1365 = vrot.lane.b32.xlu0 %v1198, 12
    %v1366 = vpop.permute.xlu0 %1365
    %1367 = vrot.lane.b32.xlu0 %v1199, 12
    %v1368 = vpop.permute.xlu0 %1367
    %1369 = vrot.lane.b32.xlu0 %v1200, 12
    %v1370 = vpop.permute.xlu0 %1369
    %1371 = vrot.lane.b32.xlu0 %v1201, 12
    %v1372 = vpop.permute.xlu0 %1371
    %1373 = vrot.lane.b32.xlu0 %v1202, 12
    %v1374 = vpop.permute.xlu0 %1373
    %1375 = vrot.lane.b32.xlu0 %v1203, 12
    %v1376 = vpop.permute.xlu0 %1375
    %1377 = vrot.lane.b32.xlu0 %v1204, 12
    %v1378 = vpop.permute.xlu0 %1377
    %1379 = vrot.lane.b32.xlu0 %v1205, 12
    %v1380 = vpop.permute.xlu0 %1379
    %1381 = vrot.lane.b32.xlu0 %v1206, 12
    %v1382 = vpop.permute.xlu0 %1381
    %1383 = vrot.lane.b32.xlu0 %v1207, 12
    %v1384 = vpop.permute.xlu0 %1383
    %1385 = vrot.lane.b32.xlu0 %v1208, 12
    %v1386 = vpop.permute.xlu0 %1385
    %1387 = vrot.lane.b32.xlu0 %v1209, 12
    %v1388 = vpop.permute.xlu0 %1387
    %1389 = vrot.lane.b32.xlu0 %v1210, 12
    %v1390 = vpop.permute.xlu0 %1389
    %1391 = vrot.lane.b32.xlu0 %v1211, 12
    %v1392 = vpop.permute.xlu0 %1391
    %1393 = vrot.lane.b32.xlu0 %v1212, 12
    %v1394 = vpop.permute.xlu0 %1393
    %1395 = vrot.lane.b32.xlu0 %v1213, 12
    %v1396 = vpop.permute.xlu0 %1395
    %1397 = vrot.lane.b32.xlu0 %v1214, 12
    %v1398 = vpop.permute.xlu0 %1397
    %1399 = vrot.lane.b32.xlu0 %v1215, 12
    %v1400 = vpop.permute.xlu0 %1399
    %1401 = vrot.lane.b32.xlu0 %v1216, 12
    %v1402 = vpop.permute.xlu0 %1401
    %1403 = vrot.lane.b32.xlu0 %v1217, 12
    %v1404 = vpop.permute.xlu0 %1403
    %1405 = vrot.lane.b32.xlu0 %v1218, 12
    %v1406 = vpop.permute.xlu0 %1405
    %1407 = vrot.lane.b32.xlu0 %v1219, 12
    %v1408 = vpop.permute.xlu0 %1407
    %1409 = vrot.lane.b32.xlu0 %v1220, 12
    %v1410 = vpop.permute.xlu0 %1409
    %1411 = vrot.lane.b32.xlu0 %v1221, 12
    %v1412 = vpop.permute.xlu0 %1411
    %1413 = vrot.lane.b32.xlu0 %v1222, 12
    %v1414 = vpop.permute.xlu0 %1413
    %vm1479 = vcmask 130144
    %1480 = vst.msk [vmem:[#allocation3] sm:$0xff] %vm1479, %v1288
    %1481 = vst.msk [vmem:[#allocation3 + $0x8] sm:$0xff] %vm1479, %v1290
    %1482 = vst.msk [vmem:[#allocation3 + $0x10] sm:$0xff] %vm1479, %v1292
    %1483 = vst.msk [vmem:[#allocation3 + $0x18] sm:$0xff] %vm1479, %v1294
    %1484 = vst.msk [vmem:[#allocation3 + $0x20] sm:$0xff] %vm1479, %v1296
    %1485 = vst.msk [vmem:[#allocation3 + $0x28] sm:$0xff] %vm1479, %v1298
    %1486 = vst.msk [vmem:[#allocation3 + $0x30] sm:$0xff] %vm1479, %v1300
    %1487 = vst.msk [vmem:[#allocation3 + $0x38] sm:$0xff] %vm1479, %v1302
    %1488 = vst.msk [vmem:[#allocation3 + $0x40] sm:$0xff] %vm1479, %v1304
    %1489 = vst.msk [vmem:[#allocation3 + $0x48] sm:$0xff] %vm1479, %v1306
    %1490 = vst.msk [vmem:[#allocation3 + $0x50] sm:$0xff] %vm1479, %v1308
    %1491 = vst.msk [vmem:[#allocation3 + $0x58] sm:$0xff] %vm1479, %v1310
    %1492 = vst.msk [vmem:[#allocation3 + $0x60] sm:$0xff] %vm1479, %v1312
    %1493 = vst.msk [vmem:[#allocation3 + $0x68] sm:$0xff] %vm1479, %v1314
    %1494 = vst.msk [vmem:[#allocation3 + $0x70] sm:$0xff] %vm1479, %v1316
    %1495 = vst.msk [vmem:[#allocation3 + $0x78] sm:$0xff] %vm1479, %v1318
    %1496 = vst.msk [vmem:[#allocation3 + $0x80] sm:$0xff] %vm1479, %v1320
    %1497 = vst.msk [vmem:[#allocation3 + $0x88] sm:$0xff] %vm1479, %v1322
    %1498 = vst.msk [vmem:[#allocation3 + $0x90] sm:$0xff] %vm1479, %v1324
    %1499 = vst.msk [vmem:[#allocation3 + $0x98] sm:$0xff] %vm1479, %v1326
    %1500 = vst.msk [vmem:[#allocation3 + $0xa0] sm:$0xff] %vm1479, %v1328
    %1501 = vst.msk [vmem:[#allocation3 + $0xa8] sm:$0xff] %vm1479, %v1330
    %1502 = vst.msk [vmem:[#allocation3 + $0xb0] sm:$0xff] %vm1479, %v1332
    %1503 = vst.msk [vmem:[#allocation3 + $0xb8] sm:$0xff] %vm1479, %v1334
    %1504 = vst.msk [vmem:[#allocation3 + $0xc0] sm:$0xff] %vm1479, %v1336
    %1505 = vst.msk [vmem:[#allocation3 + $0xc8] sm:$0xff] %vm1479, %v1338
    %1506 = vst.msk [vmem:[#allocation3 + $0xd0] sm:$0xff] %vm1479, %v1340
    %1507 = vst.msk [vmem:[#allocation3 + $0xd8] sm:$0xff] %vm1479, %v1342
    %1508 = vst.msk [vmem:[#allocation3 + $0xe0] sm:$0xff] %vm1479, %v1344
    %1509 = vst.msk [vmem:[#allocation3 + $0xe8] sm:$0xff] %vm1479, %v1346
    %1510 = vst.msk [vmem:[#allocation3 + $0xf0] sm:$0xff] %vm1479, %v1348
    %1511 = vst.msk [vmem:[#allocation3 + $0xf8] sm:$0xff] %vm1479, %v1350
    %1512 = vst.msk [vmem:[#allocation3 + $0x100] sm:$0xff] %vm1479, %v1352
    %1513 = vst.msk [vmem:[#allocation3 + $0x108] sm:$0xff] %vm1479, %v1354
    %1514 = vst.msk [vmem:[#allocation3 + $0x110] sm:$0xff] %vm1479, %v1356
    %1515 = vst.msk [vmem:[#allocation3 + $0x118] sm:$0xff] %vm1479, %v1358
    %1516 = vst.msk [vmem:[#allocation3 + $0x120] sm:$0xff] %vm1479, %v1360
    %1517 = vst.msk [vmem:[#allocation3 + $0x128] sm:$0xff] %vm1479, %v1362
    %1518 = vst.msk [vmem:[#allocation3 + $0x130] sm:$0xff] %vm1479, %v1364
    %1519 = vst.msk [vmem:[#allocation3 + $0x138] sm:$0xff] %vm1479, %v1366
    %1520 = vst.msk [vmem:[#allocation3 + $0x140] sm:$0xff] %vm1479, %v1368
    %1521 = vst.msk [vmem:[#allocation3 + $0x148] sm:$0xff] %vm1479, %v1370
    %1522 = vst.msk [vmem:[#allocation3 + $0x150] sm:$0xff] %vm1479, %v1372
    %1523 = vst.msk [vmem:[#allocation3 + $0x158] sm:$0xff] %vm1479, %v1374
    %1524 = vst.msk [vmem:[#allocation3 + $0x160] sm:$0xff] %vm1479, %v1376
    %1525 = vst.msk [vmem:[#allocation3 + $0x168] sm:$0xff] %vm1479, %v1378
    %1526 = vst.msk [vmem:[#allocation3 + $0x170] sm:$0xff] %vm1479, %v1380
    %1527 = vst.msk [vmem:[#allocation3 + $0x178] sm:$0xff] %vm1479, %v1382
    %1528 = vst.msk [vmem:[#allocation3 + $0x180] sm:$0xff] %vm1479, %v1384
    %1529 = vst.msk [vmem:[#allocation3 + $0x188] sm:$0xff] %vm1479, %v1386
    %1530 = vst.msk [vmem:[#allocation3 + $0x190] sm:$0xff] %vm1479, %v1388
    %1531 = vst.msk [vmem:[#allocation3 + $0x198] sm:$0xff] %vm1479, %v1390
    %1532 = vst.msk [vmem:[#allocation3 + $0x1a0] sm:$0xff] %vm1479, %v1392
    %1533 = vst.msk [vmem:[#allocation3 + $0x1a8] sm:$0xff] %vm1479, %v1394
    %1534 = vst.msk [vmem:[#allocation3 + $0x1b0] sm:$0xff] %vm1479, %v1396
    %1535 = vst.msk [vmem:[#allocation3 + $0x1b8] sm:$0xff] %vm1479, %v1398
    %1536 = vst.msk [vmem:[#allocation3 + $0x1c0] sm:$0xff] %vm1479, %v1400
    %1537 = vst.msk [vmem:[#allocation3 + $0x1c8] sm:$0xff] %vm1479, %v1402
    %1538 = vst.msk [vmem:[#allocation3 + $0x1d0] sm:$0xff] %vm1479, %v1404
    %1539 = vst.msk [vmem:[#allocation3 + $0x1d8] sm:$0xff] %vm1479, %v1406
    %1540 = vst.msk [vmem:[#allocation3 + $0x1e0] sm:$0xff] %vm1479, %v1408
    %1541 = vst.msk [vmem:[#allocation3 + $0x1e8] sm:$0xff] %vm1479, %v1410
    %1542 = vst.msk [vmem:[#allocation3 + $0x1f0] sm:$0xff] %vm1479, %v1412
    %1543 = vst.msk [vmem:[#allocation3 + $0x1f8] sm:$0xff] %vm1479, %v1414
    %v1544 = vld [vmem:[%s196 + $0x1] sm:$0xff]
    %v1545 = vld [vmem:[%s196 + $0x9] sm:$0xff]
    %v1546 = vld [vmem:[%s196 + $0x19] sm:$0xff]
    %v1547 = vld [vmem:[%s196 + $0x21] sm:$0xff]
    %v1548 = vld [vmem:[%s196 + $0x31] sm:$0xff]
    %v1549 = vld [vmem:[%s196 + $0x39] sm:$0xff]
    %v1550 = vld [vmem:[%s196 + $0x49] sm:$0xff]
    %v1551 = vld [vmem:[%s196 + $0x51] sm:$0xff]
    %v1552 = vld [vmem:[%s196 + $0x61] sm:$0xff]
    %v1553 = vld [vmem:[%s196 + $0x69] sm:$0xff]
    %v1554 = vld [vmem:[%s196 + $0x79] sm:$0xff]
    %v1555 = vld [vmem:[%s196 + $0x81] sm:$0xff]
    %v1556 = vld [vmem:[%s196 + $0x91] sm:$0xff]
    %v1557 = vld [vmem:[%s196 + $0x99] sm:$0xff]
    %v1558 = vld [vmem:[%s196 + $0xa9] sm:$0xff]
    %v1559 = vld [vmem:[%s196 + $0xb1] sm:$0xff]
    %v1560 = vld [vmem:[%s196 + $0xc1] sm:$0xff]
    %v1561 = vld [vmem:[%s196 + $0xc9] sm:$0xff]
    %v1562 = vld [vmem:[%s196 + $0xd9] sm:$0xff]
    %v1563 = vld [vmem:[%s196 + $0xe1] sm:$0xff]
    %v1564 = vld [vmem:[%s196 + $0xf1] sm:$0xff]
    %v1565 = vld [vmem:[%s196 + $0xf9] sm:$0xff]
    %v1566 = vld [vmem:[%s196 + $0x109] sm:$0xff]
    %v1567 = vld [vmem:[%s196 + $0x111] sm:$0xff]
    %v1568 = vld [vmem:[%s196 + $0x121] sm:$0xff]
    %v1569 = vld [vmem:[%s196 + $0x129] sm:$0xff]
    %v1570 = vld [vmem:[%s196 + $0x139] sm:$0xff]
    %v1571 = vld [vmem:[%s196 + $0x141] sm:$0xff]
    %v1572 = vld [vmem:[%s196 + $0x151] sm:$0xff]
    %v1573 = vld [vmem:[%s196 + $0x159] sm:$0xff]
    %v1574 = vld [vmem:[%s196 + $0x169] sm:$0xff]
    %v1575 = vld [vmem:[%s196 + $0x171] sm:$0xff]
    %v1576 = vld [vmem:[%s196 + $0x1b1] sm:$0xff]
    %v1577 = vld [vmem:[%s196 + $0x1b9] sm:$0xff]
    %v1578 = vld [vmem:[%s196 + $0x1c9] sm:$0xff]
    %v1579 = vld [vmem:[%s196 + $0x1d1] sm:$0xff]
    %v1580 = vld [vmem:[%s196 + $0x1e1] sm:$0xff]
    %v1581 = vld [vmem:[%s196 + $0x1e9] sm:$0xff]
    %v1582 = vld [vmem:[%s196 + $0x1f9] sm:$0xff]
    %v1583 = vld [vmem:[%s196 + $0x201] sm:$0xff]
    %v1584 = vld [vmem:[%s196 + $0x211] sm:$0xff]
    %v1585 = vld [vmem:[%s196 + $0x219] sm:$0xff]
    %v1586 = vld [vmem:[%s196 + $0x229] sm:$0xff]
    %v1587 = vld [vmem:[%s196 + $0x231] sm:$0xff]
    %v1588 = vld [vmem:[%s196 + $0x241] sm:$0xff]
    %v1589 = vld [vmem:[%s196 + $0x249] sm:$0xff]
    %v1590 = vld [vmem:[%s196 + $0x259] sm:$0xff]
    %v1591 = vld [vmem:[%s196 + $0x261] sm:$0xff]
    %v1592 = vld [vmem:[%s196 + $0x271] sm:$0xff]
    %v1593 = vld [vmem:[%s196 + $0x279] sm:$0xff]
    %v1594 = vld [vmem:[%s196 + $0x289] sm:$0xff]
    %v1595 = vld [vmem:[%s196 + $0x291] sm:$0xff]
    %v1596 = vld [vmem:[%s196 + $0x2a1] sm:$0xff]
    %v1597 = vld [vmem:[%s196 + $0x2a9] sm:$0xff]
    %v1598 = vld [vmem:[%s196 + $0x2b9] sm:$0xff]
    %v1599 = vld [vmem:[%s196 + $0x2c1] sm:$0xff]
    %v1600 = vld [vmem:[%s196 + $0x2d1] sm:$0xff]
    %v1601 = vld [vmem:[%s196 + $0x2d9] sm:$0xff]
    %v1602 = vld [vmem:[%s196 + $0x2e9] sm:$0xff]
    %v1603 = vld [vmem:[%s196 + $0x2f1] sm:$0xff]
    %v1604 = vld [vmem:[%s196 + $0x301] sm:$0xff]
    %v1605 = vld [vmem:[%s196 + $0x309] sm:$0xff]
    %v1606 = vld [vmem:[%s196 + $0x319] sm:$0xff]
    %v1607 = vld [vmem:[%s196 + $0x321] sm:$0xff]
    %1672 = vrot.lane.b32.xlu0 %v1544, 16
    %v1673 = vpop.permute.xlu0 %1672
    %1674 = vrot.lane.b32.xlu0 %v1545, 16
    %v1675 = vpop.permute.xlu0 %1674
    %1676 = vrot.lane.b32.xlu0 %v1546, 16
    %v1677 = vpop.permute.xlu0 %1676
    %1678 = vrot.lane.b32.xlu0 %v1547, 16
    %v1679 = vpop.permute.xlu0 %1678
    %1680 = vrot.lane.b32.xlu0 %v1548, 16
    %v1681 = vpop.permute.xlu0 %1680
    %1682 = vrot.lane.b32.xlu0 %v1549, 16
    %v1683 = vpop.permute.xlu0 %1682
    %1684 = vrot.lane.b32.xlu0 %v1550, 16
    %v1685 = vpop.permute.xlu0 %1684
    %1686 = vrot.lane.b32.xlu0 %v1551, 16
    %v1687 = vpop.permute.xlu0 %1686
    %1688 = vrot.lane.b32.xlu0 %v1552, 16
    %v1689 = vpop.permute.xlu0 %1688
    %1690 = vrot.lane.b32.xlu0 %v1553, 16
    %v1691 = vpop.permute.xlu0 %1690
    %1692 = vrot.lane.b32.xlu0 %v1554, 16
    %v1693 = vpop.permute.xlu0 %1692
    %1694 = vrot.lane.b32.xlu0 %v1555, 16
    %v1695 = vpop.permute.xlu0 %1694
    %1696 = vrot.lane.b32.xlu0 %v1556, 16
    %v1697 = vpop.permute.xlu0 %1696
    %1698 = vrot.lane.b32.xlu0 %v1557, 16
    %v1699 = vpop.permute.xlu0 %1698
    %1700 = vrot.lane.b32.xlu0 %v1558, 16
    %v1701 = vpop.permute.xlu0 %1700
    %1702 = vrot.lane.b32.xlu0 %v1559, 16
    %v1703 = vpop.permute.xlu0 %1702
    %1704 = vrot.lane.b32.xlu0 %v1560, 16
    %v1705 = vpop.permute.xlu0 %1704
    %1706 = vrot.lane.b32.xlu0 %v1561, 16
    %v1707 = vpop.permute.xlu0 %1706
    %1708 = vrot.lane.b32.xlu0 %v1562, 16
    %v1709 = vpop.permute.xlu0 %1708
    %1710 = vrot.lane.b32.xlu0 %v1563, 16
    %v1711 = vpop.permute.xlu0 %1710
    %1712 = vrot.lane.b32.xlu0 %v1564, 16
    %v1713 = vpop.permute.xlu0 %1712
    %1714 = vrot.lane.b32.xlu0 %v1565, 16
    %v1715 = vpop.permute.xlu0 %1714
    %1716 = vrot.lane.b32.xlu0 %v1566, 16
    %v1717 = vpop.permute.xlu0 %1716
    %1718 = vrot.lane.b32.xlu0 %v1567, 16
    %v1719 = vpop.permute.xlu0 %1718
    %1720 = vrot.lane.b32.xlu0 %v1568, 16
    %v1721 = vpop.permute.xlu0 %1720
    %1722 = vrot.lane.b32.xlu0 %v1569, 16
    %v1723 = vpop.permute.xlu0 %1722
    %1724 = vrot.lane.b32.xlu0 %v1570, 16
    %v1725 = vpop.permute.xlu0 %1724
    %1726 = vrot.lane.b32.xlu0 %v1571, 16
    %v1727 = vpop.permute.xlu0 %1726
    %1728 = vrot.lane.b32.xlu0 %v1572, 16
    %v1729 = vpop.permute.xlu0 %1728
    %1730 = vrot.lane.b32.xlu0 %v1573, 16
    %v1731 = vpop.permute.xlu0 %1730
    %1732 = vrot.lane.b32.xlu0 %v1574, 16
    %v1733 = vpop.permute.xlu0 %1732
    %1734 = vrot.lane.b32.xlu0 %v1575, 16
    %v1735 = vpop.permute.xlu0 %1734
    %1736 = vrot.lane.b32.xlu0 %v1576, 16
    %v1737 = vpop.permute.xlu0 %1736
    %1738 = vrot.lane.b32.xlu0 %v1577, 16
    %v1739 = vpop.permute.xlu0 %1738
    %1740 = vrot.lane.b32.xlu0 %v1578, 16
    %v1741 = vpop.permute.xlu0 %1740
    %1742 = vrot.lane.b32.xlu0 %v1579, 16
    %v1743 = vpop.permute.xlu0 %1742
    %1744 = vrot.lane.b32.xlu0 %v1580, 16
    %v1745 = vpop.permute.xlu0 %1744
    %1746 = vrot.lane.b32.xlu0 %v1581, 16
    %v1747 = vpop.permute.xlu0 %1746
    %1748 = vrot.lane.b32.xlu0 %v1582, 16
    %v1749 = vpop.permute.xlu0 %1748
    %1750 = vrot.lane.b32.xlu0 %v1583, 16
    %v1751 = vpop.permute.xlu0 %1750
    %1752 = vrot.lane.b32.xlu0 %v1584, 16
    %v1753 = vpop.permute.xlu0 %1752
    %1754 = vrot.lane.b32.xlu0 %v1585, 16
    %v1755 = vpop.permute.xlu0 %1754
    %1756 = vrot.lane.b32.xlu0 %v1586, 16
    %v1757 = vpop.permute.xlu0 %1756
    %1758 = vrot.lane.b32.xlu0 %v1587, 16
    %v1759 = vpop.permute.xlu0 %1758
    %1760 = vrot.lane.b32.xlu0 %v1588, 16
    %v1761 = vpop.permute.xlu0 %1760
    %1762 = vrot.lane.b32.xlu0 %v1589, 16
    %v1763 = vpop.permute.xlu0 %1762
    %1764 = vrot.lane.b32.xlu0 %v1590, 16
    %v1765 = vpop.permute.xlu0 %1764
    %1766 = vrot.lane.b32.xlu0 %v1591, 16
    %v1767 = vpop.permute.xlu0 %1766
    %1768 = vrot.lane.b32.xlu0 %v1592, 16
    %v1769 = vpop.permute.xlu0 %1768
    %1770 = vrot.lane.b32.xlu0 %v1593, 16
    %v1771 = vpop.permute.xlu0 %1770
    %1772 = vrot.lane.b32.xlu0 %v1594, 16
    %v1773 = vpop.permute.xlu0 %1772
    %1774 = vrot.lane.b32.xlu0 %v1595, 16
    %v1775 = vpop.permute.xlu0 %1774
    %1776 = vrot.lane.b32.xlu0 %v1596, 16
    %v1777 = vpop.permute.xlu0 %1776
    %1778 = vrot.lane.b32.xlu0 %v1597, 16
    %v1779 = vpop.permute.xlu0 %1778
    %1780 = vrot.lane.b32.xlu0 %v1598, 16
    %v1781 = vpop.permute.xlu0 %1780
    %1782 = vrot.lane.b32.xlu0 %v1599, 16
    %v1783 = vpop.permute.xlu0 %1782
    %1784 = vrot.lane.b32.xlu0 %v1600, 16
    %v1785 = vpop.permute.xlu0 %1784
    %1786 = vrot.lane.b32.xlu0 %v1601, 16
    %v1787 = vpop.permute.xlu0 %1786
    %1788 = vrot.lane.b32.xlu0 %v1602, 16
    %v1789 = vpop.permute.xlu0 %1788
    %1790 = vrot.lane.b32.xlu0 %v1603, 16
    %v1791 = vpop.permute.xlu0 %1790
    %1792 = vrot.lane.b32.xlu0 %v1604, 16
    %v1793 = vpop.permute.xlu0 %1792
    %1794 = vrot.lane.b32.xlu0 %v1605, 16
    %v1795 = vpop.permute.xlu0 %1794
    %1796 = vrot.lane.b32.xlu0 %v1606, 16
    %v1797 = vpop.permute.xlu0 %1796
    %1798 = vrot.lane.b32.xlu0 %v1607, 16
    %v1799 = vpop.permute.xlu0 %1798
    %vm1864 = vcmask 162944
    %1865 = vst.msk [vmem:[#allocation3] sm:$0xff] %vm1864, %v1673
    %1866 = vst.msk [vmem:[#allocation3 + $0x8] sm:$0xff] %vm1864, %v1675
    %1867 = vst.msk [vmem:[#allocation3 + $0x10] sm:$0xff] %vm1864, %v1677
    %1868 = vst.msk [vmem:[#allocation3 + $0x18] sm:$0xff] %vm1864, %v1679
    %1869 = vst.msk [vmem:[#allocation3 + $0x20] sm:$0xff] %vm1864, %v1681
    %1870 = vst.msk [vmem:[#allocation3 + $0x28] sm:$0xff] %vm1864, %v1683
    %1871 = vst.msk [vmem:[#allocation3 + $0x30] sm:$0xff] %vm1864, %v1685
    %1872 = vst.msk [vmem:[#allocation3 + $0x38] sm:$0xff] %vm1864, %v1687
    %1873 = vst.msk [vmem:[#allocation3 + $0x40] sm:$0xff] %vm1864, %v1689
    %1874 = vst.msk [vmem:[#allocation3 + $0x48] sm:$0xff] %vm1864, %v1691
    %1875 = vst.msk [vmem:[#allocation3 + $0x50] sm:$0xff] %vm1864, %v1693
    %1876 = vst.msk [vmem:[#allocation3 + $0x58] sm:$0xff] %vm1864, %v1695
    %1877 = vst.msk [vmem:[#allocation3 + $0x60] sm:$0xff] %vm1864, %v1697
    %1878 = vst.msk [vmem:[#allocation3 + $0x68] sm:$0xff] %vm1864, %v1699
    %1879 = vst.msk [vmem:[#allocation3 + $0x70] sm:$0xff] %vm1864, %v1701
    %1880 = vst.msk [vmem:[#allocation3 + $0x78] sm:$0xff] %vm1864, %v1703
    %1881 = vst.msk [vmem:[#allocation3 + $0x80] sm:$0xff] %vm1864, %v1705
    %1882 = vst.msk [vmem:[#allocation3 + $0x88] sm:$0xff] %vm1864, %v1707
    %1883 = vst.msk [vmem:[#allocation3 + $0x90] sm:$0xff] %vm1864, %v1709
    %1884 = vst.msk [vmem:[#allocation3 + $0x98] sm:$0xff] %vm1864, %v1711
    %1885 = vst.msk [vmem:[#allocation3 + $0xa0] sm:$0xff] %vm1864, %v1713
    %1886 = vst.msk [vmem:[#allocation3 + $0xa8] sm:$0xff] %vm1864, %v1715
    %1887 = vst.msk [vmem:[#allocation3 + $0xb0] sm:$0xff] %vm1864, %v1717
    %1888 = vst.msk [vmem:[#allocation3 + $0xb8] sm:$0xff] %vm1864, %v1719
    %1889 = vst.msk [vmem:[#allocation3 + $0xc0] sm:$0xff] %vm1864, %v1721
    %1890 = vst.msk [vmem:[#allocation3 + $0xc8] sm:$0xff] %vm1864, %v1723
    %1891 = vst.msk [vmem:[#allocation3 + $0xd0] sm:$0xff] %vm1864, %v1725
    %1892 = vst.msk [vmem:[#allocation3 + $0xd8] sm:$0xff] %vm1864, %v1727
    %1893 = vst.msk [vmem:[#allocation3 + $0xe0] sm:$0xff] %vm1864, %v1729
    %1894 = vst.msk [vmem:[#allocation3 + $0xe8] sm:$0xff] %vm1864, %v1731
    %1895 = vst.msk [vmem:[#allocation3 + $0xf0] sm:$0xff] %vm1864, %v1733
    %1896 = vst.msk [vmem:[#allocation3 + $0xf8] sm:$0xff] %vm1864, %v1735
    %1897 = vst.msk [vmem:[#allocation3 + $0x100] sm:$0xff] %vm1864, %v1737
    %1898 = vst.msk [vmem:[#allocation3 + $0x108] sm:$0xff] %vm1864, %v1739
    %1899 = vst.msk [vmem:[#allocation3 + $0x110] sm:$0xff] %vm1864, %v1741
    %1900 = vst.msk [vmem:[#allocation3 + $0x118] sm:$0xff] %vm1864, %v1743
    %1901 = vst.msk [vmem:[#allocation3 + $0x120] sm:$0xff] %vm1864, %v1745
    %1902 = vst.msk [vmem:[#allocation3 + $0x128] sm:$0xff] %vm1864, %v1747
    %1903 = vst.msk [vmem:[#allocation3 + $0x130] sm:$0xff] %vm1864, %v1749
    %1904 = vst.msk [vmem:[#allocation3 + $0x138] sm:$0xff] %vm1864, %v1751
    %1905 = vst.msk [vmem:[#allocation3 + $0x140] sm:$0xff] %vm1864, %v1753
    %1906 = vst.msk [vmem:[#allocation3 + $0x148] sm:$0xff] %vm1864, %v1755
    %1907 = vst.msk [vmem:[#allocation3 + $0x150] sm:$0xff] %vm1864, %v1757
    %1908 = vst.msk [vmem:[#allocation3 + $0x158] sm:$0xff] %vm1864, %v1759
    %1909 = vst.msk [vmem:[#allocation3 + $0x160] sm:$0xff] %vm1864, %v1761
    %1910 = vst.msk [vmem:[#allocation3 + $0x168] sm:$0xff] %vm1864, %v1763
    %1911 = vst.msk [vmem:[#allocation3 + $0x170] sm:$0xff] %vm1864, %v1765
    %1912 = vst.msk [vmem:[#allocation3 + $0x178] sm:$0xff] %vm1864, %v1767
    %1913 = vst.msk [vmem:[#allocation3 + $0x180] sm:$0xff] %vm1864, %v1769
    %1914 = vst.msk [vmem:[#allocation3 + $0x188] sm:$0xff] %vm1864, %v1771
    %1915 = vst.msk [vmem:[#allocation3 + $0x190] sm:$0xff] %vm1864, %v1773
    %1916 = vst.msk [vmem:[#allocation3 + $0x198] sm:$0xff] %vm1864, %v1775
    %1917 = vst.msk [vmem:[#allocation3 + $0x1a0] sm:$0xff] %vm1864, %v1777
    %1918 = vst.msk [vmem:[#allocation3 + $0x1a8] sm:$0xff] %vm1864, %v1779
    %1919 = vst.msk [vmem:[#allocation3 + $0x1b0] sm:$0xff] %vm1864, %v1781
    %1920 = vst.msk [vmem:[#allocation3 + $0x1b8] sm:$0xff] %vm1864, %v1783
    %1921 = vst.msk [vmem:[#allocation3 + $0x1c0] sm:$0xff] %vm1864, %v1785
    %1922 = vst.msk [vmem:[#allocation3 + $0x1c8] sm:$0xff] %vm1864, %v1787
    %1923 = vst.msk [vmem:[#allocation3 + $0x1d0] sm:$0xff] %vm1864, %v1789
    %1924 = vst.msk [vmem:[#allocation3 + $0x1d8] sm:$0xff] %vm1864, %v1791
    %1925 = vst.msk [vmem:[#allocation3 + $0x1e0] sm:$0xff] %vm1864, %v1793
    %1926 = vst.msk [vmem:[#allocation3 + $0x1e8] sm:$0xff] %vm1864, %v1795
    %1927 = vst.msk [vmem:[#allocation3 + $0x1f0] sm:$0xff] %vm1864, %v1797
    %1928 = vst.msk [vmem:[#allocation3 + $0x1f8] sm:$0xff] %vm1864, %v1799
    %v1929 = vld [vmem:[%s196 + $0x2] sm:$0xff]
    %v1930 = vld [vmem:[%s196 + $0xa] sm:$0xff]
    %v1931 = vld [vmem:[%s196 + $0x1a] sm:$0xff]
    %v1932 = vld [vmem:[%s196 + $0x22] sm:$0xff]
    %v1933 = vld [vmem:[%s196 + $0x32] sm:$0xff]
    %v1934 = vld [vmem:[%s196 + $0x3a] sm:$0xff]
    %v1935 = vld [vmem:[%s196 + $0x4a] sm:$0xff]
    %v1936 = vld [vmem:[%s196 + $0x52] sm:$0xff]
    %v1937 = vld [vmem:[%s196 + $0x62] sm:$0xff]
    %v1938 = vld [vmem:[%s196 + $0x6a] sm:$0xff]
    %v1939 = vld [vmem:[%s196 + $0x7a] sm:$0xff]
    %v1940 = vld [vmem:[%s196 + $0x82] sm:$0xff]
    %v1941 = vld [vmem:[%s196 + $0x92] sm:$0xff]
    %v1942 = vld [vmem:[%s196 + $0x9a] sm:$0xff]
    %v1943 = vld [vmem:[%s196 + $0xaa] sm:$0xff]
    %v1944 = vld [vmem:[%s196 + $0xb2] sm:$0xff]
    %v1945 = vld [vmem:[%s196 + $0xc2] sm:$0xff]
    %v1946 = vld [vmem:[%s196 + $0xca] sm:$0xff]
    %v1947 = vld [vmem:[%s196 + $0xda] sm:$0xff]
    %v1948 = vld [vmem:[%s196 + $0xe2] sm:$0xff]
    %v1949 = vld [vmem:[%s196 + $0xf2] sm:$0xff]
    %v1950 = vld [vmem:[%s196 + $0xfa] sm:$0xff]
    %v1951 = vld [vmem:[%s196 + $0x10a] sm:$0xff]
    %v1952 = vld [vmem:[%s196 + $0x112] sm:$0xff]
    %v1953 = vld [vmem:[%s196 + $0x122] sm:$0xff]
    %v1954 = vld [vmem:[%s196 + $0x12a] sm:$0xff]
    %v1955 = vld [vmem:[%s196 + $0x13a] sm:$0xff]
    %v1956 = vld [vmem:[%s196 + $0x142] sm:$0xff]
    %v1957 = vld [vmem:[%s196 + $0x152] sm:$0xff]
    %v1958 = vld [vmem:[%s196 + $0x15a] sm:$0xff]
    %v1959 = vld [vmem:[%s196 + $0x16a] sm:$0xff]
    %v1960 = vld [vmem:[%s196 + $0x172] sm:$0xff]
    %v1961 = vld [vmem:[%s196 + $0x1b2] sm:$0xff]
    %v1962 = vld [vmem:[%s196 + $0x1ba] sm:$0xff]
    %v1963 = vld [vmem:[%s196 + $0x1ca] sm:$0xff]
    %v1964 = vld [vmem:[%s196 + $0x1d2] sm:$0xff]
    %v1965 = vld [vmem:[%s196 + $0x1e2] sm:$0xff]
    %v1966 = vld [vmem:[%s196 + $0x1ea] sm:$0xff]
    %v1967 = vld [vmem:[%s196 + $0x1fa] sm:$0xff]
    %v1968 = vld [vmem:[%s196 + $0x202] sm:$0xff]
    %v1969 = vld [vmem:[%s196 + $0x212] sm:$0xff]
    %v1970 = vld [vmem:[%s196 + $0x21a] sm:$0xff]
    %v1971 = vld [vmem:[%s196 + $0x22a] sm:$0xff]
    %v1972 = vld [vmem:[%s196 + $0x232] sm:$0xff]
    %v1973 = vld [vmem:[%s196 + $0x242] sm:$0xff]
    %v1974 = vld [vmem:[%s196 + $0x24a] sm:$0xff]
    %v1975 = vld [vmem:[%s196 + $0x25a] sm:$0xff]
    %v1976 = vld [vmem:[%s196 + $0x262] sm:$0xff]
    %v1977 = vld [vmem:[%s196 + $0x272] sm:$0xff]
    %v1978 = vld [vmem:[%s196 + $0x27a] sm:$0xff]
    %v1979 = vld [vmem:[%s196 + $0x28a] sm:$0xff]
    %v1980 = vld [vmem:[%s196 + $0x292] sm:$0xff]
    %v1981 = vld [vmem:[%s196 + $0x2a2] sm:$0xff]
    %v1982 = vld [vmem:[%s196 + $0x2aa] sm:$0xff]
    %v1983 = vld [vmem:[%s196 + $0x2ba] sm:$0xff]
    %v1984 = vld [vmem:[%s196 + $0x2c2] sm:$0xff]
    %v1985 = vld [vmem:[%s196 + $0x2d2] sm:$0xff]
    %v1986 = vld [vmem:[%s196 + $0x2da] sm:$0xff]
    %v1987 = vld [vmem:[%s196 + $0x2ea] sm:$0xff]
    %v1988 = vld [vmem:[%s196 + $0x2f2] sm:$0xff]
    %v1989 = vld [vmem:[%s196 + $0x302] sm:$0xff]
    %v1990 = vld [vmem:[%s196 + $0x30a] sm:$0xff]
    %v1991 = vld [vmem:[%s196 + $0x31a] sm:$0xff]
    %v1992 = vld [vmem:[%s196 + $0x322] sm:$0xff]
    %2057 = vrot.lane.b32.xlu0 %v1929, 20
    %v2058 = vpop.permute.xlu0 %2057
    %2059 = vrot.lane.b32.xlu0 %v1930, 20
    %v2060 = vpop.permute.xlu0 %2059
    %2061 = vrot.lane.b32.xlu0 %v1931, 20
    %v2062 = vpop.permute.xlu0 %2061
    %2063 = vrot.lane.b32.xlu0 %v1932, 20
    %v2064 = vpop.permute.xlu0 %2063
    %2065 = vrot.lane.b32.xlu0 %v1933, 20
    %v2066 = vpop.permute.xlu0 %2065
    %2067 = vrot.lane.b32.xlu0 %v1934, 20
    %v2068 = vpop.permute.xlu0 %2067
    %2069 = vrot.lane.b32.xlu0 %v1935, 20
    %v2070 = vpop.permute.xlu0 %2069
    %2071 = vrot.lane.b32.xlu0 %v1936, 20
    %v2072 = vpop.permute.xlu0 %2071
    %2073 = vrot.lane.b32.xlu0 %v1937, 20
    %v2074 = vpop.permute.xlu0 %2073
    %2075 = vrot.lane.b32.xlu0 %v1938, 20
    %v2076 = vpop.permute.xlu0 %2075
    %2077 = vrot.lane.b32.xlu0 %v1939, 20
    %v2078 = vpop.permute.xlu0 %2077
    %2079 = vrot.lane.b32.xlu0 %v1940, 20
    %v2080 = vpop.permute.xlu0 %2079
    %2081 = vrot.lane.b32.xlu0 %v1941, 20
    %v2082 = vpop.permute.xlu0 %2081
    %2083 = vrot.lane.b32.xlu0 %v1942, 20
    %v2084 = vpop.permute.xlu0 %2083
    %2085 = vrot.lane.b32.xlu0 %v1943, 20
    %v2086 = vpop.permute.xlu0 %2085
    %2087 = vrot.lane.b32.xlu0 %v1944, 20
    %v2088 = vpop.permute.xlu0 %2087
    %2089 = vrot.lane.b32.xlu0 %v1945, 20
    %v2090 = vpop.permute.xlu0 %2089
    %2091 = vrot.lane.b32.xlu0 %v1946, 20
    %v2092 = vpop.permute.xlu0 %2091
    %2093 = vrot.lane.b32.xlu0 %v1947, 20
    %v2094 = vpop.permute.xlu0 %2093
    %2095 = vrot.lane.b32.xlu0 %v1948, 20
    %v2096 = vpop.permute.xlu0 %2095
    %2097 = vrot.lane.b32.xlu0 %v1949, 20
    %v2098 = vpop.permute.xlu0 %2097
    %2099 = vrot.lane.b32.xlu0 %v1950, 20
    %v2100 = vpop.permute.xlu0 %2099
    %2101 = vrot.lane.b32.xlu0 %v1951, 20
    %v2102 = vpop.permute.xlu0 %2101
    %2103 = vrot.lane.b32.xlu0 %v1952, 20
    %v2104 = vpop.permute.xlu0 %2103
    %2105 = vrot.lane.b32.xlu0 %v1953, 20
    %v2106 = vpop.permute.xlu0 %2105
    %2107 = vrot.lane.b32.xlu0 %v1954, 20
    %v2108 = vpop.permute.xlu0 %2107
    %2109 = vrot.lane.b32.xlu0 %v1955, 20
    %v2110 = vpop.permute.xlu0 %2109
    %2111 = vrot.lane.b32.xlu0 %v1956, 20
    %v2112 = vpop.permute.xlu0 %2111
    %2113 = vrot.lane.b32.xlu0 %v1957, 20
    %v2114 = vpop.permute.xlu0 %2113
    %2115 = vrot.lane.b32.xlu0 %v1958, 20
    %v2116 = vpop.permute.xlu0 %2115
    %2117 = vrot.lane.b32.xlu0 %v1959, 20
    %v2118 = vpop.permute.xlu0 %2117
    %2119 = vrot.lane.b32.xlu0 %v1960, 20
    %v2120 = vpop.permute.xlu0 %2119
    %2121 = vrot.lane.b32.xlu0 %v1961, 20
    %v2122 = vpop.permute.xlu0 %2121
    %2123 = vrot.lane.b32.xlu0 %v1962, 20
    %v2124 = vpop.permute.xlu0 %2123
    %2125 = vrot.lane.b32.xlu0 %v1963, 20
    %v2126 = vpop.permute.xlu0 %2125
    %2127 = vrot.lane.b32.xlu0 %v1964, 20
    %v2128 = vpop.permute.xlu0 %2127
    %2129 = vrot.lane.b32.xlu0 %v1965, 20
    %v2130 = vpop.permute.xlu0 %2129
    %2131 = vrot.lane.b32.xlu0 %v1966, 20
    %v2132 = vpop.permute.xlu0 %2131
    %2133 = vrot.lane.b32.xlu0 %v1967, 20
    %v2134 = vpop.permute.xlu0 %2133
    %2135 = vrot.lane.b32.xlu0 %v1968, 20
    %v2136 = vpop.permute.xlu0 %2135
    %2137 = vrot.lane.b32.xlu0 %v1969, 20
    %v2138 = vpop.permute.xlu0 %2137
    %2139 = vrot.lane.b32.xlu0 %v1970, 20
    %v2140 = vpop.permute.xlu0 %2139
    %2141 = vrot.lane.b32.xlu0 %v1971, 20
    %v2142 = vpop.permute.xlu0 %2141
    %2143 = vrot.lane.b32.xlu0 %v1972, 20
    %v2144 = vpop.permute.xlu0 %2143
    %2145 = vrot.lane.b32.xlu0 %v1973, 20
    %v2146 = vpop.permute.xlu0 %2145
    %2147 = vrot.lane.b32.xlu0 %v1974, 20
    %v2148 = vpop.permute.xlu0 %2147
    %2149 = vrot.lane.b32.xlu0 %v1975, 20
    %v2150 = vpop.permute.xlu0 %2149
    %2151 = vrot.lane.b32.xlu0 %v1976, 20
    %v2152 = vpop.permute.xlu0 %2151
    %2153 = vrot.lane.b32.xlu0 %v1977, 20
    %v2154 = vpop.permute.xlu0 %2153
    %2155 = vrot.lane.b32.xlu0 %v1978, 20
    %v2156 = vpop.permute.xlu0 %2155
    %2157 = vrot.lane.b32.xlu0 %v1979, 20
    %v2158 = vpop.permute.xlu0 %2157
    %2159 = vrot.lane.b32.xlu0 %v1980, 20
    %v2160 = vpop.permute.xlu0 %2159
    %2161 = vrot.lane.b32.xlu0 %v1981, 20
    %v2162 = vpop.permute.xlu0 %2161
    %2163 = vrot.lane.b32.xlu0 %v1982, 20
    %v2164 = vpop.permute.xlu0 %2163
    %2165 = vrot.lane.b32.xlu0 %v1983, 20
    %v2166 = vpop.permute.xlu0 %2165
    %2167 = vrot.lane.b32.xlu0 %v1984, 20
    %v2168 = vpop.permute.xlu0 %2167
    %2169 = vrot.lane.b32.xlu0 %v1985, 20
    %v2170 = vpop.permute.xlu0 %2169
    %2171 = vrot.lane.b32.xlu0 %v1986, 20
    %v2172 = vpop.permute.xlu0 %2171
    %2173 = vrot.lane.b32.xlu0 %v1987, 20
    %v2174 = vpop.permute.xlu0 %2173
    %2175 = vrot.lane.b32.xlu0 %v1988, 20
    %v2176 = vpop.permute.xlu0 %2175
    %2177 = vrot.lane.b32.xlu0 %v1989, 20
    %v2178 = vpop.permute.xlu0 %2177
    %2179 = vrot.lane.b32.xlu0 %v1990, 20
    %v2180 = vpop.permute.xlu0 %2179
    %2181 = vrot.lane.b32.xlu0 %v1991, 20
    %v2182 = vpop.permute.xlu0 %2181
    %2183 = vrot.lane.b32.xlu0 %v1992, 20
    %v2184 = vpop.permute.xlu0 %2183
    %vm2249 = vcmask 195744
    %2250 = vst.msk [vmem:[#allocation3] sm:$0xff] %vm2249, %v2058
    %2251 = vst.msk [vmem:[#allocation3 + $0x8] sm:$0xff] %vm2249, %v2060
    %2252 = vst.msk [vmem:[#allocation3 + $0x10] sm:$0xff] %vm2249, %v2062
    %2253 = vst.msk [vmem:[#allocation3 + $0x18] sm:$0xff] %vm2249, %v2064
    %2254 = vst.msk [vmem:[#allocation3 + $0x20] sm:$0xff] %vm2249, %v2066
    %2255 = vst.msk [vmem:[#allocation3 + $0x28] sm:$0xff] %vm2249, %v2068
    %2256 = vst.msk [vmem:[#allocation3 + $0x30] sm:$0xff] %vm2249, %v2070
    %2257 = vst.msk [vmem:[#allocation3 + $0x38] sm:$0xff] %vm2249, %v2072
    %2258 = vst.msk [vmem:[#allocation3 + $0x40] sm:$0xff] %vm2249, %v2074
    %2259 = vst.msk [vmem:[#allocation3 + $0x48] sm:$0xff] %vm2249, %v2076
    %2260 = vst.msk [vmem:[#allocation3 + $0x50] sm:$0xff] %vm2249, %v2078
    %2261 = vst.msk [vmem:[#allocation3 + $0x58] sm:$0xff] %vm2249, %v2080
    %2262 = vst.msk [vmem:[#allocation3 + $0x60] sm:$0xff] %vm2249, %v2082
    %2263 = vst.msk [vmem:[#allocation3 + $0x68] sm:$0xff] %vm2249, %v2084
    %2264 = vst.msk [vmem:[#allocation3 + $0x70] sm:$0xff] %vm2249, %v2086
    %2265 = vst.msk [vmem:[#allocation3 + $0x78] sm:$0xff] %vm2249, %v2088
    %2266 = vst.msk [vmem:[#allocation3 + $0x80] sm:$0xff] %vm2249, %v2090
    %2267 = vst.msk [vmem:[#allocation3 + $0x88] sm:$0xff] %vm2249, %v2092
    %2268 = vst.msk [vmem:[#allocation3 + $0x90] sm:$0xff] %vm2249, %v2094
    %2269 = vst.msk [vmem:[#allocation3 + $0x98] sm:$0xff] %vm2249, %v2096
    %2270 = vst.msk [vmem:[#allocation3 + $0xa0] sm:$0xff] %vm2249, %v2098
    %2271 = vst.msk [vmem:[#allocation3 + $0xa8] sm:$0xff] %vm2249, %v2100
    %2272 = vst.msk [vmem:[#allocation3 + $0xb0] sm:$0xff] %vm2249, %v2102
    %2273 = vst.msk [vmem:[#allocation3 + $0xb8] sm:$0xff] %vm2249, %v2104
    %2274 = vst.msk [vmem:[#allocation3 + $0xc0] sm:$0xff] %vm2249, %v2106
    %2275 = vst.msk [vmem:[#allocation3 + $0xc8] sm:$0xff] %vm2249, %v2108
    %2276 = vst.msk [vmem:[#allocation3 + $0xd0] sm:$0xff] %vm2249, %v2110
    %2277 = vst.msk [vmem:[#allocation3 + $0xd8] sm:$0xff] %vm2249, %v2112
    %2278 = vst.msk [vmem:[#allocation3 + $0xe0] sm:$0xff] %vm2249, %v2114
    %2279 = vst.msk [vmem:[#allocation3 + $0xe8] sm:$0xff] %vm2249, %v2116
    %2280 = vst.msk [vmem:[#allocation3 + $0xf0] sm:$0xff] %vm2249, %v2118
    %2281 = vst.msk [vmem:[#allocation3 + $0xf8] sm:$0xff] %vm2249, %v2120
    %2282 = vst.msk [vmem:[#allocation3 + $0x100] sm:$0xff] %vm2249, %v2122
    %2283 = vst.msk [vmem:[#allocation3 + $0x108] sm:$0xff] %vm2249, %v2124
    %2284 = vst.msk [vmem:[#allocation3 + $0x110] sm:$0xff] %vm2249, %v2126
    %2285 = vst.msk [vmem:[#allocation3 + $0x118] sm:$0xff] %vm2249, %v2128
    %2286 = vst.msk [vmem:[#allocation3 + $0x120] sm:$0xff] %vm2249, %v2130
    %2287 = vst.msk [vmem:[#allocation3 + $0x128] sm:$0xff] %vm2249, %v2132
    %2288 = vst.msk [vmem:[#allocation3 + $0x130] sm:$0xff] %vm2249, %v2134
    %2289 = vst.msk [vmem:[#allocation3 + $0x138] sm:$0xff] %vm2249, %v2136
    %2290 = vst.msk [vmem:[#allocation3 + $0x140] sm:$0xff] %vm2249, %v2138
    %2291 = vst.msk [vmem:[#allocation3 + $0x148] sm:$0xff] %vm2249, %v2140
    %2292 = vst.msk [vmem:[#allocation3 + $0x150] sm:$0xff] %vm2249, %v2142
    %2293 = vst.msk [vmem:[#allocation3 + $0x158] sm:$0xff] %vm2249, %v2144
    %2294 = vst.msk [vmem:[#allocation3 + $0x160] sm:$0xff] %vm2249, %v2146
    %2295 = vst.msk [vmem:[#allocation3 + $0x168] sm:$0xff] %vm2249, %v2148
    %2296 = vst.msk [vmem:[#allocation3 + $0x170] sm:$0xff] %vm2249, %v2150
    %2297 = vst.msk [vmem:[#allocation3 + $0x178] sm:$0xff] %vm2249, %v2152
    %2298 = vst.msk [vmem:[#allocation3 + $0x180] sm:$0xff] %vm2249, %v2154
    %2299 = vst.msk [vmem:[#allocation3 + $0x188] sm:$0xff] %vm2249, %v2156
    %2300 = vst.msk [vmem:[#allocation3 + $0x190] sm:$0xff] %vm2249, %v2158
    %2301 = vst.msk [vmem:[#allocation3 + $0x198] sm:$0xff] %vm2249, %v2160
    %2302 = vst.msk [vmem:[#allocation3 + $0x1a0] sm:$0xff] %vm2249, %v2162
    %2303 = vst.msk [vmem:[#allocation3 + $0x1a8] sm:$0xff] %vm2249, %v2164
    %2304 = vst.msk [vmem:[#allocation3 + $0x1b0] sm:$0xff] %vm2249, %v2166
    %2305 = vst.msk [vmem:[#allocation3 + $0x1b8] sm:$0xff] %vm2249, %v2168
    %2306 = vst.msk [vmem:[#allocation3 + $0x1c0] sm:$0xff] %vm2249, %v2170
    %2307 = vst.msk [vmem:[#allocation3 + $0x1c8] sm:$0xff] %vm2249, %v2172
    %2308 = vst.msk [vmem:[#allocation3 + $0x1d0] sm:$0xff] %vm2249, %v2174
    %2309 = vst.msk [vmem:[#allocation3 + $0x1d8] sm:$0xff] %vm2249, %v2176
    %2310 = vst.msk [vmem:[#allocation3 + $0x1e0] sm:$0xff] %vm2249, %v2178
    %2311 = vst.msk [vmem:[#allocation3 + $0x1e8] sm:$0xff] %vm2249, %v2180
    %2312 = vst.msk [vmem:[#allocation3 + $0x1f0] sm:$0xff] %vm2249, %v2182
    %2313 = vst.msk [vmem:[#allocation3 + $0x1f8] sm:$0xff] %vm2249, %v2184
    %s2314 = scalar_lea.vmem [#allocation2], 48
    %v2315 = vld [vmem:[%s2314] sm:$0xff]
    %v2316 = vld [vmem:[%s2314 + $0x8] sm:$0xff]
    %v2317 = vld [vmem:[%s2314 + $0x18] sm:$0xff]
    %v2318 = vld [vmem:[%s2314 + $0x20] sm:$0xff]
    %v2319 = vld [vmem:[%s2314 + $0x30] sm:$0xff]
    %v2320 = vld [vmem:[%s2314 + $0x38] sm:$0xff]
    %v2321 = vld [vmem:[%s2314 + $0x48] sm:$0xff]
    %v2322 = vld [vmem:[%s2314 + $0x50] sm:$0xff]
    %v2323 = vld [vmem:[%s2314 + $0x60] sm:$0xff]
    %v2324 = vld [vmem:[%s2314 + $0x68] sm:$0xff]
    %v2325 = vld [vmem:[%s2314 + $0x78] sm:$0xff]
    %v2326 = vld [vmem:[%s2314 + $0x80] sm:$0xff]
    %v2327 = vld [vmem:[%s2314 + $0x90] sm:$0xff]
    %v2328 = vld [vmem:[%s2314 + $0x98] sm:$0xff]
    %v2329 = vld [vmem:[%s2314 + $0xa8] sm:$0xff]
    %v2330 = vld [vmem:[%s2314 + $0xb0] sm:$0xff]
    %v2331 = vld [vmem:[%s2314 + $0xc0] sm:$0xff]
    %v2332 = vld [vmem:[%s2314 + $0xc8] sm:$0xff]
    %v2333 = vld [vmem:[%s2314 + $0xd8] sm:$0xff]
    %v2334 = vld [vmem:[%s2314 + $0xe0] sm:$0xff]
    %v2335 = vld [vmem:[%s2314 + $0xf0] sm:$0xff]
    %v2336 = vld [vmem:[%s2314 + $0xf8] sm:$0xff]
    %v2337 = vld [vmem:[%s2314 + $0x108] sm:$0xff]
    %v2338 = vld [vmem:[%s2314 + $0x110] sm:$0xff]
    %v2339 = vld [vmem:[%s2314 + $0x120] sm:$0xff]
    %v2340 = vld [vmem:[%s2314 + $0x128] sm:$0xff]
    %v2341 = vld [vmem:[%s2314 + $0x138] sm:$0xff]
    %v2342 = vld [vmem:[%s2314 + $0x140] sm:$0xff]
    %v2343 = vld [vmem:[%s2314 + $0x150] sm:$0xff]
    %v2344 = vld [vmem:[%s2314 + $0x158] sm:$0xff]
    %v2345 = vld [vmem:[%s2314 + $0x168] sm:$0xff]
    %v2346 = vld [vmem:[%s2314 + $0x170] sm:$0xff]
    %v2347 = vld [vmem:[%s2314 + $0x1b0] sm:$0xff]
    %v2348 = vld [vmem:[%s2314 + $0x1b8] sm:$0xff]
    %v2349 = vld [vmem:[%s2314 + $0x1c8] sm:$0xff]
    %v2350 = vld [vmem:[%s2314 + $0x1d0] sm:$0xff]
    %v2351 = vld [vmem:[%s2314 + $0x1e0] sm:$0xff]
    %v2352 = vld [vmem:[%s2314 + $0x1e8] sm:$0xff]
    %v2353 = vld [vmem:[%s2314 + $0x1f8] sm:$0xff]
    %v2354 = vld [vmem:[%s2314 + $0x200] sm:$0xff]
    %v2355 = vld [vmem:[%s2314 + $0x210] sm:$0xff]
    %v2356 = vld [vmem:[%s2314 + $0x218] sm:$0xff]
    %v2357 = vld [vmem:[%s2314 + $0x228] sm:$0xff]
    %v2358 = vld [vmem:[%s2314 + $0x230] sm:$0xff]
    %v2359 = vld [vmem:[%s2314 + $0x240] sm:$0xff]
    %v2360 = vld [vmem:[%s2314 + $0x248] sm:$0xff]
    %v2361 = vld [vmem:[%s2314 + $0x258] sm:$0xff]
    %v2362 = vld [vmem:[%s2314 + $0x260] sm:$0xff]
    %v2363 = vld [vmem:[%s2314 + $0x270] sm:$0xff]
    %v2364 = vld [vmem:[%s2314 + $0x278] sm:$0xff]
    %v2365 = vld [vmem:[%s2314 + $0x288] sm:$0xff]
    %v2366 = vld [vmem:[%s2314 + $0x290] sm:$0xff]
    %v2367 = vld [vmem:[%s2314 + $0x2a0] sm:$0xff]
    %v2368 = vld [vmem:[%s2314 + $0x2a8] sm:$0xff]
    %v2369 = vld [vmem:[%s2314 + $0x2b8] sm:$0xff]
    %v2370 = vld [vmem:[%s2314 + $0x2c0] sm:$0xff]
    %v2371 = vld [vmem:[%s2314 + $0x2d0] sm:$0xff]
    %v2372 = vld [vmem:[%s2314 + $0x2d8] sm:$0xff]
    %v2373 = vld [vmem:[%s2314 + $0x2e8] sm:$0xff]
    %v2374 = vld [vmem:[%s2314 + $0x2f0] sm:$0xff]
    %v2375 = vld [vmem:[%s2314 + $0x300] sm:$0xff]
    %v2376 = vld [vmem:[%s2314 + $0x308] sm:$0xff]
    %v2377 = vld [vmem:[%s2314 + $0x318] sm:$0xff]
    %v2378 = vld [vmem:[%s2314 + $0x320] sm:$0xff]
    %2443 = vrot.lane.b32.xlu0 %v2315, 24
    %v2444 = vpop.permute.xlu0 %2443
    %2445 = vrot.lane.b32.xlu0 %v2316, 24
    %v2446 = vpop.permute.xlu0 %2445
    %2447 = vrot.lane.b32.xlu0 %v2317, 24
    %v2448 = vpop.permute.xlu0 %2447
    %2449 = vrot.lane.b32.xlu0 %v2318, 24
    %v2450 = vpop.permute.xlu0 %2449
    %2451 = vrot.lane.b32.xlu0 %v2319, 24
    %v2452 = vpop.permute.xlu0 %2451
    %2453 = vrot.lane.b32.xlu0 %v2320, 24
    %v2454 = vpop.permute.xlu0 %2453
    %2455 = vrot.lane.b32.xlu0 %v2321, 24
    %v2456 = vpop.permute.xlu0 %2455
    %2457 = vrot.lane.b32.xlu0 %v2322, 24
    %v2458 = vpop.permute.xlu0 %2457
    %2459 = vrot.lane.b32.xlu0 %v2323, 24
    %v2460 = vpop.permute.xlu0 %2459
    %2461 = vrot.lane.b32.xlu0 %v2324, 24
    %v2462 = vpop.permute.xlu0 %2461
    %2463 = vrot.lane.b32.xlu0 %v2325, 24
    %v2464 = vpop.permute.xlu0 %2463
    %2465 = vrot.lane.b32.xlu0 %v2326, 24
    %v2466 = vpop.permute.xlu0 %2465
    %2467 = vrot.lane.b32.xlu0 %v2327, 24
    %v2468 = vpop.permute.xlu0 %2467
    %2469 = vrot.lane.b32.xlu0 %v2328, 24
    %v2470 = vpop.permute.xlu0 %2469
    %2471 = vrot.lane.b32.xlu0 %v2329, 24
    %v2472 = vpop.permute.xlu0 %2471
    %2473 = vrot.lane.b32.xlu0 %v2330, 24
    %v2474 = vpop.permute.xlu0 %2473
    %2475 = vrot.lane.b32.xlu0 %v2331, 24
    %v2476 = vpop.permute.xlu0 %2475
    %2477 = vrot.lane.b32.xlu0 %v2332, 24
    %v2478 = vpop.permute.xlu0 %2477
    %2479 = vrot.lane.b32.xlu0 %v2333, 24
    %v2480 = vpop.permute.xlu0 %2479
    %2481 = vrot.lane.b32.xlu0 %v2334, 24
    %v2482 = vpop.permute.xlu0 %2481
    %2483 = vrot.lane.b32.xlu0 %v2335, 24
    %v2484 = vpop.permute.xlu0 %2483
    %2485 = vrot.lane.b32.xlu0 %v2336, 24
    %v2486 = vpop.permute.xlu0 %2485
    %2487 = vrot.lane.b32.xlu0 %v2337, 24
    %v2488 = vpop.permute.xlu0 %2487
    %2489 = vrot.lane.b32.xlu0 %v2338, 24
    %v2490 = vpop.permute.xlu0 %2489
    %2491 = vrot.lane.b32.xlu0 %v2339, 24
    %v2492 = vpop.permute.xlu0 %2491
    %2493 = vrot.lane.b32.xlu0 %v2340, 24
    %v2494 = vpop.permute.xlu0 %2493
    %2495 = vrot.lane.b32.xlu0 %v2341, 24
    %v2496 = vpop.permute.xlu0 %2495
    %2497 = vrot.lane.b32.xlu0 %v2342, 24
    %v2498 = vpop.permute.xlu0 %2497
    %2499 = vrot.lane.b32.xlu0 %v2343, 24
    %v2500 = vpop.permute.xlu0 %2499
    %2501 = vrot.lane.b32.xlu0 %v2344, 24
    %v2502 = vpop.permute.xlu0 %2501
    %2503 = vrot.lane.b32.xlu0 %v2345, 24
    %v2504 = vpop.permute.xlu0 %2503
    %2505 = vrot.lane.b32.xlu0 %v2346, 24
    %v2506 = vpop.permute.xlu0 %2505
    %2507 = vrot.lane.b32.xlu0 %v2347, 24
    %v2508 = vpop.permute.xlu0 %2507
    %2509 = vrot.lane.b32.xlu0 %v2348, 24
    %v2510 = vpop.permute.xlu0 %2509
    %2511 = vrot.lane.b32.xlu0 %v2349, 24
    %v2512 = vpop.permute.xlu0 %2511
    %2513 = vrot.lane.b32.xlu0 %v2350, 24
    %v2514 = vpop.permute.xlu0 %2513
    %2515 = vrot.lane.b32.xlu0 %v2351, 24
    %v2516 = vpop.permute.xlu0 %2515
    %2517 = vrot.lane.b32.xlu0 %v2352, 24
    %v2518 = vpop.permute.xlu0 %2517
    %2519 = vrot.lane.b32.xlu0 %v2353, 24
    %v2520 = vpop.permute.xlu0 %2519
    %2521 = vrot.lane.b32.xlu0 %v2354, 24
    %v2522 = vpop.permute.xlu0 %2521
    %2523 = vrot.lane.b32.xlu0 %v2355, 24
    %v2524 = vpop.permute.xlu0 %2523
    %2525 = vrot.lane.b32.xlu0 %v2356, 24
    %v2526 = vpop.permute.xlu0 %2525
    %2527 = vrot.lane.b32.xlu0 %v2357, 24
    %v2528 = vpop.permute.xlu0 %2527
    %2529 = vrot.lane.b32.xlu0 %v2358, 24
    %v2530 = vpop.permute.xlu0 %2529
    %2531 = vrot.lane.b32.xlu0 %v2359, 24
    %v2532 = vpop.permute.xlu0 %2531
    %2533 = vrot.lane.b32.xlu0 %v2360, 24
    %v2534 = vpop.permute.xlu0 %2533
    %2535 = vrot.lane.b32.xlu0 %v2361, 24
    %v2536 = vpop.permute.xlu0 %2535
    %2537 = vrot.lane.b32.xlu0 %v2362, 24
    %v2538 = vpop.permute.xlu0 %2537
    %2539 = vrot.lane.b32.xlu0 %v2363, 24
    %v2540 = vpop.permute.xlu0 %2539
    %2541 = vrot.lane.b32.xlu0 %v2364, 24
    %v2542 = vpop.permute.xlu0 %2541
    %2543 = vrot.lane.b32.xlu0 %v2365, 24
    %v2544 = vpop.permute.xlu0 %2543
    %2545 = vrot.lane.b32.xlu0 %v2366, 24
    %v2546 = vpop.permute.xlu0 %2545
    %2547 = vrot.lane.b32.xlu0 %v2367, 24
    %v2548 = vpop.permute.xlu0 %2547
    %2549 = vrot.lane.b32.xlu0 %v2368, 24
    %v2550 = vpop.permute.xlu0 %2549
    %2551 = vrot.lane.b32.xlu0 %v2369, 24
    %v2552 = vpop.permute.xlu0 %2551
    %2553 = vrot.lane.b32.xlu0 %v2370, 24
    %v2554 = vpop.permute.xlu0 %2553
    %2555 = vrot.lane.b32.xlu0 %v2371, 24
    %v2556 = vpop.permute.xlu0 %2555
    %2557 = vrot.lane.b32.xlu0 %v2372, 24
    %v2558 = vpop.permute.xlu0 %2557
    %2559 = vrot.lane.b32.xlu0 %v2373, 24
    %v2560 = vpop.permute.xlu0 %2559
    %2561 = vrot.lane.b32.xlu0 %v2374, 24
    %v2562 = vpop.permute.xlu0 %2561
    %2563 = vrot.lane.b32.xlu0 %v2375, 24
    %v2564 = vpop.permute.xlu0 %2563
    %2565 = vrot.lane.b32.xlu0 %v2376, 24
    %v2566 = vpop.permute.xlu0 %2565
    %2567 = vrot.lane.b32.xlu0 %v2377, 24
    %v2568 = vpop.permute.xlu0 %2567
    %2569 = vrot.lane.b32.xlu0 %v2378, 24
    %v2570 = vpop.permute.xlu0 %2569
    %vm2635 = vcmask 228544
    %2636 = vst.msk [vmem:[#allocation3] sm:$0xff] %vm2635, %v2444
    %2637 = vst.msk [vmem:[#allocation3 + $0x8] sm:$0xff] %vm2635, %v2446
    %2638 = vst.msk [vmem:[#allocation3 + $0x10] sm:$0xff] %vm2635, %v2448
    %2639 = vst.msk [vmem:[#allocation3 + $0x18] sm:$0xff] %vm2635, %v2450
    %2640 = vst.msk [vmem:[#allocation3 + $0x20] sm:$0xff] %vm2635, %v2452
    %2641 = vst.msk [vmem:[#allocation3 + $0x28] sm:$0xff] %vm2635, %v2454
    %2642 = vst.msk [vmem:[#allocation3 + $0x30] sm:$0xff] %vm2635, %v2456
    %2643 = vst.msk [vmem:[#allocation3 + $0x38] sm:$0xff] %vm2635, %v2458
    %2644 = vst.msk [vmem:[#allocation3 + $0x40] sm:$0xff] %vm2635, %v2460
    %2645 = vst.msk [vmem:[#allocation3 + $0x48] sm:$0xff] %vm2635, %v2462
    %2646 = vst.msk [vmem:[#allocation3 + $0x50] sm:$0xff] %vm2635, %v2464
    %2647 = vst.msk [vmem:[#allocation3 + $0x58] sm:$0xff] %vm2635, %v2466
    %2648 = vst.msk [vmem:[#allocation3 + $0x60] sm:$0xff] %vm2635, %v2468
    %2649 = vst.msk [vmem:[#allocation3 + $0x68] sm:$0xff] %vm2635, %v2470
    %2650 = vst.msk [vmem:[#allocation3 + $0x70] sm:$0xff] %vm2635, %v2472
    %2651 = vst.msk [vmem:[#allocation3 + $0x78] sm:$0xff] %vm2635, %v2474
    %2652 = vst.msk [vmem:[#allocation3 + $0x80] sm:$0xff] %vm2635, %v2476
    %2653 = vst.msk [vmem:[#allocation3 + $0x88] sm:$0xff] %vm2635, %v2478
    %2654 = vst.msk [vmem:[#allocation3 + $0x90] sm:$0xff] %vm2635, %v2480
    %2655 = vst.msk [vmem:[#allocation3 + $0x98] sm:$0xff] %vm2635, %v2482
    %2656 = vst.msk [vmem:[#allocation3 + $0xa0] sm:$0xff] %vm2635, %v2484
    %2657 = vst.msk [vmem:[#allocation3 + $0xa8] sm:$0xff] %vm2635, %v2486
    %2658 = vst.msk [vmem:[#allocation3 + $0xb0] sm:$0xff] %vm2635, %v2488
    %2659 = vst.msk [vmem:[#allocation3 + $0xb8] sm:$0xff] %vm2635, %v2490
    %2660 = vst.msk [vmem:[#allocation3 + $0xc0] sm:$0xff] %vm2635, %v2492
    %2661 = vst.msk [vmem:[#allocation3 + $0xc8] sm:$0xff] %vm2635, %v2494
    %2662 = vst.msk [vmem:[#allocation3 + $0xd0] sm:$0xff] %vm2635, %v2496
    %2663 = vst.msk [vmem:[#allocation3 + $0xd8] sm:$0xff] %vm2635, %v2498
    %2664 = vst.msk [vmem:[#allocation3 + $0xe0] sm:$0xff] %vm2635, %v2500
    %2665 = vst.msk [vmem:[#allocation3 + $0xe8] sm:$0xff] %vm2635, %v2502
    %2666 = vst.msk [vmem:[#allocation3 + $0xf0] sm:$0xff] %vm2635, %v2504
    %2667 = vst.msk [vmem:[#allocation3 + $0xf8] sm:$0xff] %vm2635, %v2506
    %2668 = vst.msk [vmem:[#allocation3 + $0x100] sm:$0xff] %vm2635, %v2508
    %2669 = vst.msk [vmem:[#allocation3 + $0x108] sm:$0xff] %vm2635, %v2510
    %2670 = vst.msk [vmem:[#allocation3 + $0x110] sm:$0xff] %vm2635, %v2512
    %2671 = vst.msk [vmem:[#allocation3 + $0x118] sm:$0xff] %vm2635, %v2514
    %2672 = vst.msk [vmem:[#allocation3 + $0x120] sm:$0xff] %vm2635, %v2516
    %2673 = vst.msk [vmem:[#allocation3 + $0x128] sm:$0xff] %vm2635, %v2518
    %2674 = vst.msk [vmem:[#allocation3 + $0x130] sm:$0xff] %vm2635, %v2520
    %2675 = vst.msk [vmem:[#allocation3 + $0x138] sm:$0xff] %vm2635, %v2522
    %2676 = vst.msk [vmem:[#allocation3 + $0x140] sm:$0xff] %vm2635, %v2524
    %2677 = vst.msk [vmem:[#allocation3 + $0x148] sm:$0xff] %vm2635, %v2526
    %2678 = vst.msk [vmem:[#allocation3 + $0x150] sm:$0xff] %vm2635, %v2528
    %2679 = vst.msk [vmem:[#allocation3 + $0x158] sm:$0xff] %vm2635, %v2530
    %2680 = vst.msk [vmem:[#allocation3 + $0x160] sm:$0xff] %vm2635, %v2532
    %2681 = vst.msk [vmem:[#allocation3 + $0x168] sm:$0xff] %vm2635, %v2534
    %2682 = vst.msk [vmem:[#allocation3 + $0x170] sm:$0xff] %vm2635, %v2536
    %2683 = vst.msk [vmem:[#allocation3 + $0x178] sm:$0xff] %vm2635, %v2538
    %2684 = vst.msk [vmem:[#allocation3 + $0x180] sm:$0xff] %vm2635, %v2540
    %2685 = vst.msk [vmem:[#allocation3 + $0x188] sm:$0xff] %vm2635, %v2542
    %2686 = vst.msk [vmem:[#allocation3 + $0x190] sm:$0xff] %vm2635, %v2544
    %2687 = vst.msk [vmem:[#allocation3 + $0x198] sm:$0xff] %vm2635, %v2546
    %2688 = vst.msk [vmem:[#allocation3 + $0x1a0] sm:$0xff] %vm2635, %v2548
    %2689 = vst.msk [vmem:[#allocation3 + $0x1a8] sm:$0xff] %vm2635, %v2550
    %2690 = vst.msk [vmem:[#allocation3 + $0x1b0] sm:$0xff] %vm2635, %v2552
    %2691 = vst.msk [vmem:[#allocation3 + $0x1b8] sm:$0xff] %vm2635, %v2554
    %2692 = vst.msk [vmem:[#allocation3 + $0x1c0] sm:$0xff] %vm2635, %v2556
    %2693 = vst.msk [vmem:[#allocation3 + $0x1c8] sm:$0xff] %vm2635, %v2558
    %2694 = vst.msk [vmem:[#allocation3 + $0x1d0] sm:$0xff] %vm2635, %v2560
    %2695 = vst.msk [vmem:[#allocation3 + $0x1d8] sm:$0xff] %vm2635, %v2562
    %2696 = vst.msk [vmem:[#allocation3 + $0x1e0] sm:$0xff] %vm2635, %v2564
    %2697 = vst.msk [vmem:[#allocation3 + $0x1e8] sm:$0xff] %vm2635, %v2566
    %2698 = vst.msk [vmem:[#allocation3 + $0x1f0] sm:$0xff] %vm2635, %v2568
    %2699 = vst.msk [vmem:[#allocation3 + $0x1f8] sm:$0xff] %vm2635, %v2570
    %v2700 = vld [vmem:[%s2314 + $0x1] sm:$0xff]
    %v2701 = vld [vmem:[%s2314 + $0x9] sm:$0xff]
    %v2702 = vld [vmem:[%s2314 + $0x19] sm:$0xff]
    %v2703 = vld [vmem:[%s2314 + $0x21] sm:$0xff]
    %v2704 = vld [vmem:[%s2314 + $0x31] sm:$0xff]
    %v2705 = vld [vmem:[%s2314 + $0x39] sm:$0xff]
    %v2706 = vld [vmem:[%s2314 + $0x49] sm:$0xff]
    %v2707 = vld [vmem:[%s2314 + $0x51] sm:$0xff]
    %v2708 = vld [vmem:[%s2314 + $0x61] sm:$0xff]
    %v2709 = vld [vmem:[%s2314 + $0x69] sm:$0xff]
    %v2710 = vld [vmem:[%s2314 + $0x79] sm:$0xff]
    %v2711 = vld [vmem:[%s2314 + $0x81] sm:$0xff]
    %v2712 = vld [vmem:[%s2314 + $0x91] sm:$0xff]
    %v2713 = vld [vmem:[%s2314 + $0x99] sm:$0xff]
    %v2714 = vld [vmem:[%s2314 + $0xa9] sm:$0xff]
    %v2715 = vld [vmem:[%s2314 + $0xb1] sm:$0xff]
    %v2716 = vld [vmem:[%s2314 + $0xc1] sm:$0xff]
    %v2717 = vld [vmem:[%s2314 + $0xc9] sm:$0xff]
    %v2718 = vld [vmem:[%s2314 + $0xd9] sm:$0xff]
    %v2719 = vld [vmem:[%s2314 + $0xe1] sm:$0xff]
    %v2720 = vld [vmem:[%s2314 + $0xf1] sm:$0xff]
    %v2721 = vld [vmem:[%s2314 + $0xf9] sm:$0xff]
    %v2722 = vld [vmem:[%s2314 + $0x109] sm:$0xff]
    %v2723 = vld [vmem:[%s2314 + $0x111] sm:$0xff]
    %v2724 = vld [vmem:[%s2314 + $0x121] sm:$0xff]
    %v2725 = vld [vmem:[%s2314 + $0x129] sm:$0xff]
    %v2726 = vld [vmem:[%s2314 + $0x139] sm:$0xff]
    %v2727 = vld [vmem:[%s2314 + $0x141] sm:$0xff]
    %v2728 = vld [vmem:[%s2314 + $0x151] sm:$0xff]
    %v2729 = vld [vmem:[%s2314 + $0x159] sm:$0xff]
    %v2730 = vld [vmem:[%s2314 + $0x169] sm:$0xff]
    %v2731 = vld [vmem:[%s2314 + $0x171] sm:$0xff]
    %v2732 = vld [vmem:[%s2314 + $0x1b1] sm:$0xff]
    %v2733 = vld [vmem:[%s2314 + $0x1b9] sm:$0xff]
    %v2734 = vld [vmem:[%s2314 + $0x1c9] sm:$0xff]
    %v2735 = vld [vmem:[%s2314 + $0x1d1] sm:$0xff]
    %v2736 = vld [vmem:[%s2314 + $0x1e1] sm:$0xff]
    %v2737 = vld [vmem:[%s2314 + $0x1e9] sm:$0xff]
    %v2738 = vld [vmem:[%s2314 + $0x1f9] sm:$0xff]
    %v2739 = vld [vmem:[%s2314 + $0x201] sm:$0xff]
    %v2740 = vld [vmem:[%s2314 + $0x211] sm:$0xff]
    %v2741 = vld [vmem:[%s2314 + $0x219] sm:$0xff]
    %v2742 = vld [vmem:[%s2314 + $0x229] sm:$0xff]
    %v2743 = vld [vmem:[%s2314 + $0x231] sm:$0xff]
    %v2744 = vld [vmem:[%s2314 + $0x241] sm:$0xff]
    %v2745 = vld [vmem:[%s2314 + $0x249] sm:$0xff]
    %v2746 = vld [vmem:[%s2314 + $0x259] sm:$0xff]
    %v2747 = vld [vmem:[%s2314 + $0x261] sm:$0xff]
    %v2748 = vld [vmem:[%s2314 + $0x271] sm:$0xff]
    %v2749 = vld [vmem:[%s2314 + $0x279] sm:$0xff]
    %v2750 = vld [vmem:[%s2314 + $0x289] sm:$0xff]
    %v2751 = vld [vmem:[%s2314 + $0x291] sm:$0xff]
    %v2752 = vld [vmem:[%s2314 + $0x2a1] sm:$0xff]
    %v2753 = vld [vmem:[%s2314 + $0x2a9] sm:$0xff]
    %v2754 = vld [vmem:[%s2314 + $0x2b9] sm:$0xff]
    %v2755 = vld [vmem:[%s2314 + $0x2c1] sm:$0xff]
    %v2756 = vld [vmem:[%s2314 + $0x2d1] sm:$0xff]
    %v2757 = vld [vmem:[%s2314 + $0x2d9] sm:$0xff]
    %v2758 = vld [vmem:[%s2314 + $0x2e9] sm:$0xff]
    %v2759 = vld [vmem:[%s2314 + $0x2f1] sm:$0xff]
    %v2760 = vld [vmem:[%s2314 + $0x301] sm:$0xff]
    %v2761 = vld [vmem:[%s2314 + $0x309] sm:$0xff]
    %v2762 = vld [vmem:[%s2314 + $0x319] sm:$0xff]
    %v2763 = vld [vmem:[%s2314 + $0x321] sm:$0xff]
    %2828 = vrot.lane.b32.xlu0 %v2700, 28
    %v2829 = vpop.permute.xlu0 %2828
    %2830 = vrot.lane.b32.xlu0 %v2701, 28
    %v2831 = vpop.permute.xlu0 %2830
    %2832 = vrot.lane.b32.xlu0 %v2702, 28
    %v2833 = vpop.permute.xlu0 %2832
    %2834 = vrot.lane.b32.xlu0 %v2703, 28
    %v2835 = vpop.permute.xlu0 %2834
    %2836 = vrot.lane.b32.xlu0 %v2704, 28
    %v2837 = vpop.permute.xlu0 %2836
    %2838 = vrot.lane.b32.xlu0 %v2705, 28
    %v2839 = vpop.permute.xlu0 %2838
    %2840 = vrot.lane.b32.xlu0 %v2706, 28
    %v2841 = vpop.permute.xlu0 %2840
    %2842 = vrot.lane.b32.xlu0 %v2707, 28
    %v2843 = vpop.permute.xlu0 %2842
    %2844 = vrot.lane.b32.xlu0 %v2708, 28
    %v2845 = vpop.permute.xlu0 %2844
    %2846 = vrot.lane.b32.xlu0 %v2709, 28
    %v2847 = vpop.permute.xlu0 %2846
    %2848 = vrot.lane.b32.xlu0 %v2710, 28
    %v2849 = vpop.permute.xlu0 %2848
    %2850 = vrot.lane.b32.xlu0 %v2711, 28
    %v2851 = vpop.permute.xlu0 %2850
    %2852 = vrot.lane.b32.xlu0 %v2712, 28
    %v2853 = vpop.permute.xlu0 %2852
    %2854 = vrot.lane.b32.xlu0 %v2713, 28
    %v2855 = vpop.permute.xlu0 %2854
    %2856 = vrot.lane.b32.xlu0 %v2714, 28
    %v2857 = vpop.permute.xlu0 %2856
    %2858 = vrot.lane.b32.xlu0 %v2715, 28
    %v2859 = vpop.permute.xlu0 %2858
    %2860 = vrot.lane.b32.xlu0 %v2716, 28
    %v2861 = vpop.permute.xlu0 %2860
    %2862 = vrot.lane.b32.xlu0 %v2717, 28
    %v2863 = vpop.permute.xlu0 %2862
    %2864 = vrot.lane.b32.xlu0 %v2718, 28
    %v2865 = vpop.permute.xlu0 %2864
    %2866 = vrot.lane.b32.xlu0 %v2719, 28
    %v2867 = vpop.permute.xlu0 %2866
    %2868 = vrot.lane.b32.xlu0 %v2720, 28
    %v2869 = vpop.permute.xlu0 %2868
    %2870 = vrot.lane.b32.xlu0 %v2721, 28
    %v2871 = vpop.permute.xlu0 %2870
    %2872 = vrot.lane.b32.xlu0 %v2722, 28
    %v2873 = vpop.permute.xlu0 %2872
    %2874 = vrot.lane.b32.xlu0 %v2723, 28
    %v2875 = vpop.permute.xlu0 %2874
    %2876 = vrot.lane.b32.xlu0 %v2724, 28
    %v2877 = vpop.permute.xlu0 %2876
    %2878 = vrot.lane.b32.xlu0 %v2725, 28
    %v2879 = vpop.permute.xlu0 %2878
    %2880 = vrot.lane.b32.xlu0 %v2726, 28
    %v2881 = vpop.permute.xlu0 %2880
    %2882 = vrot.lane.b32.xlu0 %v2727, 28
    %v2883 = vpop.permute.xlu0 %2882
    %2884 = vrot.lane.b32.xlu0 %v2728, 28
    %v2885 = vpop.permute.xlu0 %2884
    %2886 = vrot.lane.b32.xlu0 %v2729, 28
    %v2887 = vpop.permute.xlu0 %2886
    %2888 = vrot.lane.b32.xlu0 %v2730, 28
    %v2889 = vpop.permute.xlu0 %2888
    %2890 = vrot.lane.b32.xlu0 %v2731, 28
    %v2891 = vpop.permute.xlu0 %2890
    %2892 = vrot.lane.b32.xlu0 %v2732, 28
    %v2893 = vpop.permute.xlu0 %2892
    %2894 = vrot.lane.b32.xlu0 %v2733, 28
    %v2895 = vpop.permute.xlu0 %2894
    %2896 = vrot.lane.b32.xlu0 %v2734, 28
    %v2897 = vpop.permute.xlu0 %2896
    %2898 = vrot.lane.b32.xlu0 %v2735, 28
    %v2899 = vpop.permute.xlu0 %2898
    %2900 = vrot.lane.b32.xlu0 %v2736, 28
    %v2901 = vpop.permute.xlu0 %2900
    %2902 = vrot.lane.b32.xlu0 %v2737, 28
    %v2903 = vpop.permute.xlu0 %2902
    %2904 = vrot.lane.b32.xlu0 %v2738, 28
    %v2905 = vpop.permute.xlu0 %2904
    %2906 = vrot.lane.b32.xlu0 %v2739, 28
    %v2907 = vpop.permute.xlu0 %2906
    %2908 = vrot.lane.b32.xlu0 %v2740, 28
    %v2909 = vpop.permute.xlu0 %2908
    %2910 = vrot.lane.b32.xlu0 %v2741, 28
    %v2911 = vpop.permute.xlu0 %2910
    %2912 = vrot.lane.b32.xlu0 %v2742, 28
    %v2913 = vpop.permute.xlu0 %2912
    %2914 = vrot.lane.b32.xlu0 %v2743, 28
    %v2915 = vpop.permute.xlu0 %2914
    %2916 = vrot.lane.b32.xlu0 %v2744, 28
    %v2917 = vpop.permute.xlu0 %2916
    %2918 = vrot.lane.b32.xlu0 %v2745, 28
    %v2919 = vpop.permute.xlu0 %2918
    %2920 = vrot.lane.b32.xlu0 %v2746, 28
    %v2921 = vpop.permute.xlu0 %2920
    %2922 = vrot.lane.b32.xlu0 %v2747, 28
    %v2923 = vpop.permute.xlu0 %2922
    %2924 = vrot.lane.b32.xlu0 %v2748, 28
    %v2925 = vpop.permute.xlu0 %2924
    %2926 = vrot.lane.b32.xlu0 %v2749, 28
    %v2927 = vpop.permute.xlu0 %2926
    %2928 = vrot.lane.b32.xlu0 %v2750, 28
    %v2929 = vpop.permute.xlu0 %2928
    %2930 = vrot.lane.b32.xlu0 %v2751, 28
    %v2931 = vpop.permute.xlu0 %2930
    %2932 = vrot.lane.b32.xlu0 %v2752, 28
    %v2933 = vpop.permute.xlu0 %2932
    %2934 = vrot.lane.b32.xlu0 %v2753, 28
    %v2935 = vpop.permute.xlu0 %2934
    %2936 = vrot.lane.b32.xlu0 %v2754, 28
    %v2937 = vpop.permute.xlu0 %2936
    %2938 = vrot.lane.b32.xlu0 %v2755, 28
    %v2939 = vpop.permute.xlu0 %2938
    %2940 = vrot.lane.b32.xlu0 %v2756, 28
    %v2941 = vpop.permute.xlu0 %2940
    %2942 = vrot.lane.b32.xlu0 %v2757, 28
    %v2943 = vpop.permute.xlu0 %2942
    %2944 = vrot.lane.b32.xlu0 %v2758, 28
    %v2945 = vpop.permute.xlu0 %2944
    %2946 = vrot.lane.b32.xlu0 %v2759, 28
    %v2947 = vpop.permute.xlu0 %2946
    %2948 = vrot.lane.b32.xlu0 %v2760, 28
    %v2949 = vpop.permute.xlu0 %2948
    %2950 = vrot.lane.b32.xlu0 %v2761, 28
    %v2951 = vpop.permute.xlu0 %2950
    %2952 = vrot.lane.b32.xlu0 %v2762, 28
    %v2953 = vpop.permute.xlu0 %2952
    %2954 = vrot.lane.b32.xlu0 %v2763, 28
    %v2955 = vpop.permute.xlu0 %2954
    %vm3020 = vcmask 261344
    %3021 = vst.msk [vmem:[#allocation3] sm:$0xff] %vm3020, %v2829
    %3022 = vst.msk [vmem:[#allocation3 + $0x8] sm:$0xff] %vm3020, %v2831
    %3023 = vst.msk [vmem:[#allocation3 + $0x10] sm:$0xff] %vm3020, %v2833
    %3024 = vst.msk [vmem:[#allocation3 + $0x18] sm:$0xff] %vm3020, %v2835
    %3025 = vst.msk [vmem:[#allocation3 + $0x20] sm:$0xff] %vm3020, %v2837
    %3026 = vst.msk [vmem:[#allocation3 + $0x28] sm:$0xff] %vm3020, %v2839
    %3027 = vst.msk [vmem:[#allocation3 + $0x30] sm:$0xff] %vm3020, %v2841
    %3028 = vst.msk [vmem:[#allocation3 + $0x38] sm:$0xff] %vm3020, %v2843
    %3029 = vst.msk [vmem:[#allocation3 + $0x40] sm:$0xff] %vm3020, %v2845
    %3030 = vst.msk [vmem:[#allocation3 + $0x48] sm:$0xff] %vm3020, %v2847
    %3031 = vst.msk [vmem:[#allocation3 + $0x50] sm:$0xff] %vm3020, %v2849
    %3032 = vst.msk [vmem:[#allocation3 + $0x58] sm:$0xff] %vm3020, %v2851
    %3033 = vst.msk [vmem:[#allocation3 + $0x60] sm:$0xff] %vm3020, %v2853
    %3034 = vst.msk [vmem:[#allocation3 + $0x68] sm:$0xff] %vm3020, %v2855
    %3035 = vst.msk [vmem:[#allocation3 + $0x70] sm:$0xff] %vm3020, %v2857
    %3036 = vst.msk [vmem:[#allocation3 + $0x78] sm:$0xff] %vm3020, %v2859
    %3037 = vst.msk [vmem:[#allocation3 + $0x80] sm:$0xff] %vm3020, %v2861
    %3038 = vst.msk [vmem:[#allocation3 + $0x88] sm:$0xff] %vm3020, %v2863
    %3039 = vst.msk [vmem:[#allocation3 + $0x90] sm:$0xff] %vm3020, %v2865
    %3040 = vst.msk [vmem:[#allocation3 + $0x98] sm:$0xff] %vm3020, %v2867
    %3041 = vst.msk [vmem:[#allocation3 + $0xa0] sm:$0xff] %vm3020, %v2869
    %3042 = vst.msk [vmem:[#allocation3 + $0xa8] sm:$0xff] %vm3020, %v2871
    %3043 = vst.msk [vmem:[#allocation3 + $0xb0] sm:$0xff] %vm3020, %v2873
    %3044 = vst.msk [vmem:[#allocation3 + $0xb8] sm:$0xff] %vm3020, %v2875
    %3045 = vst.msk [vmem:[#allocation3 + $0xc0] sm:$0xff] %vm3020, %v2877
    %3046 = vst.msk [vmem:[#allocation3 + $0xc8] sm:$0xff] %vm3020, %v2879
    %3047 = vst.msk [vmem:[#allocation3 + $0xd0] sm:$0xff] %vm3020, %v2881
    %3048 = vst.msk [vmem:[#allocation3 + $0xd8] sm:$0xff] %vm3020, %v2883
    %3049 = vst.msk [vmem:[#allocation3 + $0xe0] sm:$0xff] %vm3020, %v2885
    %3050 = vst.msk [vmem:[#allocation3 + $0xe8] sm:$0xff] %vm3020, %v2887
    %3051 = vst.msk [vmem:[#allocation3 + $0xf0] sm:$0xff] %vm3020, %v2889
    %3052 = vst.msk [vmem:[#allocation3 + $0xf8] sm:$0xff] %vm3020, %v2891
    %3053 = vst.msk [vmem:[#allocation3 + $0x100] sm:$0xff] %vm3020, %v2893
    %3054 = vst.msk [vmem:[#allocation3 + $0x108] sm:$0xff] %vm3020, %v2895
    %3055 = vst.msk [vmem:[#allocation3 + $0x110] sm:$0xff] %vm3020, %v2897
    %3056 = vst.msk [vmem:[#allocation3 + $0x118] sm:$0xff] %vm3020, %v2899
    %3057 = vst.msk [vmem:[#allocation3 + $0x120] sm:$0xff] %vm3020, %v2901
    %3058 = vst.msk [vmem:[#allocation3 + $0x128] sm:$0xff] %vm3020, %v2903
    %3059 = vst.msk [vmem:[#allocation3 + $0x130] sm:$0xff] %vm3020, %v2905
    %3060 = vst.msk [vmem:[#allocation3 + $0x138] sm:$0xff] %vm3020, %v2907
    %3061 = vst.msk [vmem:[#allocation3 + $0x140] sm:$0xff] %vm3020, %v2909
    %3062 = vst.msk [vmem:[#allocation3 + $0x148] sm:$0xff] %vm3020, %v2911
    %3063 = vst.msk [vmem:[#allocation3 + $0x150] sm:$0xff] %vm3020, %v2913
    %3064 = vst.msk [vmem:[#allocation3 + $0x158] sm:$0xff] %vm3020, %v2915
    %3065 = vst.msk [vmem:[#allocation3 + $0x160] sm:$0xff] %vm3020, %v2917
    %3066 = vst.msk [vmem:[#allocation3 + $0x168] sm:$0xff] %vm3020, %v2919
    %3067 = vst.msk [vmem:[#allocation3 + $0x170] sm:$0xff] %vm3020, %v2921
    %3068 = vst.msk [vmem:[#allocation3 + $0x178] sm:$0xff] %vm3020, %v2923
    %3069 = vst.msk [vmem:[#allocation3 + $0x180] sm:$0xff] %vm3020, %v2925
    %3070 = vst.msk [vmem:[#allocation3 + $0x188] sm:$0xff] %vm3020, %v2927
    %3071 = vst.msk [vmem:[#allocation3 + $0x190] sm:$0xff] %vm3020, %v2929
    %3072 = vst.msk [vmem:[#allocation3 + $0x198] sm:$0xff] %vm3020, %v2931
    %3073 = vst.msk [vmem:[#allocation3 + $0x1a0] sm:$0xff] %vm3020, %v2933
    %3074 = vst.msk [vmem:[#allocation3 + $0x1a8] sm:$0xff] %vm3020, %v2935
    %3075 = vst.msk [vmem:[#allocation3 + $0x1b0] sm:$0xff] %vm3020, %v2937
    %3076 = vst.msk [vmem:[#allocation3 + $0x1b8] sm:$0xff] %vm3020, %v2939
    %3077 = vst.msk [vmem:[#allocation3 + $0x1c0] sm:$0xff] %vm3020, %v2941
    %3078 = vst.msk [vmem:[#allocation3 + $0x1c8] sm:$0xff] %vm3020, %v2943
    %3079 = vst.msk [vmem:[#allocation3 + $0x1d0] sm:$0xff] %vm3020, %v2945
    %3080 = vst.msk [vmem:[#allocation3 + $0x1d8] sm:$0xff] %vm3020, %v2947
    %3081 = vst.msk [vmem:[#allocation3 + $0x1e0] sm:$0xff] %vm3020, %v2949
    %3082 = vst.msk [vmem:[#allocation3 + $0x1e8] sm:$0xff] %vm3020, %v2951
    %3083 = vst.msk [vmem:[#allocation3 + $0x1f0] sm:$0xff] %vm3020, %v2953
    %3084 = vst.msk [vmem:[#allocation3 + $0x1f8] sm:$0xff] %vm3020, %v2955
    %v3085 = vld [vmem:[%s2314 + $0x2] sm:$0xff]
    %v3086 = vld [vmem:[%s2314 + $0xa] sm:$0xff]
    %v3087 = vld [vmem:[%s2314 + $0x1a] sm:$0xff]
    %v3088 = vld [vmem:[%s2314 + $0x22] sm:$0xff]
    %v3089 = vld [vmem:[%s2314 + $0x32] sm:$0xff]
    %v3090 = vld [vmem:[%s2314 + $0x3a] sm:$0xff]
    %v3091 = vld [vmem:[%s2314 + $0x4a] sm:$0xff]
    %v3092 = vld [vmem:[%s2314 + $0x52] sm:$0xff]
    %v3093 = vld [vmem:[%s2314 + $0x62] sm:$0xff]
    %v3094 = vld [vmem:[%s2314 + $0x6a] sm:$0xff]
    %v3095 = vld [vmem:[%s2314 + $0x7a] sm:$0xff]
    %v3096 = vld [vmem:[%s2314 + $0x82] sm:$0xff]
    %v3097 = vld [vmem:[%s2314 + $0x92] sm:$0xff]
    %v3098 = vld [vmem:[%s2314 + $0x9a] sm:$0xff]
    %v3099 = vld [vmem:[%s2314 + $0xaa] sm:$0xff]
    %v3100 = vld [vmem:[%s2314 + $0xb2] sm:$0xff]
    %v3101 = vld [vmem:[%s2314 + $0xc2] sm:$0xff]
    %v3102 = vld [vmem:[%s2314 + $0xca] sm:$0xff]
    %v3103 = vld [vmem:[%s2314 + $0xda] sm:$0xff]
    %v3104 = vld [vmem:[%s2314 + $0xe2] sm:$0xff]
    %v3105 = vld [vmem:[%s2314 + $0xf2] sm:$0xff]
    %v3106 = vld [vmem:[%s2314 + $0xfa] sm:$0xff]
    %v3107 = vld [vmem:[%s2314 + $0x10a] sm:$0xff]
    %v3108 = vld [vmem:[%s2314 + $0x112] sm:$0xff]
    %v3109 = vld [vmem:[%s2314 + $0x122] sm:$0xff]
    %v3110 = vld [vmem:[%s2314 + $0x12a] sm:$0xff]
    %v3111 = vld [vmem:[%s2314 + $0x13a] sm:$0xff]
    %v3112 = vld [vmem:[%s2314 + $0x142] sm:$0xff]
    %v3113 = vld [vmem:[%s2314 + $0x152] sm:$0xff]
    %v3114 = vld [vmem:[%s2314 + $0x15a] sm:$0xff]
    %v3115 = vld [vmem:[%s2314 + $0x16a] sm:$0xff]
    %v3116 = vld [vmem:[%s2314 + $0x172] sm:$0xff]
    %v3117 = vld [vmem:[%s2314 + $0x1b2] sm:$0xff]
    %v3118 = vld [vmem:[%s2314 + $0x1ba] sm:$0xff]
    %v3119 = vld [vmem:[%s2314 + $0x1ca] sm:$0xff]
    %v3120 = vld [vmem:[%s2314 + $0x1d2] sm:$0xff]
    %v3121 = vld [vmem:[%s2314 + $0x1e2] sm:$0xff]
    %v3122 = vld [vmem:[%s2314 + $0x1ea] sm:$0xff]
    %v3123 = vld [vmem:[%s2314 + $0x1fa] sm:$0xff]
    %v3124 = vld [vmem:[%s2314 + $0x202] sm:$0xff]
    %v3125 = vld [vmem:[%s2314 + $0x212] sm:$0xff]
    %v3126 = vld [vmem:[%s2314 + $0x21a] sm:$0xff]
    %v3127 = vld [vmem:[%s2314 + $0x22a] sm:$0xff]
    %v3128 = vld [vmem:[%s2314 + $0x232] sm:$0xff]
    %v3129 = vld [vmem:[%s2314 + $0x242] sm:$0xff]
    %v3130 = vld [vmem:[%s2314 + $0x24a] sm:$0xff]
    %v3131 = vld [vmem:[%s2314 + $0x25a] sm:$0xff]
    %v3132 = vld [vmem:[%s2314 + $0x262] sm:$0xff]
    %v3133 = vld [vmem:[%s2314 + $0x272] sm:$0xff]
    %v3134 = vld [vmem:[%s2314 + $0x27a] sm:$0xff]
    %v3135 = vld [vmem:[%s2314 + $0x28a] sm:$0xff]
    %v3136 = vld [vmem:[%s2314 + $0x292] sm:$0xff]
    %v3137 = vld [vmem:[%s2314 + $0x2a2] sm:$0xff]
    %v3138 = vld [vmem:[%s2314 + $0x2aa] sm:$0xff]
    %v3139 = vld [vmem:[%s2314 + $0x2ba] sm:$0xff]
    %v3140 = vld [vmem:[%s2314 + $0x2c2] sm:$0xff]
    %v3141 = vld [vmem:[%s2314 + $0x2d2] sm:$0xff]
    %v3142 = vld [vmem:[%s2314 + $0x2da] sm:$0xff]
    %v3143 = vld [vmem:[%s2314 + $0x2ea] sm:$0xff]
    %v3144 = vld [vmem:[%s2314 + $0x2f2] sm:$0xff]
    %v3145 = vld [vmem:[%s2314 + $0x302] sm:$0xff]
    %v3146 = vld [vmem:[%s2314 + $0x30a] sm:$0xff]
    %v3147 = vld [vmem:[%s2314 + $0x31a] sm:$0xff]
    %v3148 = vld [vmem:[%s2314 + $0x322] sm:$0xff]
    %3213 = vrot.lane.b32.xlu0 %v3085, 32
    %v3214 = vpop.permute.xlu0 %3213
    %3215 = vrot.lane.b32.xlu0 %v3086, 32
    %v3216 = vpop.permute.xlu0 %3215
    %3217 = vrot.lane.b32.xlu0 %v3087, 32
    %v3218 = vpop.permute.xlu0 %3217
    %3219 = vrot.lane.b32.xlu0 %v3088, 32
    %v3220 = vpop.permute.xlu0 %3219
    %3221 = vrot.lane.b32.xlu0 %v3089, 32
    %v3222 = vpop.permute.xlu0 %3221
    %3223 = vrot.lane.b32.xlu0 %v3090, 32
    %v3224 = vpop.permute.xlu0 %3223
    %3225 = vrot.lane.b32.xlu0 %v3091, 32
    %v3226 = vpop.permute.xlu0 %3225
    %3227 = vrot.lane.b32.xlu0 %v3092, 32
    %v3228 = vpop.permute.xlu0 %3227
    %3229 = vrot.lane.b32.xlu0 %v3093, 32
    %v3230 = vpop.permute.xlu0 %3229
    %3231 = vrot.lane.b32.xlu0 %v3094, 32
    %v3232 = vpop.permute.xlu0 %3231
    %3233 = vrot.lane.b32.xlu0 %v3095, 32
    %v3234 = vpop.permute.xlu0 %3233
    %3235 = vrot.lane.b32.xlu0 %v3096, 32
    %v3236 = vpop.permute.xlu0 %3235
    %3237 = vrot.lane.b32.xlu0 %v3097, 32
    %v3238 = vpop.permute.xlu0 %3237
    %3239 = vrot.lane.b32.xlu0 %v3098, 32
    %v3240 = vpop.permute.xlu0 %3239
    %3241 = vrot.lane.b32.xlu0 %v3099, 32
    %v3242 = vpop.permute.xlu0 %3241
    %3243 = vrot.lane.b32.xlu0 %v3100, 32
    %v3244 = vpop.permute.xlu0 %3243
    %3245 = vrot.lane.b32.xlu0 %v3101, 32
    %v3246 = vpop.permute.xlu0 %3245
    %3247 = vrot.lane.b32.xlu0 %v3102, 32
    %v3248 = vpop.permute.xlu0 %3247
    %3249 = vrot.lane.b32.xlu0 %v3103, 32
    %v3250 = vpop.permute.xlu0 %3249
    %3251 = vrot.lane.b32.xlu0 %v3104, 32
    %v3252 = vpop.permute.xlu0 %3251
    %3253 = vrot.lane.b32.xlu0 %v3105, 32
    %v3254 = vpop.permute.xlu0 %3253
    %3255 = vrot.lane.b32.xlu0 %v3106, 32
    %v3256 = vpop.permute.xlu0 %3255
    %3257 = vrot.lane.b32.xlu0 %v3107, 32
    %v3258 = vpop.permute.xlu0 %3257
    %3259 = vrot.lane.b32.xlu0 %v3108, 32
    %v3260 = vpop.permute.xlu0 %3259
    %3261 = vrot.lane.b32.xlu0 %v3109, 32
    %v3262 = vpop.permute.xlu0 %3261
    %3263 = vrot.lane.b32.xlu0 %v3110, 32
    %v3264 = vpop.permute.xlu0 %3263
    %3265 = vrot.lane.b32.xlu0 %v3111, 32
    %v3266 = vpop.permute.xlu0 %3265
    %3267 = vrot.lane.b32.xlu0 %v3112, 32
    %v3268 = vpop.permute.xlu0 %3267
    %3269 = vrot.lane.b32.xlu0 %v3113, 32
    %v3270 = vpop.permute.xlu0 %3269
    %3271 = vrot.lane.b32.xlu0 %v3114, 32
    %v3272 = vpop.permute.xlu0 %3271
    %3273 = vrot.lane.b32.xlu0 %v3115, 32
    %v3274 = vpop.permute.xlu0 %3273
    %3275 = vrot.lane.b32.xlu0 %v3116, 32
    %v3276 = vpop.permute.xlu0 %3275
    %3277 = vrot.lane.b32.xlu0 %v3117, 32
    %v3278 = vpop.permute.xlu0 %3277
    %3279 = vrot.lane.b32.xlu0 %v3118, 32
    %v3280 = vpop.permute.xlu0 %3279
    %3281 = vrot.lane.b32.xlu0 %v3119, 32
    %v3282 = vpop.permute.xlu0 %3281
    %3283 = vrot.lane.b32.xlu0 %v3120, 32
    %v3284 = vpop.permute.xlu0 %3283
    %3285 = vrot.lane.b32.xlu0 %v3121, 32
    %v3286 = vpop.permute.xlu0 %3285
    %3287 = vrot.lane.b32.xlu0 %v3122, 32
    %v3288 = vpop.permute.xlu0 %3287
    %3289 = vrot.lane.b32.xlu0 %v3123, 32
    %v3290 = vpop.permute.xlu0 %3289
    %3291 = vrot.lane.b32.xlu0 %v3124, 32
    %v3292 = vpop.permute.xlu0 %3291
    %3293 = vrot.lane.b32.xlu0 %v3125, 32
    %v3294 = vpop.permute.xlu0 %3293
    %3295 = vrot.lane.b32.xlu0 %v3126, 32
    %v3296 = vpop.permute.xlu0 %3295
    %3297 = vrot.lane.b32.xlu0 %v3127, 32
    %v3298 = vpop.permute.xlu0 %3297
    %3299 = vrot.lane.b32.xlu0 %v3128, 32
    %v3300 = vpop.permute.xlu0 %3299
    %3301 = vrot.lane.b32.xlu0 %v3129, 32
    %v3302 = vpop.permute.xlu0 %3301
    %3303 = vrot.lane.b32.xlu0 %v3130, 32
    %v3304 = vpop.permute.xlu0 %3303
    %3305 = vrot.lane.b32.xlu0 %v3131, 32
    %v3306 = vpop.permute.xlu0 %3305
    %3307 = vrot.lane.b32.xlu0 %v3132, 32
    %v3308 = vpop.permute.xlu0 %3307
    %3309 = vrot.lane.b32.xlu0 %v3133, 32
    %v3310 = vpop.permute.xlu0 %3309
    %3311 = vrot.lane.b32.xlu0 %v3134, 32
    %v3312 = vpop.permute.xlu0 %3311
    %3313 = vrot.lane.b32.xlu0 %v3135, 32
    %v3314 = vpop.permute.xlu0 %3313
    %3315 = vrot.lane.b32.xlu0 %v3136, 32
    %v3316 = vpop.permute.xlu0 %3315
    %3317 = vrot.lane.b32.xlu0 %v3137, 32
    %v3318 = vpop.permute.xlu0 %3317
    %3319 = vrot.lane.b32.xlu0 %v3138, 32
    %v3320 = vpop.permute.xlu0 %3319
    %3321 = vrot.lane.b32.xlu0 %v3139, 32
    %v3322 = vpop.permute.xlu0 %3321
    %3323 = vrot.lane.b32.xlu0 %v3140, 32
    %v3324 = vpop.permute.xlu0 %3323
    %3325 = vrot.lane.b32.xlu0 %v3141, 32
    %v3326 = vpop.permute.xlu0 %3325
    %3327 = vrot.lane.b32.xlu0 %v3142, 32
    %v3328 = vpop.permute.xlu0 %3327
    %3329 = vrot.lane.b32.xlu0 %v3143, 32
    %v3330 = vpop.permute.xlu0 %3329
    %3331 = vrot.lane.b32.xlu0 %v3144, 32
    %v3332 = vpop.permute.xlu0 %3331
    %3333 = vrot.lane.b32.xlu0 %v3145, 32
    %v3334 = vpop.permute.xlu0 %3333
    %3335 = vrot.lane.b32.xlu0 %v3146, 32
    %v3336 = vpop.permute.xlu0 %3335
    %3337 = vrot.lane.b32.xlu0 %v3147, 32
    %v3338 = vpop.permute.xlu0 %3337
    %3339 = vrot.lane.b32.xlu0 %v3148, 32
    %v3340 = vpop.permute.xlu0 %3339
    %vm3405 = vcmask 294144
    %3406 = vst.msk [vmem:[#allocation3] sm:$0xff] %vm3405, %v3214
    %3407 = vst.msk [vmem:[#allocation3 + $0x8] sm:$0xff] %vm3405, %v3216
    %3408 = vst.msk [vmem:[#allocation3 + $0x10] sm:$0xff] %vm3405, %v3218
    %3409 = vst.msk [vmem:[#allocation3 + $0x18] sm:$0xff] %vm3405, %v3220
    %3410 = vst.msk [vmem:[#allocation3 + $0x20] sm:$0xff] %vm3405, %v3222
    %3411 = vst.msk [vmem:[#allocation3 + $0x28] sm:$0xff] %vm3405, %v3224
    %3412 = vst.msk [vmem:[#allocation3 + $0x30] sm:$0xff] %vm3405, %v3226
    %3413 = vst.msk [vmem:[#allocation3 + $0x38] sm:$0xff] %vm3405, %v3228
    %3414 = vst.msk [vmem:[#allocation3 + $0x40] sm:$0xff] %vm3405, %v3230
    %3415 = vst.msk [vmem:[#allocation3 + $0x48] sm:$0xff] %vm3405, %v3232
    %3416 = vst.msk [vmem:[#allocation3 + $0x50] sm:$0xff] %vm3405, %v3234
    %3417 = vst.msk [vmem:[#allocation3 + $0x58] sm:$0xff] %vm3405, %v3236
    %3418 = vst.msk [vmem:[#allocation3 + $0x60] sm:$0xff] %vm3405, %v3238
    %3419 = vst.msk [vmem:[#allocation3 + $0x68] sm:$0xff] %vm3405, %v3240
    %3420 = vst.msk [vmem:[#allocation3 + $0x70] sm:$0xff] %vm3405, %v3242
    %3421 = vst.msk [vmem:[#allocation3 + $0x78] sm:$0xff] %vm3405, %v3244
    %3422 = vst.msk [vmem:[#allocation3 + $0x80] sm:$0xff] %vm3405, %v3246
    %3423 = vst.msk [vmem:[#allocation3 + $0x88] sm:$0xff] %vm3405, %v3248
    %3424 = vst.msk [vmem:[#allocation3 + $0x90] sm:$0xff] %vm3405, %v3250
    %3425 = vst.msk [vmem:[#allocation3 + $0x98] sm:$0xff] %vm3405, %v3252
    %3426 = vst.msk [vmem:[#allocation3 + $0xa0] sm:$0xff] %vm3405, %v3254
    %3427 = vst.msk [vmem:[#allocation3 + $0xa8] sm:$0xff] %vm3405, %v3256
    %3428 = vst.msk [vmem:[#allocation3 + $0xb0] sm:$0xff] %vm3405, %v3258
    %3429 = vst.msk [vmem:[#allocation3 + $0xb8] sm:$0xff] %vm3405, %v3260
    %3430 = vst.msk [vmem:[#allocation3 + $0xc0] sm:$0xff] %vm3405, %v3262
    %3431 = vst.msk [vmem:[#allocation3 + $0xc8] sm:$0xff] %vm3405, %v3264
    %3432 = vst.msk [vmem:[#allocation3 + $0xd0] sm:$0xff] %vm3405, %v3266
    %3433 = vst.msk [vmem:[#allocation3 + $0xd8] sm:$0xff] %vm3405, %v3268
    %3434 = vst.msk [vmem:[#allocation3 + $0xe0] sm:$0xff] %vm3405, %v3270
    %3435 = vst.msk [vmem:[#allocation3 + $0xe8] sm:$0xff] %vm3405, %v3272
    %3436 = vst.msk [vmem:[#allocation3 + $0xf0] sm:$0xff] %vm3405, %v3274
    %3437 = vst.msk [vmem:[#allocation3 + $0xf8] sm:$0xff] %vm3405, %v3276
    %3438 = vst.msk [vmem:[#allocation3 + $0x100] sm:$0xff] %vm3405, %v3278
    %3439 = vst.msk [vmem:[#allocation3 + $0x108] sm:$0xff] %vm3405, %v3280
    %3440 = vst.msk [vmem:[#allocation3 + $0x110] sm:$0xff] %vm3405, %v3282
    %3441 = vst.msk [vmem:[#allocation3 + $0x118] sm:$0xff] %vm3405, %v3284
    %3442 = vst.msk [vmem:[#allocation3 + $0x120] sm:$0xff] %vm3405, %v3286
    %3443 = vst.msk [vmem:[#allocation3 + $0x128] sm:$0xff] %vm3405, %v3288
    %3444 = vst.msk [vmem:[#allocation3 + $0x130] sm:$0xff] %vm3405, %v3290
    %3445 = vst.msk [vmem:[#allocation3 + $0x138] sm:$0xff] %vm3405, %v3292
    %3446 = vst.msk [vmem:[#allocation3 + $0x140] sm:$0xff] %vm3405, %v3294
    %3447 = vst.msk [vmem:[#allocation3 + $0x148] sm:$0xff] %vm3405, %v3296
    %3448 = vst.msk [vmem:[#allocation3 + $0x150] sm:$0xff] %vm3405, %v3298
    %3449 = vst.msk [vmem:[#allocation3 + $0x158] sm:$0xff] %vm3405, %v3300
    %3450 = vst.msk [vmem:[#allocation3 + $0x160] sm:$0xff] %vm3405, %v3302
    %3451 = vst.msk [vmem:[#allocation3 + $0x168] sm:$0xff] %vm3405, %v3304
    %3452 = vst.msk [vmem:[#allocation3 + $0x170] sm:$0xff] %vm3405, %v3306
    %3453 = vst.msk [vmem:[#allocation3 + $0x178] sm:$0xff] %vm3405, %v3308
    %3454 = vst.msk [vmem:[#allocation3 + $0x180] sm:$0xff] %vm3405, %v3310
    %3455 = vst.msk [vmem:[#allocation3 + $0x188] sm:$0xff] %vm3405, %v3312
    %3456 = vst.msk [vmem:[#allocation3 + $0x190] sm:$0xff] %vm3405, %v3314
    %3457 = vst.msk [vmem:[#allocation3 + $0x198] sm:$0xff] %vm3405, %v3316
    %3458 = vst.msk [vmem:[#allocation3 + $0x1a0] sm:$0xff] %vm3405, %v3318
    %3459 = vst.msk [vmem:[#allocation3 + $0x1a8] sm:$0xff] %vm3405, %v3320
    %3460 = vst.msk [vmem:[#allocation3 + $0x1b0] sm:$0xff] %vm3405, %v3322
    %3461 = vst.msk [vmem:[#allocation3 + $0x1b8] sm:$0xff] %vm3405, %v3324
    %3462 = vst.msk [vmem:[#allocation3 + $0x1c0] sm:$0xff] %vm3405, %v3326
    %3463 = vst.msk [vmem:[#allocation3 + $0x1c8] sm:$0xff] %vm3405, %v3328
    %3464 = vst.msk [vmem:[#allocation3 + $0x1d0] sm:$0xff] %vm3405, %v3330
    %3465 = vst.msk [vmem:[#allocation3 + $0x1d8] sm:$0xff] %vm3405, %v3332
    %3466 = vst.msk [vmem:[#allocation3 + $0x1e0] sm:$0xff] %vm3405, %v3334
    %3467 = vst.msk [vmem:[#allocation3 + $0x1e8] sm:$0xff] %vm3405, %v3336
    %3468 = vst.msk [vmem:[#allocation3 + $0x1f0] sm:$0xff] %vm3405, %v3338
    %3469 = vst.msk [vmem:[#allocation3 + $0x1f8] sm:$0xff] %vm3405, %v3340
    %v3470 = vld [vmem:[#allocation3] sm:$0xff]
    %v3471 = vld [vmem:[#allocation3 + $0x8] sm:$0xff]
    %v3472 = vld [vmem:[#allocation3 + $0x10] sm:$0xff]
    %v3473 = vld [vmem:[#allocation3 + $0x18] sm:$0xff]
    %v3474 = vld [vmem:[#allocation3 + $0x20] sm:$0xff]
    %v3475 = vld [vmem:[#allocation3 + $0x28] sm:$0xff]
    %v3476 = vld [vmem:[#allocation3 + $0x30] sm:$0xff]
    %v3477 = vld [vmem:[#allocation3 + $0x38] sm:$0xff]
    %v3478 = vld [vmem:[#allocation3 + $0x40] sm:$0xff]
    %v3479 = vld [vmem:[#allocation3 + $0x48] sm:$0xff]
    %v3480 = vld [vmem:[#allocation3 + $0x50] sm:$0xff]
    %v3481 = vld [vmem:[#allocation3 + $0x58] sm:$0xff]
    %v3482 = vld [vmem:[#allocation3 + $0x60] sm:$0xff]
    %v3483 = vld [vmem:[#allocation3 + $0x68] sm:$0xff]
    %v3484 = vld [vmem:[#allocation3 + $0x70] sm:$0xff]
    %v3485 = vld [vmem:[#allocation3 + $0x78] sm:$0xff]
    %v3486 = vld [vmem:[#allocation3 + $0x80] sm:$0xff]
    %v3487 = vld [vmem:[#allocation3 + $0x88] sm:$0xff]
    %v3488 = vld [vmem:[#allocation3 + $0x90] sm:$0xff]
    %v3489 = vld [vmem:[#allocation3 + $0x98] sm:$0xff]
    %v3490 = vld [vmem:[#allocation3 + $0xa0] sm:$0xff]
    %v3491 = vld [vmem:[#allocation3 + $0xa8] sm:$0xff]
    %v3492 = vld [vmem:[#allocation3 + $0xb0] sm:$0xff]
    %v3493 = vld [vmem:[#allocation3 + $0xb8] sm:$0xff]
    %v3494 = vld [vmem:[#allocation3 + $0xc0] sm:$0xff]
    %v3495 = vld [vmem:[#allocation3 + $0xc8] sm:$0xff]
    %v3496 = vld [vmem:[#allocation3 + $0xd0] sm:$0xff]
    %v3497 = vld [vmem:[#allocation3 + $0xd8] sm:$0xff]
    %v3498 = vld [vmem:[#allocation3 + $0xe0] sm:$0xff]
    %v3499 = vld [vmem:[#allocation3 + $0xe8] sm:$0xff]
    %v3500 = vld [vmem:[#allocation3 + $0xf0] sm:$0xff]
    %v3501 = vld [vmem:[#allocation3 + $0xf8] sm:$0xff]
    %v3502 = vld [vmem:[#allocation3 + $0x100] sm:$0xff]
    %v3503 = vld [vmem:[#allocation3 + $0x108] sm:$0xff]
    %v3504 = vld [vmem:[#allocation3 + $0x110] sm:$0xff]
    %v3505 = vld [vmem:[#allocation3 + $0x118] sm:$0xff]
    %v3506 = vld [vmem:[#allocation3 + $0x120] sm:$0xff]
    %v3507 = vld [vmem:[#allocation3 + $0x128] sm:$0xff]
    %v3508 = vld [vmem:[#allocation3 + $0x130] sm:$0xff]
    %v3509 = vld [vmem:[#allocation3 + $0x138] sm:$0xff]
    %v3510 = vld [vmem:[#allocation3 + $0x140] sm:$0xff]
    %v3511 = vld [vmem:[#allocation3 + $0x148] sm:$0xff]
    %v3512 = vld [vmem:[#allocation3 + $0x150] sm:$0xff]
    %v3513 = vld [vmem:[#allocation3 + $0x158] sm:$0xff]
    %v3514 = vld [vmem:[#allocation3 + $0x160] sm:$0xff]
    %v3515 = vld [vmem:[#allocation3 + $0x168] sm:$0xff]
    %v3516 = vld [vmem:[#allocation3 + $0x170] sm:$0xff]
    %v3517 = vld [vmem:[#allocation3 + $0x178] sm:$0xff]
    %v3518 = vld [vmem:[#allocation3 + $0x180] sm:$0xff]
    %v3519 = vld [vmem:[#allocation3 + $0x188] sm:$0xff]
    %v3520 = vld [vmem:[#allocation3 + $0x190] sm:$0xff]
    %v3521 = vld [vmem:[#allocation3 + $0x198] sm:$0xff]
    %v3522 = vld [vmem:[#allocation3 + $0x1a0] sm:$0xff]
    %v3523 = vld [vmem:[#allocation3 + $0x1a8] sm:$0xff]
    %v3524 = vld [vmem:[#allocation3 + $0x1b0] sm:$0xff]
    %v3525 = vld [vmem:[#allocation3 + $0x1b8] sm:$0xff]
    %v3526 = vld [vmem:[#allocation3 + $0x1c0] sm:$0xff]
    %v3527 = vld [vmem:[#allocation3 + $0x1c8] sm:$0xff]
    %v3528 = vld [vmem:[#allocation3 + $0x1d0] sm:$0xff]
    %v3529 = vld [vmem:[#allocation3 + $0x1d8] sm:$0xff]
    %v3530 = vld [vmem:[#allocation3 + $0x1e0] sm:$0xff]
    %v3531 = vld [vmem:[#allocation3 + $0x1e8] sm:$0xff]
    %v3532 = vld [vmem:[#allocation3 + $0x1f0] sm:$0xff]
    %v3533 = vld [vmem:[#allocation3 + $0x1f8] sm:$0xff]
    %v3534 = vpack.c.bf16 %v3471, %v3470
    %v3535 = vpack.c.bf16 %v3473, %v3472
    %v3536 = vpack.c.bf16 %v3475, %v3474
    %v3537 = vpack.c.bf16 %v3477, %v3476
    %v3538 = vpack.c.bf16 %v3479, %v3478
    %v3539 = vpack.c.bf16 %v3481, %v3480
    %v3540 = vpack.c.bf16 %v3483, %v3482
    %v3541 = vpack.c.bf16 %v3485, %v3484
    %v3542 = vpack.c.bf16 %v3487, %v3486
    %v3543 = vpack.c.bf16 %v3489, %v3488
    %v3544 = vpack.c.bf16 %v3491, %v3490
    %v3545 = vpack.c.bf16 %v3493, %v3492
    %v3546 = vpack.c.bf16 %v3495, %v3494
    %v3547 = vpack.c.bf16 %v3497, %v3496
    %v3548 = vpack.c.bf16 %v3499, %v3498
    %v3549 = vpack.c.bf16 %v3501, %v3500
    %v3550 = vpack.c.bf16 %v3503, %v3502
    %v3551 = vpack.c.bf16 %v3505, %v3504
    %v3552 = vpack.c.bf16 %v3507, %v3506
    %v3553 = vpack.c.bf16 %v3509, %v3508
    %v3554 = vpack.c.bf16 %v3511, %v3510
    %v3555 = vpack.c.bf16 %v3513, %v3512
    %v3556 = vpack.c.bf16 %v3515, %v3514
    %v3557 = vpack.c.bf16 %v3517, %v3516
    %v3558 = vpack.c.bf16 %v3519, %v3518
    %v3559 = vpack.c.bf16 %v3521, %v3520
    %v3560 = vpack.c.bf16 %v3523, %v3522
    %v3561 = vpack.c.bf16 %v3525, %v3524
    %v3562 = vpack.c.bf16 %v3527, %v3526
    %v3563 = vpack.c.bf16 %v3529, %v3528
    %v3564 = vpack.c.bf16 %v3531, %v3530
    %v3565 = vpack.c.bf16 %v3533, %v3532
    %v3566 = vld [vmem:[%s1] sm:$0xf]
    %v3567 = vld [vmem:[%s1 + $0x4] sm:$0xf]
    %v3568 = vld [vmem:[%s1 + $0x8] sm:$0xf]
    %v3569 = vld [vmem:[%s1 + $0xc] sm:$0xf]
    %v3570 = vld [vmem:[%s1 + $0x10] sm:$0x3]
    %v3571 = vld [vmem:[%s2] sm:$0x1]
    %v3573 = vlaneseq
    %v3574 = vshrl.u32 %v3573, 7
    %v3575 = vsub.s32 0, %v3574
    %v3576 = vrot.slane %v3571, %v3575
    %v3583 = vunpack.c.l.b16 %v3566
    %v3584 = vunpack.c.l.b16 %v3567
    %v3585 = vunpack.c.l.b16 %v3568
    %v3586 = vunpack.c.l.b16 %v3569
    %v3587 = vunpack.c.l.b16 %v3570
    %v3588 = vpack.c.b16 %v3584, %v3583
    %v3589 = vpack.c.b16 %v3586, %v3585
    %v3590 = vpack.c.b16 %v3587, %v3587
    %vm3593 = vcmask 293888
    %v3595 = vsel %vm3593, %v3534, 0
    %v3598 = vsel %vm3593, %v3535, 0
    %v3601 = vsel %vm3593, %v3536, 0
    %v3604 = vsel %vm3593, %v3537, 0
    %v3607 = vsel %vm3593, %v3538, 0
    %v3610 = vsel %vm3593, %v3539, 0
    %v3613 = vsel %vm3593, %v3540, 0
    %v3616 = vsel %vm3593, %v3541, 0
    %v3619 = vsel %vm3593, %v3542, 0
    %v3622 = vsel %vm3593, %v3543, 0
    %v3625 = vsel %vm3593, %v3544, 0
    %v3628 = vsel %vm3593, %v3545, 0
    %v3631 = vsel %vm3593, %v3546, 0
    %v3634 = vsel %vm3593, %v3547, 0
    %v3637 = vsel %vm3593, %v3548, 0
    %v3640 = vsel %vm3593, %v3549, 0
    %v3643 = vsel %vm3593, %v3550, 0
    %v3646 = vsel %vm3593, %v3551, 0
    %v3649 = vsel %vm3593, %v3552, 0
    %v3652 = vsel %vm3593, %v3553, 0
    %v3655 = vsel %vm3593, %v3554, 0
    %v3658 = vsel %vm3593, %v3555, 0
    %v3661 = vsel %vm3593, %v3556, 0
    %v3664 = vsel %vm3593, %v3557, 0
    %v3667 = vsel %vm3593, %v3558, 0
    %v3670 = vsel %vm3593, %v3559, 0
    %v3673 = vsel %vm3593, %v3560, 0
    %v3676 = vsel %vm3593, %v3561, 0
    %v3679 = vsel %vm3593, %v3562, 0
    %v3682 = vsel %vm3593, %v3563, 0
    %v3685 = vsel %vm3593, %v3564, 0
    %v3688 = vsel %vm3593, %v3565, 0
    %vm3690 = vcmask 1041408
    %v3692 = vsel %vm3690, %v3590, 0
    %3694 = vmatprep.subr.bf16.mxu0 0
    %3695 = vmatpush1.bf16.msra.mxu0 %v3588
    %3696 = vmatprep.subr.bf16.mxu0 0
    %3697 = vmatpush1.bf16.msra.mxu0 %v3589
    %3698 = vmatprep.subr.bf16.mxu0 0
    %3699 = vmatpush1.bf16.msra.mxu0 %v3692
    %3700 = vmatprep.subr.bf16.mxu0 0
    %3701 = vmatpush1.bf16.msra.mxu0 0
    %3702 = vmatprep.subr.bf16.mxu0 0
    %3703 = vmatpush1.bf16.msra.mxu0 0
    %3704 = vmatprep.subr.bf16.mxu0 0
    %3705 = vmatpush1.bf16.msra.mxu0 0
    %3706 = vmatprep.subr.bf16.mxu0 0
    %3707 = vmatpush1.bf16.msra.mxu0 0
    %3708 = vmatprep.subr.bf16.mxu0 0
    %3709 = vmatpush1.bf16.msra.mxu0 0
    %3710 = vmatprep.subr.bf16.mxu0 0
    %3711 = vmatpush1.bf16.msra.mxu0 0
    %3712 = vmatprep.subr.bf16.mxu0 0
    %3713 = vmatpush1.bf16.msra.mxu0 0
    %3714 = vmatprep.subr.bf16.mxu0 0
    %3715 = vmatpush1.bf16.msra.mxu0 0
    %3716 = vmatprep.subr.bf16.mxu0 0
    %3717 = vmatpush1.bf16.msra.mxu0 0
    %3718 = vmatprep.subr.bf16.mxu0 0
    %3719 = vmatpush1.bf16.msra.mxu0 0
    %3720 = vmatprep.subr.bf16.mxu0 0
    %3721 = vmatpush1.bf16.msra.mxu0 0
    %3722 = vmatprep.subr.bf16.mxu0 0
    %3723 = vmatpush1.bf16.msra.mxu0 0
    %3724 = vmatprep.subr.bf16.mxu0 0
    %3725 = vmatpush1.bf16.msra.mxu0 0
    %3726 = vmatprep.mubr.bf16.mxu0 0
    %3727 = vmatmul.mubr.bf16.gmra.mrb[0].mxu0 %v3595
    %v3728 = vpop.f32.mrb[0].mxu0
    %v3729 = vadd.f32 %v3576, %v3728
    %v3730 = vpop.f32.mrb[0].mxu0
    %v3731 = vpop.f32.mrb[0].mxu0
    %v3732 = vadd.f32 %v3576, %v3731
    %v3733 = vpop.f32.mrb[0].mxu0
    %3734 = vmatprep.mubr.bf16.mxu0 0
    %3735 = vmatmul.mubr.bf16.gmra.mrb[0].mxu0 %v3598
    %v3736 = vpop.f32.mrb[0].mxu0
    %v3737 = vadd.f32 %v3576, %v3736
    %v3738 = vpop.f32.mrb[0].mxu0
    %v3739 = vpop.f32.mrb[0].mxu0
    %v3740 = vadd.f32 %v3576, %v3739
    %v3741 = vpop.f32.mrb[0].mxu0
    %3742 = vmatprep.mubr.bf16.mxu0 0
    %3743 = vmatmul.mubr.bf16.gmra.mrb[0].mxu0 %v3601
    %v3744 = vpop.f32.mrb[0].mxu0
    %v3745 = vadd.f32 %v3576, %v3744
    %v3746 = vpop.f32.mrb[0].mxu0
    %v3747 = vpop.f32.mrb[0].mxu0
    %v3748 = vadd.f32 %v3576, %v3747
    %v3749 = vpop.f32.mrb[0].mxu0
    %3750 = vmatprep.mubr.bf16.mxu0 0
    %3751 = vmatmul.mubr.bf16.gmra.mrb[0].mxu0 %v3604
    %v3752 = vpop.f32.mrb[0].mxu0
    %v3753 = vadd.f32 %v3576, %v3752
    %v3754 = vpop.f32.mrb[0].mxu0
    %v3755 = vpop.f32.mrb[0].mxu0
    %v3756 = vadd.f32 %v3576, %v3755
    %v3757 = vpop.f32.mrb[0].mxu0
    %3758 = vmatprep.mubr.bf16.mxu0 0
    %3759 = vmatmul.mubr.bf16.gmra.mrb[0].mxu0 %v3607
    %v3760 = vpop.f32.mrb[0].mxu0
    %v3761 = vadd.f32 %v3576, %v3760
    %v3762 = vpop.f32.mrb[0].mxu0
    %v3763 = vpop.f32.mrb[0].mxu0
    %v3764 = vadd.f32 %v3576, %v3763
    %v3765 = vpop.f32.mrb[0].mxu0
    %3766 = vmatprep.mubr.bf16.mxu0 0
    %3767 = vmatmul.mubr.bf16.gmra.mrb[0].mxu0 %v3610
    %v3768 = vpop.f32.mrb[0].mxu0
    %v3769 = vadd.f32 %v3576, %v3768
    %v3770 = vpop.f32.mrb[0].mxu0
    %v3771 = vpop.f32.mrb[0].mxu0
    %v3772 = vadd.f32 %v3576, %v3771
    %v3773 = vpop.f32.mrb[0].mxu0
    %3774 = vmatprep.mubr.bf16.mxu0 0
    %3775 = vmatmul.mubr.bf16.gmra.mrb[0].mxu0 %v3613
    %v3776 = vpop.f32.mrb[0].mxu0
    %v3777 = vadd.f32 %v3576, %v3776
    %v3778 = vpop.f32.mrb[0].mxu0
    %v3779 = vpop.f32.mrb[0].mxu0
    %v3780 = vadd.f32 %v3576, %v3779
    %v3781 = vpop.f32.mrb[0].mxu0
    %3782 = vmatprep.mubr.bf16.mxu0 0
    %3783 = vmatmul.mubr.bf16.gmra.mrb[0].mxu0 %v3616
    %v3784 = vpop.f32.mrb[0].mxu0
    %v3785 = vadd.f32 %v3576, %v3784
    %v3786 = vpop.f32.mrb[0].mxu0
    %v3787 = vpop.f32.mrb[0].mxu0
    %v3788 = vadd.f32 %v3576, %v3787
    %v3789 = vpop.f32.mrb[0].mxu0
    %3790 = vmatprep.mubr.bf16.mxu0 0
    %3791 = vmatmul.mubr.bf16.gmra.mrb[0].mxu0 %v3619
    %v3792 = vpop.f32.mrb[0].mxu0
    %v3793 = vadd.f32 %v3576, %v3792
    %v3794 = vpop.f32.mrb[0].mxu0
    %v3795 = vpop.f32.mrb[0].mxu0
    %v3796 = vadd.f32 %v3576, %v3795
    %v3797 = vpop.f32.mrb[0].mxu0
    %3798 = vmatprep.mubr.bf16.mxu0 0
    %3799 = vmatmul.mubr.bf16.gmra.mrb[0].mxu0 %v3622
    %v3800 = vpop.f32.mrb[0].mxu0
    %v3801 = vadd.f32 %v3576, %v3800
    %v3802 = vpop.f32.mrb[0].mxu0
    %v3803 = vpop.f32.mrb[0].mxu0
    %v3804 = vadd.f32 %v3576, %v3803
    %v3805 = vpop.f32.mrb[0].mxu0
    %3806 = vmatprep.mubr.bf16.mxu0 0
    %3807 = vmatmul.mubr.bf16.gmra.mrb[0].mxu0 %v3625
    %v3808 = vpop.f32.mrb[0].mxu0
    %v3809 = vadd.f32 %v3576, %v3808
    %v3810 = vpop.f32.mrb[0].mxu0
    %v3811 = vpop.f32.mrb[0].mxu0
    %v3812 = vadd.f32 %v3576, %v3811
    %v3813 = vpop.f32.mrb[0].mxu0
    %3814 = vmatprep.mubr.bf16.mxu0 0
    %3815 = vmatmul.mubr.bf16.gmra.mrb[0].mxu0 %v3628
    %v3816 = vpop.f32.mrb[0].mxu0
    %v3817 = vadd.f32 %v3576, %v3816
    %v3818 = vpop.f32.mrb[0].mxu0
    %v3819 = vpop.f32.mrb[0].mxu0
    %v3820 = vadd.f32 %v3576, %v3819
    %v3821 = vpop.f32.mrb[0].mxu0
    %3822 = vmatprep.mubr.bf16.mxu0 0
    %3823 = vmatmul.mubr.bf16.gmra.mrb[0].mxu0 %v3631
    %v3824 = vpop.f32.mrb[0].mxu0
    %v3825 = vadd.f32 %v3576, %v3824
    %v3826 = vpop.f32.mrb[0].mxu0
    %v3827 = vpop.f32.mrb[0].mxu0
    %v3828 = vadd.f32 %v3576, %v3827
    %v3829 = vpop.f32.mrb[0].mxu0
    %3830 = vmatprep.mubr.bf16.mxu0 0
    %3831 = vmatmul.mubr.bf16.gmra.mrb[0].mxu0 %v3634
    %v3832 = vpop.f32.mrb[0].mxu0
    %v3833 = vadd.f32 %v3576, %v3832
    %v3834 = vpop.f32.mrb[0].mxu0
    %v3835 = vpop.f32.mrb[0].mxu0
    %v3836 = vadd.f32 %v3576, %v3835
    %v3837 = vpop.f32.mrb[0].mxu0
    %3838 = vmatprep.mubr.bf16.mxu0 0
    %3839 = vmatmul.mubr.bf16.gmra.mrb[0].mxu0 %v3637
    %v3840 = vpop.f32.mrb[0].mxu0
    %v3841 = vadd.f32 %v3576, %v3840
    %v3842 = vpop.f32.mrb[0].mxu0
    %v3843 = vpop.f32.mrb[0].mxu0
    %v3844 = vadd.f32 %v3576, %v3843
    %v3845 = vpop.f32.mrb[0].mxu0
    %3846 = vmatprep.mubr.bf16.mxu0 0
    %3847 = vmatmul.mubr.bf16.gmra.mrb[0].mxu0 %v3640
    %v3848 = vpop.f32.mrb[0].mxu0
    %v3849 = vadd.f32 %v3576, %v3848
    %v3850 = vpop.f32.mrb[0].mxu0
    %v3851 = vpop.f32.mrb[0].mxu0
    %v3852 = vadd.f32 %v3576, %v3851
    %v3853 = vpop.f32.mrb[0].mxu0
    %3854 = vmatprep.mubr.bf16.mxu0 0
    %3855 = vmatmul.mubr.bf16.gmra.mrb[0].mxu0 %v3643
    %v3856 = vpop.f32.mrb[0].mxu0
    %v3857 = vadd.f32 %v3576, %v3856
    %v3858 = vpop.f32.mrb[0].mxu0
    %v3859 = vpop.f32.mrb[0].mxu0
    %v3860 = vadd.f32 %v3576, %v3859
    %v3861 = vpop.f32.mrb[0].mxu0
    %3862 = vmatprep.mubr.bf16.mxu0 0
    %3863 = vmatmul.mubr.bf16.gmra.mrb[0].mxu0 %v3646
    %v3864 = vpop.f32.mrb[0].mxu0
    %v3865 = vadd.f32 %v3576, %v3864
    %v3866 = vpop.f32.mrb[0].mxu0
    %v3867 = vpop.f32.mrb[0].mxu0
    %v3868 = vadd.f32 %v3576, %v3867
    %v3869 = vpop.f32.mrb[0].mxu0
    %3870 = vmatprep.mubr.bf16.mxu0 0
    %3871 = vmatmul.mubr.bf16.gmra.mrb[0].mxu0 %v3649
    %v3872 = vpop.f32.mrb[0].mxu0
    %v3873 = vadd.f32 %v3576, %v3872
    %v3874 = vpop.f32.mrb[0].mxu0
    %v3875 = vpop.f32.mrb[0].mxu0
    %v3876 = vadd.f32 %v3576, %v3875
    %v3877 = vpop.f32.mrb[0].mxu0
    %3878 = vmatprep.mubr.bf16.mxu0 0
    %3879 = vmatmul.mubr.bf16.gmra.mrb[0].mxu0 %v3652
    %v3880 = vpop.f32.mrb[0].mxu0
    %v3881 = vadd.f32 %v3576, %v3880
    %v3882 = vpop.f32.mrb[0].mxu0
    %v3883 = vpop.f32.mrb[0].mxu0
    %v3884 = vadd.f32 %v3576, %v3883
    %v3885 = vpop.f32.mrb[0].mxu0
    %3886 = vmatprep.mubr.bf16.mxu0 0
    %3887 = vmatmul.mubr.bf16.gmra.mrb[0].mxu0 %v3655
    %v3888 = vpop.f32.mrb[0].mxu0
    %v3889 = vadd.f32 %v3576, %v3888
    %v3890 = vpop.f32.mrb[0].mxu0
    %v3891 = vpop.f32.mrb[0].mxu0
    %v3892 = vadd.f32 %v3576, %v3891
    %v3893 = vpop.f32.mrb[0].mxu0
    %3894 = vmatprep.mubr.bf16.mxu0 0
    %3895 = vmatmul.mubr.bf16.gmra.mrb[0].mxu0 %v3658
    %v3896 = vpop.f32.mrb[0].mxu0
    %v3897 = vadd.f32 %v3576, %v3896
    %v3898 = vpop.f32.mrb[0].mxu0
    %v3899 = vpop.f32.mrb[0].mxu0
    %v3900 = vadd.f32 %v3576, %v3899
    %v3901 = vpop.f32.mrb[0].mxu0
    %3902 = vmatprep.mubr.bf16.mxu0 0
    %3903 = vmatmul.mubr.bf16.gmra.mrb[0].mxu0 %v3661
    %v3904 = vpop.f32.mrb[0].mxu0
    %v3905 = vadd.f32 %v3576, %v3904
    %v3906 = vpop.f32.mrb[0].mxu0
    %v3907 = vpop.f32.mrb[0].mxu0
    %v3908 = vadd.f32 %v3576, %v3907
    %v3909 = vpop.f32.mrb[0].mxu0
    %3910 = vmatprep.mubr.bf16.mxu0 0
    %3911 = vmatmul.mubr.bf16.gmra.mrb[0].mxu0 %v3664
    %v3912 = vpop.f32.mrb[0].mxu0
    %v3913 = vadd.f32 %v3576, %v3912
    %v3914 = vpop.f32.mrb[0].mxu0
    %v3915 = vpop.f32.mrb[0].mxu0
    %v3916 = vadd.f32 %v3576, %v3915
    %v3917 = vpop.f32.mrb[0].mxu0
    %3918 = vmatprep.mubr.bf16.mxu0 0
    %3919 = vmatmul.mubr.bf16.gmra.mrb[0].mxu0 %v3667
    %v3920 = vpop.f32.mrb[0].mxu0
    %v3921 = vadd.f32 %v3576, %v3920
    %v3922 = vpop.f32.mrb[0].mxu0
    %v3923 = vpop.f32.mrb[0].mxu0
    %v3924 = vadd.f32 %v3576, %v3923
    %v3925 = vpop.f32.mrb[0].mxu0
    %3926 = vmatprep.mubr.bf16.mxu0 0
    %3927 = vmatmul.mubr.bf16.gmra.mrb[0].mxu0 %v3670
    %v3928 = vpop.f32.mrb[0].mxu0
    %v3929 = vadd.f32 %v3576, %v3928
    %v3930 = vpop.f32.mrb[0].mxu0
    %v3931 = vpop.f32.mrb[0].mxu0
    %v3932 = vadd.f32 %v3576, %v3931
    %v3933 = vpop.f32.mrb[0].mxu0
    %3934 = vmatprep.mubr.bf16.mxu0 0
    %3935 = vmatmul.mubr.bf16.gmra.mrb[0].mxu0 %v3673
    %v3936 = vpop.f32.mrb[0].mxu0
    %v3937 = vadd.f32 %v3576, %v3936
    %v3938 = vpop.f32.mrb[0].mxu0
    %v3939 = vpop.f32.mrb[0].mxu0
    %v3940 = vadd.f32 %v3576, %v3939
    %v3941 = vpop.f32.mrb[0].mxu0
    %3942 = vmatprep.mubr.bf16.mxu0 0
    %3943 = vmatmul.mubr.bf16.gmra.mrb[0].mxu0 %v3676
    %v3944 = vpop.f32.mrb[0].mxu0
    %v3945 = vadd.f32 %v3576, %v3944
    %v3946 = vpop.f32.mrb[0].mxu0
    %v3947 = vpop.f32.mrb[0].mxu0
    %v3948 = vadd.f32 %v3576, %v3947
    %v3949 = vpop.f32.mrb[0].mxu0
    %3950 = vmatprep.mubr.bf16.mxu0 0
    %3951 = vmatmul.mubr.bf16.gmra.mrb[0].mxu0 %v3679
    %v3952 = vpop.f32.mrb[0].mxu0
    %v3953 = vadd.f32 %v3576, %v3952
    %v3954 = vpop.f32.mrb[0].mxu0
    %v3955 = vpop.f32.mrb[0].mxu0
    %v3956 = vadd.f32 %v3576, %v3955
    %v3957 = vpop.f32.mrb[0].mxu0
    %3958 = vmatprep.mubr.bf16.mxu0 0
    %3959 = vmatmul.mubr.bf16.gmra.mrb[0].mxu0 %v3682
    %v3960 = vpop.f32.mrb[0].mxu0
    %v3961 = vadd.f32 %v3576, %v3960
    %v3962 = vpop.f32.mrb[0].mxu0
    %v3963 = vpop.f32.mrb[0].mxu0
    %v3964 = vadd.f32 %v3576, %v3963
    %v3965 = vpop.f32.mrb[0].mxu0
    %3966 = vmatprep.mubr.bf16.mxu0 0
    %3967 = vmatmul.mubr.bf16.gmra.mrb[0].mxu0 %v3685
    %v3968 = vpop.f32.mrb[0].mxu0
    %v3969 = vadd.f32 %v3576, %v3968
    %v3970 = vpop.f32.mrb[0].mxu0
    %v3971 = vpop.f32.mrb[0].mxu0
    %v3972 = vadd.f32 %v3576, %v3971
    %v3973 = vpop.f32.mrb[0].mxu0
    %3974 = vmatprep.mubr.bf16.mxu0 0
    %3975 = vmatmul.mubr.bf16.gmra.mrb[0].mxu0 %v3688
    %v3976 = vpop.f32.mrb[0].mxu0
    %v3977 = vadd.f32 %v3576, %v3976
    %v3978 = vpop.f32.mrb[0].mxu0
    %v3979 = vpop.f32.mrb[0].mxu0
    %v3980 = vadd.f32 %v3576, %v3979
    %v3981 = vpop.f32.mrb[0].mxu0
    %3982 = vdwg.mxu0
    %v3983 = vadd.f32 %v3729, %v3732
    %v3984 = vadd.f32 %v3983, %v3737
    %v3985 = vadd.f32 %v3984, %v3740
    %v3986 = vadd.f32 %v3985, %v3745
    %v3987 = vadd.f32 %v3986, %v3748
    %v3988 = vadd.f32 %v3987, %v3753
    %v3989 = vadd.f32 %v3988, %v3756
    %v3990 = vadd.f32 %v3989, %v3761
    %v3991 = vadd.f32 %v3990, %v3764
    %v3992 = vadd.f32 %v3991, %v3769
    %v3993 = vadd.f32 %v3992, %v3772
    %v3994 = vadd.f32 %v3993, %v3777
    %v3995 = vadd.f32 %v3994, %v3780
    %v3996 = vadd.f32 %v3995, %v3785
    %v3997 = vadd.f32 %v3996, %v3788
    %v3998 = vadd.f32 %v3997, %v3793
    %v3999 = vadd.f32 %v3998, %v3796
    %v4000 = vadd.f32 %v3999, %v3801
    %v4001 = vadd.f32 %v4000, %v3804
    %v4002 = vadd.f32 %v4001, %v3809
    %v4003 = vadd.f32 %v4002, %v3812
    %v4004 = vadd.f32 %v4003, %v3817
    %v4005 = vadd.f32 %v4004, %v3820
    %v4006 = vadd.f32 %v4005, %v3825
    %v4007 = vadd.f32 %v4006, %v3828
    %v4008 = vadd.f32 %v4007, %v3833
    %v4009 = vadd.f32 %v4008, %v3836
    %v4010 = vadd.f32 %v4009, %v3841
    %v4011 = vadd.f32 %v4010, %v3844
    %v4012 = vadd.f32 %v4011, %v3849
    %v4013 = vadd.f32 %v4012, %v3852
    %v4014 = vadd.f32 %v4013, %v3857
    %v4015 = vadd.f32 %v4014, %v3860
    %v4016 = vadd.f32 %v4015, %v3865
    %v4017 = vadd.f32 %v4016, %v3868
    %v4018 = vadd.f32 %v4017, %v3873
    %v4019 = vadd.f32 %v4018, %v3876
    %v4020 = vadd.f32 %v4019, %v3881
    %v4021 = vadd.f32 %v4020, %v3884
    %v4022 = vadd.f32 %v4021, %v3889
    %v4023 = vadd.f32 %v4022, %v3892
    %v4024 = vadd.f32 %v4023, %v3897
    %v4025 = vadd.f32 %v4024, %v3900
    %v4026 = vadd.f32 %v4025, %v3905
    %v4027 = vadd.f32 %v4026, %v3908
    %v4028 = vadd.f32 %v4027, %v3913
    %v4029 = vadd.f32 %v4028, %v3916
    %v4030 = vadd.f32 %v4029, %v3921
    %v4031 = vadd.f32 %v4030, %v3924
    %v4032 = vadd.f32 %v4031, %v3929
    %v4033 = vadd.f32 %v4032, %v3932
    %v4034 = vadd.f32 %v4033, %v3937
    %v4035 = vadd.f32 %v4034, %v3940
    %v4036 = vadd.f32 %v4035, %v3945
    %v4037 = vadd.f32 %v4036, %v3948
    %v4038 = vadd.f32 %v4037, %v3953
    %v4039 = vadd.f32 %v4038, %v3956
    %v4040 = vadd.f32 %v4039, %v3961
    %v4041 = vadd.f32 %v4040, %v3964
    %v4042 = vadd.f32 %v4041, %v3969
    %v4043 = vadd.f32 %v4042, %v3972
    %v4044 = vadd.f32 %v4043, %v3977
    %v4045 = vadd.f32 %v4044, %v3980
    %v4046 = vrot.slane %v4045, 4
    %v4047 = vadd.f32 %v4045, %v4046
    %v4048 = vrot.slane %v4047, 2
    %v4049 = vadd.f32 %v4047, %v4048
    %v4050 = vrot.slane %v4049, 1
    %v4051 = vadd.f32 %v4049, %v4050
    %v4052 = vmul.f32 %v4051, 0.001953125
    %v4053 = vsub.f32 %v3729, %v4052
    %v4054 = vsub.f32 %v3732, %v4052
    %v4055 = vsub.f32 %v3737, %v4052
    %v4056 = vsub.f32 %v3740, %v4052
    %v4057 = vsub.f32 %v3745, %v4052
    %v4058 = vsub.f32 %v3748, %v4052
    %v4059 = vsub.f32 %v3753, %v4052
    %v4060 = vsub.f32 %v3756, %v4052
    %v4061 = vsub.f32 %v3761, %v4052
    %v4062 = vsub.f32 %v3764, %v4052
    %v4063 = vsub.f32 %v3769, %v4052
    %v4064 = vsub.f32 %v3772, %v4052
    %v4065 = vsub.f32 %v3777, %v4052
    %v4066 = vsub.f32 %v3780, %v4052
    %v4067 = vsub.f32 %v3785, %v4052
    %v4068 = vsub.f32 %v3788, %v4052
    %v4069 = vsub.f32 %v3793, %v4052
    %v4070 = vsub.f32 %v3796, %v4052
    %v4071 = vsub.f32 %v3801, %v4052
    %v4072 = vsub.f32 %v3804, %v4052
    %v4073 = vsub.f32 %v3809, %v4052
    %v4074 = vsub.f32 %v3812, %v4052
    %v4075 = vsub.f32 %v3817, %v4052
    %v4076 = vsub.f32 %v3820, %v4052
    %v4077 = vsub.f32 %v3825, %v4052
    %v4078 = vsub.f32 %v3828, %v4052
    %v4079 = vsub.f32 %v3833, %v4052
    %v4080 = vsub.f32 %v3836, %v4052
    %v4081 = vsub.f32 %v3841, %v4052
    %v4082 = vsub.f32 %v3844, %v4052
    %v4083 = vsub.f32 %v3849, %v4052
    %v4084 = vsub.f32 %v3852, %v4052
    %v4085 = vsub.f32 %v3857, %v4052
    %v4086 = vsub.f32 %v3860, %v4052
    %v4087 = vsub.f32 %v3865, %v4052
    %v4088 = vsub.f32 %v3868, %v4052
    %v4089 = vsub.f32 %v3873, %v4052
    %v4090 = vsub.f32 %v3876, %v4052
    %v4091 = vsub.f32 %v3881, %v4052
    %v4092 = vsub.f32 %v3884, %v4052
    %v4093 = vsub.f32 %v3889, %v4052
    %v4094 = vsub.f32 %v3892, %v4052
    %v4095 = vsub.f32 %v3897, %v4052
    %v4096 = vsub.f32 %v3900, %v4052
    %v4097 = vsub.f32 %v3905, %v4052
    %v4098 = vsub.f32 %v3908, %v4052
    %v4099 = vsub.f32 %v3913, %v4052
    %v4100 = vsub.f32 %v3916, %v4052
    %v4101 = vsub.f32 %v3921, %v4052
    %v4102 = vsub.f32 %v3924, %v4052
    %v4103 = vsub.f32 %v3929, %v4052
    %v4104 = vsub.f32 %v3932, %v4052
    %v4105 = vsub.f32 %v3937, %v4052
    %v4106 = vsub.f32 %v3940, %v4052
    %v4107 = vsub.f32 %v3945, %v4052
    %v4108 = vsub.f32 %v3948, %v4052
    %v4109 = vsub.f32 %v3953, %v4052
    %v4110 = vsub.f32 %v3956, %v4052
    %v4111 = vsub.f32 %v3961, %v4052
    %v4112 = vsub.f32 %v3964, %v4052
    %v4113 = vsub.f32 %v3969, %v4052
    %v4114 = vsub.f32 %v3972, %v4052
    %v4115 = vsub.f32 %v3977, %v4052
    %v4116 = vsub.f32 %v3980, %v4052
    %v4117 = vmul.f32 %v4053, %v4053
    %v4118 = vmul.f32 %v4054, %v4054
    %v4119 = vmul.f32 %v4055, %v4055
    %v4120 = vmul.f32 %v4056, %v4056
    %v4121 = vmul.f32 %v4057, %v4057
    %v4122 = vmul.f32 %v4058, %v4058
    %v4123 = vmul.f32 %v4059, %v4059
    %v4124 = vmul.f32 %v4060, %v4060
    %v4125 = vmul.f32 %v4061, %v4061
    %v4126 = vmul.f32 %v4062, %v4062
    %v4127 = vmul.f32 %v4063, %v4063
    %v4128 = vmul.f32 %v4064, %v4064
    %v4129 = vmul.f32 %v4065, %v4065
    %v4130 = vmul.f32 %v4066, %v4066
    %v4131 = vmul.f32 %v4067, %v4067
    %v4132 = vmul.f32 %v4068, %v4068
    %v4133 = vmul.f32 %v4069, %v4069
    %v4134 = vmul.f32 %v4070, %v4070
    %v4135 = vmul.f32 %v4071, %v4071
    %v4136 = vmul.f32 %v4072, %v4072
    %v4137 = vmul.f32 %v4073, %v4073
    %v4138 = vmul.f32 %v4074, %v4074
    %v4139 = vmul.f32 %v4075, %v4075
    %v4140 = vmul.f32 %v4076, %v4076
    %v4141 = vmul.f32 %v4077, %v4077
    %v4142 = vmul.f32 %v4078, %v4078
    %v4143 = vmul.f32 %v4079, %v4079
    %v4144 = vmul.f32 %v4080, %v4080
    %v4145 = vmul.f32 %v4081, %v4081
    %v4146 = vmul.f32 %v4082, %v4082
    %v4147 = vmul.f32 %v4083, %v4083
    %v4148 = vmul.f32 %v4084, %v4084
    %v4149 = vmul.f32 %v4085, %v4085
    %v4150 = vmul.f32 %v4086, %v4086
    %v4151 = vmul.f32 %v4087, %v4087
    %v4152 = vmul.f32 %v4088, %v4088
    %v4153 = vmul.f32 %v4089, %v4089
    %v4154 = vmul.f32 %v4090, %v4090
    %v4155 = vmul.f32 %v4091, %v4091
    %v4156 = vmul.f32 %v4092, %v4092
    %v4157 = vmul.f32 %v4093, %v4093
    %v4158 = vmul.f32 %v4094, %v4094
    %v4159 = vmul.f32 %v4095, %v4095
    %v4160 = vmul.f32 %v4096, %v4096
    %v4161 = vmul.f32 %v4097, %v4097
    %v4162 = vmul.f32 %v4098, %v4098
    %v4163 = vmul.f32 %v4099, %v4099
    %v4164 = vmul.f32 %v4100, %v4100
    %v4165 = vmul.f32 %v4101, %v4101
    %v4166 = vmul.f32 %v4102, %v4102
    %v4167 = vmul.f32 %v4103, %v4103
    %v4168 = vmul.f32 %v4104, %v4104
    %v4169 = vmul.f32 %v4105, %v4105
    %v4170 = vmul.f32 %v4106, %v4106
    %v4171 = vmul.f32 %v4107, %v4107
    %v4172 = vmul.f32 %v4108, %v4108
    %v4173 = vmul.f32 %v4109, %v4109
    %v4174 = vmul.f32 %v4110, %v4110
    %v4175 = vmul.f32 %v4111, %v4111
    %v4176 = vmul.f32 %v4112, %v4112
    %v4177 = vmul.f32 %v4113, %v4113
    %v4178 = vmul.f32 %v4114, %v4114
    %v4179 = vmul.f32 %v4115, %v4115
    %v4180 = vmul.f32 %v4116, %v4116
    %v4181 = vadd.f32 %v4117, %v4118
    %v4182 = vadd.f32 %v4181, %v4119
    %v4183 = vadd.f32 %v4182, %v4120
    %v4184 = vadd.f32 %v4183, %v4121
    %v4185 = vadd.f32 %v4184, %v4122
    %v4186 = vadd.f32 %v4185, %v4123
    %v4187 = vadd.f32 %v4186, %v4124
    %v4188 = vadd.f32 %v4187, %v4125
    %v4189 = vadd.f32 %v4188, %v4126
    %v4190 = vadd.f32 %v4189, %v4127
    %v4191 = vadd.f32 %v4190, %v4128
    %v4192 = vadd.f32 %v4191, %v4129
    %v4193 = vadd.f32 %v4192, %v4130
    %v4194 = vadd.f32 %v4193, %v4131
    %v4195 = vadd.f32 %v4194, %v4132
    %v4196 = vadd.f32 %v4195, %v4133
    %v4197 = vadd.f32 %v4196, %v4134
    %v4198 = vadd.f32 %v4197, %v4135
    %v4199 = vadd.f32 %v4198, %v4136
    %v4200 = vadd.f32 %v4199, %v4137
    %v4201 = vadd.f32 %v4200, %v4138
    %v4202 = vadd.f32 %v4201, %v4139
    %v4203 = vadd.f32 %v4202, %v4140
    %v4204 = vadd.f32 %v4203, %v4141
    %v4205 = vadd.f32 %v4204, %v4142
    %v4206 = vadd.f32 %v4205, %v4143
    %v4207 = vadd.f32 %v4206, %v4144
    %v4208 = vadd.f32 %v4207, %v4145
    %v4209 = vadd.f32 %v4208, %v4146
    %v4210 = vadd.f32 %v4209, %v4147
    %v4211 = vadd.f32 %v4210, %v4148
    %v4212 = vadd.f32 %v4211, %v4149
    %v4213 = vadd.f32 %v4212, %v4150
    %v4214 = vadd.f32 %v4213, %v4151
    %v4215 = vadd.f32 %v4214, %v4152
    %v4216 = vadd.f32 %v4215, %v4153
    %v4217 = vadd.f32 %v4216, %v4154
    %v4218 = vadd.f32 %v4217, %v4155
    %v4219 = vadd.f32 %v4218, %v4156
    %v4220 = vadd.f32 %v4219, %v4157
    %v4221 = vadd.f32 %v4220, %v4158
    %v4222 = vadd.f32 %v4221, %v4159
    %v4223 = vadd.f32 %v4222, %v4160
    %v4224 = vadd.f32 %v4223, %v4161
    %v4225 = vadd.f32 %v4224, %v4162
    %v4226 = vadd.f32 %v4225, %v4163
    %v4227 = vadd.f32 %v4226, %v4164
    %v4228 = vadd.f32 %v4227, %v4165
    %v4229 = vadd.f32 %v4228, %v4166
    %v4230 = vadd.f32 %v4229, %v4167
    %v4231 = vadd.f32 %v4230, %v4168
    %v4232 = vadd.f32 %v4231, %v4169
    %v4233 = vadd.f32 %v4232, %v4170
    %v4234 = vadd.f32 %v4233, %v4171
    %v4235 = vadd.f32 %v4234, %v4172
    %v4236 = vadd.f32 %v4235, %v4173
    %v4237 = vadd.f32 %v4236, %v4174
    %v4238 = vadd.f32 %v4237, %v4175
    %v4239 = vadd.f32 %v4238, %v4176
    %v4240 = vadd.f32 %v4239, %v4177
    %v4241 = vadd.f32 %v4240, %v4178
    %v4242 = vadd.f32 %v4241, %v4179
    %v4243 = vadd.f32 %v4242, %v4180
    %v4244 = vrot.slane %v4243, 4
    %v4245 = vadd.f32 %v4243, %v4244
    %v4246 = vrot.slane %v4245, 2
    %v4247 = vadd.f32 %v4245, %v4246
    %v4248 = vrot.slane %v4247, 1
    %v4249 = vadd.f32 %v4247, %v4248
    %v4250 = vmul.f32 %v4249, 0.001953125
    %v4251 = vadd.f32 %v4250, 1e-05
    %v4252 = vrsqrt.pop %v4251
    %v4253 = vld [vmem:[%s3] sm:$0x1]
    %v4254 = vmul.f32 %v4252, %v4253
    %v4255 = vlaneseq
    %v4256 = vshrl.u32 %v4255, 7
    %v4257 = vsub.s32 0, %v4256
    %v4258 = vrot.slane %v4254, %v4257
    %v4259 = vmul.f32 %v4053, %v4258
    %v4260 = vmul.f32 %v4054, %v4258
    %v4261 = vmul.f32 %v4055, %v4258
    %v4262 = vmul.f32 %v4056, %v4258
    %v4263 = vmul.f32 %v4057, %v4258
    %v4264 = vmul.f32 %v4058, %v4258
    %v4265 = vmul.f32 %v4059, %v4258
    %v4266 = vmul.f32 %v4060, %v4258
    %v4267 = vmul.f32 %v4061, %v4258
    %v4268 = vmul.f32 %v4062, %v4258
    %v4269 = vmul.f32 %v4063, %v4258
    %v4270 = vmul.f32 %v4064, %v4258
    %v4271 = vmul.f32 %v4065, %v4258
    %v4272 = vmul.f32 %v4066, %v4258
    %v4273 = vmul.f32 %v4067, %v4258
    %v4274 = vmul.f32 %v4068, %v4258
    %v4275 = vmul.f32 %v4069, %v4258
    %v4276 = vmul.f32 %v4070, %v4258
    %v4277 = vmul.f32 %v4071, %v4258
    %v4278 = vmul.f32 %v4072, %v4258
    %v4279 = vmul.f32 %v4073, %v4258
    %v4280 = vmul.f32 %v4074, %v4258
    %v4281 = vmul.f32 %v4075, %v4258
    %v4282 = vmul.f32 %v4076, %v4258
    %v4283 = vmul.f32 %v4077, %v4258
    %v4284 = vmul.f32 %v4078, %v4258
    %v4285 = vmul.f32 %v4079, %v4258
    %v4286 = vmul.f32 %v4080, %v4258
    %v4287 = vmul.f32 %v4081, %v4258
    %v4288 = vmul.f32 %v4082, %v4258
    %v4289 = vmul.f32 %v4083, %v4258
    %v4290 = vmul.f32 %v4084, %v4258
    %v4291 = vmul.f32 %v4085, %v4258
    %v4292 = vmul.f32 %v4086, %v4258
    %v4293 = vmul.f32 %v4087, %v4258
    %v4294 = vmul.f32 %v4088, %v4258
    %v4295 = vmul.f32 %v4089, %v4258
    %v4296 = vmul.f32 %v4090, %v4258
    %v4297 = vmul.f32 %v4091, %v4258
    %v4298 = vmul.f32 %v4092, %v4258
    %v4299 = vmul.f32 %v4093, %v4258
    %v4300 = vmul.f32 %v4094, %v4258
    %v4301 = vmul.f32 %v4095, %v4258
    %v4302 = vmul.f32 %v4096, %v4258
    %v4303 = vmul.f32 %v4097, %v4258
    %v4304 = vmul.f32 %v4098, %v4258
    %v4305 = vmul.f32 %v4099, %v4258
    %v4306 = vmul.f32 %v4100, %v4258
    %v4307 = vmul.f32 %v4101, %v4258
    %v4308 = vmul.f32 %v4102, %v4258
    %v4309 = vmul.f32 %v4103, %v4258
    %v4310 = vmul.f32 %v4104, %v4258
    %v4311 = vmul.f32 %v4105, %v4258
    %v4312 = vmul.f32 %v4106, %v4258
    %v4313 = vmul.f32 %v4107, %v4258
    %v4314 = vmul.f32 %v4108, %v4258
    %v4315 = vmul.f32 %v4109, %v4258
    %v4316 = vmul.f32 %v4110, %v4258
    %v4317 = vmul.f32 %v4111, %v4258
    %v4318 = vmul.f32 %v4112, %v4258
    %v4319 = vmul.f32 %v4113, %v4258
    %v4320 = vmul.f32 %v4114, %v4258
    %v4321 = vmul.f32 %v4115, %v4258
    %v4322 = vmul.f32 %v4116, %v4258
    %v4323 = vld [vmem:[%s4] sm:$0x1]
    %v4325 = vlaneseq
    %v4326 = vshrl.u32 %v4325, 7
    %v4327 = vsub.s32 0, %v4326
    %v4328 = vrot.slane %v4323, %v4327
    %v4330 = vadd.f32 %v4259, %v4328
    %v4331 = vadd.f32 %v4260, %v4328
    %v4332 = vadd.f32 %v4261, %v4328
    %v4333 = vadd.f32 %v4262, %v4328
    %v4334 = vadd.f32 %v4263, %v4328
    %v4335 = vadd.f32 %v4264, %v4328
    %v4336 = vadd.f32 %v4265, %v4328
    %v4337 = vadd.f32 %v4266, %v4328
    %v4338 = vadd.f32 %v4267, %v4328
    %v4339 = vadd.f32 %v4268, %v4328
    %v4340 = vadd.f32 %v4269, %v4328
    %v4341 = vadd.f32 %v4270, %v4328
    %v4342 = vadd.f32 %v4271, %v4328
    %v4343 = vadd.f32 %v4272, %v4328
    %v4344 = vadd.f32 %v4273, %v4328
    %v4345 = vadd.f32 %v4274, %v4328
    %v4346 = vadd.f32 %v4275, %v4328
    %v4347 = vadd.f32 %v4276, %v4328
    %v4348 = vadd.f32 %v4277, %v4328
    %v4349 = vadd.f32 %v4278, %v4328
    %v4350 = vadd.f32 %v4279, %v4328
    %v4351 = vadd.f32 %v4280, %v4328
    %v4352 = vadd.f32 %v4281, %v4328
    %v4353 = vadd.f32 %v4282, %v4328
    %v4354 = vadd.f32 %v4283, %v4328
    %v4355 = vadd.f32 %v4284, %v4328
    %v4356 = vadd.f32 %v4285, %v4328
    %v4357 = vadd.f32 %v4286, %v4328
    %v4358 = vadd.f32 %v4287, %v4328
    %v4359 = vadd.f32 %v4288, %v4328
    %v4360 = vadd.f32 %v4289, %v4328
    %v4361 = vadd.f32 %v4290, %v4328
    %v4362 = vadd.f32 %v4291, %v4328
    %v4363 = vadd.f32 %v4292, %v4328
    %v4364 = vadd.f32 %v4293, %v4328
    %v4365 = vadd.f32 %v4294, %v4328
    %v4366 = vadd.f32 %v4295, %v4328
    %v4367 = vadd.f32 %v4296, %v4328
    %v4368 = vadd.f32 %v4297, %v4328
    %v4369 = vadd.f32 %v4298, %v4328
    %v4370 = vadd.f32 %v4299, %v4328
    %v4371 = vadd.f32 %v4300, %v4328
    %v4372 = vadd.f32 %v4301, %v4328
    %v4373 = vadd.f32 %v4302, %v4328
    %v4374 = vadd.f32 %v4303, %v4328
    %v4375 = vadd.f32 %v4304, %v4328
    %v4376 = vadd.f32 %v4305, %v4328
    %v4377 = vadd.f32 %v4306, %v4328
    %v4378 = vadd.f32 %v4307, %v4328
    %v4379 = vadd.f32 %v4308, %v4328
    %v4380 = vadd.f32 %v4309, %v4328
    %v4381 = vadd.f32 %v4310, %v4328
    %v4382 = vadd.f32 %v4311, %v4328
    %v4383 = vadd.f32 %v4312, %v4328
    %v4384 = vadd.f32 %v4313, %v4328
    %v4385 = vadd.f32 %v4314, %v4328
    %v4386 = vadd.f32 %v4315, %v4328
    %v4387 = vadd.f32 %v4316, %v4328
    %v4388 = vadd.f32 %v4317, %v4328
    %v4389 = vadd.f32 %v4318, %v4328
    %v4390 = vadd.f32 %v4319, %v4328
    %v4391 = vadd.f32 %v4320, %v4328
    %v4392 = vadd.f32 %v4321, %v4328
    %v4393 = vadd.f32 %v4322, %v4328
    %v4394 = vmax.f32 %v4330, 0.0
    %v4395 = vmax.f32 %v4331, 0.0
    %v4396 = vmax.f32 %v4332, 0.0
    %v4397 = vmax.f32 %v4333, 0.0
    %v4398 = vmax.f32 %v4334, 0.0
    %v4399 = vmax.f32 %v4335, 0.0
    %v4400 = vmax.f32 %v4336, 0.0
    %v4401 = vmax.f32 %v4337, 0.0
    %v4402 = vmax.f32 %v4338, 0.0
    %v4403 = vmax.f32 %v4339, 0.0
    %v4404 = vmax.f32 %v4340, 0.0
    %v4405 = vmax.f32 %v4341, 0.0
    %v4406 = vmax.f32 %v4342, 0.0
    %v4407 = vmax.f32 %v4343, 0.0
    %v4408 = vmax.f32 %v4344, 0.0
    %v4409 = vmax.f32 %v4345, 0.0
    %v4410 = vmax.f32 %v4346, 0.0
    %v4411 = vmax.f32 %v4347, 0.0
    %v4412 = vmax.f32 %v4348, 0.0
    %v4413 = vmax.f32 %v4349, 0.0
    %v4414 = vmax.f32 %v4350, 0.0
    %v4415 = vmax.f32 %v4351, 0.0
    %v4416 = vmax.f32 %v4352, 0.0
    %v4417 = vmax.f32 %v4353, 0.0
    %v4418 = vmax.f32 %v4354, 0.0
    %v4419 = vmax.f32 %v4355, 0.0
    %v4420 = vmax.f32 %v4356, 0.0
    %v4421 = vmax.f32 %v4357, 0.0
    %v4422 = vmax.f32 %v4358, 0.0
    %v4423 = vmax.f32 %v4359, 0.0
    %v4424 = vmax.f32 %v4360, 0.0
    %v4425 = vmax.f32 %v4361, 0.0
    %v4426 = vmax.f32 %v4362, 0.0
    %v4427 = vmax.f32 %v4363, 0.0
    %v4428 = vmax.f32 %v4364, 0.0
    %v4429 = vmax.f32 %v4365, 0.0
    %v4430 = vmax.f32 %v4366, 0.0
    %v4431 = vmax.f32 %v4367, 0.0
    %v4432 = vmax.f32 %v4368, 0.0
    %v4433 = vmax.f32 %v4369, 0.0
    %v4434 = vmax.f32 %v4370, 0.0
    %v4435 = vmax.f32 %v4371, 0.0
    %v4436 = vmax.f32 %v4372, 0.0
    %v4437 = vmax.f32 %v4373, 0.0
    %v4438 = vmax.f32 %v4374, 0.0
    %v4439 = vmax.f32 %v4375, 0.0
    %v4440 = vmax.f32 %v4376, 0.0
    %v4441 = vmax.f32 %v4377, 0.0
    %v4442 = vmax.f32 %v4378, 0.0
    %v4443 = vmax.f32 %v4379, 0.0
    %v4444 = vmax.f32 %v4380, 0.0
    %v4445 = vmax.f32 %v4381, 0.0
    %v4446 = vmax.f32 %v4382, 0.0
    %v4447 = vmax.f32 %v4383, 0.0
    %v4448 = vmax.f32 %v4384, 0.0
    %v4449 = vmax.f32 %v4385, 0.0
    %v4450 = vmax.f32 %v4386, 0.0
    %v4451 = vmax.f32 %v4387, 0.0
    %v4452 = vmax.f32 %v4388, 0.0
    %v4453 = vmax.f32 %v4389, 0.0
    %v4454 = vmax.f32 %v4390, 0.0
    %v4455 = vmax.f32 %v4391, 0.0
    %v4456 = vmax.f32 %v4392, 0.0
    %v4457 = vmax.f32 %v4393, 0.0
    %4458 = vst [vmem:[#allocation4] sm:$0xff] %v4394
    %4459 = vst [vmem:[#allocation4 + $0x8] sm:$0xff] %v4395
    %4460 = vst [vmem:[#allocation4 + $0x10] sm:$0xff] %v4396
    %4461 = vst [vmem:[#allocation4 + $0x18] sm:$0xff] %v4397
    %4462 = vst [vmem:[#allocation4 + $0x20] sm:$0xff] %v4398
    %4463 = vst [vmem:[#allocation4 + $0x28] sm:$0xff] %v4399
    %4464 = vst [vmem:[#allocation4 + $0x30] sm:$0xff] %v4400
    %4465 = vst [vmem:[#allocation4 + $0x38] sm:$0xff] %v4401
    %4466 = vst [vmem:[#allocation4 + $0x40] sm:$0xff] %v4402
    %4467 = vst [vmem:[#allocation4 + $0x48] sm:$0xff] %v4403
    %4468 = vst [vmem:[#allocation4 + $0x50] sm:$0xff] %v4404
    %4469 = vst [vmem:[#allocation4 + $0x58] sm:$0xff] %v4405
    %4470 = vst [vmem:[#allocation4 + $0x60] sm:$0xff] %v4406
    %4471 = vst [vmem:[#allocation4 + $0x68] sm:$0xff] %v4407
    %4472 = vst [vmem:[#allocation4 + $0x70] sm:$0xff] %v4408
    %4473 = vst [vmem:[#allocation4 + $0x78] sm:$0xff] %v4409
    %4474 = vst [vmem:[#allocation4 + $0x80] sm:$0xff] %v4410
    %4475 = vst [vmem:[#allocation4 + $0x88] sm:$0xff] %v4411
    %4476 = vst [vmem:[#allocation4 + $0x90] sm:$0xff] %v4412
    %4477 = vst [vmem:[#allocation4 + $0x98] sm:$0xff] %v4413
    %4478 = vst [vmem:[#allocation4 + $0xa0] sm:$0xff] %v4414
    %4479 = vst [vmem:[#allocation4 + $0xa8] sm:$0xff] %v4415
    %4480 = vst [vmem:[#allocation4 + $0xb0] sm:$0xff] %v4416
    %4481 = vst [vmem:[#allocation4 + $0xb8] sm:$0xff] %v4417
    %4482 = vst [vmem:[#allocation4 + $0xc0] sm:$0xff] %v4418
    %4483 = vst [vmem:[#allocation4 + $0xc8] sm:$0xff] %v4419
    %4484 = vst [vmem:[#allocation4 + $0xd0] sm:$0xff] %v4420
    %4485 = vst [vmem:[#allocation4 + $0xd8] sm:$0xff] %v4421
    %4486 = vst [vmem:[#allocation4 + $0xe0] sm:$0xff] %v4422
    %4487 = vst [vmem:[#allocation4 + $0xe8] sm:$0xff] %v4423
    %4488 = vst [vmem:[#allocation4 + $0xf0] sm:$0xff] %v4424
    %4489 = vst [vmem:[#allocation4 + $0xf8] sm:$0xff] %v4425
    %4490 = vst [vmem:[#allocation4 + $0x100] sm:$0xff] %v4426
    %4491 = vst [vmem:[#allocation4 + $0x108] sm:$0xff] %v4427
    %4492 = vst [vmem:[#allocation4 + $0x110] sm:$0xff] %v4428
    %4493 = vst [vmem:[#allocation4 + $0x118] sm:$0xff] %v4429
    %4494 = vst [vmem:[#allocation4 + $0x120] sm:$0xff] %v4430
    %4495 = vst [vmem:[#allocation4 + $0x128] sm:$0xff] %v4431
    %4496 = vst [vmem:[#allocation4 + $0x130] sm:$0xff] %v4432
    %4497 = vst [vmem:[#allocation4 + $0x138] sm:$0xff] %v4433
    %4498 = vst [vmem:[#allocation4 + $0x140] sm:$0xff] %v4434
    %4499 = vst [vmem:[#allocation4 + $0x148] sm:$0xff] %v4435
    %4500 = vst [vmem:[#allocation4 + $0x150] sm:$0xff] %v4436
    %4501 = vst [vmem:[#allocation4 + $0x158] sm:$0xff] %v4437
    %4502 = vst [vmem:[#allocation4 + $0x160] sm:$0xff] %v4438
    %4503 = vst [vmem:[#allocation4 + $0x168] sm:$0xff] %v4439
    %4504 = vst [vmem:[#allocation4 + $0x170] sm:$0xff] %v4440
    %4505 = vst [vmem:[#allocation4 + $0x178] sm:$0xff] %v4441
    %4506 = vst [vmem:[#allocation4 + $0x180] sm:$0xff] %v4442
    %4507 = vst [vmem:[#allocation4 + $0x188] sm:$0xff] %v4443
    %4508 = vst [vmem:[#allocation4 + $0x190] sm:$0xff] %v4444
    %4509 = vst [vmem:[#allocation4 + $0x198] sm:$0xff] %v4445
    %4510 = vst [vmem:[#allocation4 + $0x1a0] sm:$0xff] %v4446
    %4511 = vst [vmem:[#allocation4 + $0x1a8] sm:$0xff] %v4447
    %4512 = vst [vmem:[#allocation4 + $0x1b0] sm:$0xff] %v4448
    %4513 = vst [vmem:[#allocation4 + $0x1b8] sm:$0xff] %v4449
    %4514 = vst [vmem:[#allocation4 + $0x1c0] sm:$0xff] %v4450
    %4515 = vst [vmem:[#allocation4 + $0x1c8] sm:$0xff] %v4451
    %4516 = vst [vmem:[#allocation4 + $0x1d0] sm:$0xff] %v4452
    %4517 = vst [vmem:[#allocation4 + $0x1d8] sm:$0xff] %v4453
    %4518 = vst [vmem:[#allocation4 + $0x1e0] sm:$0xff] %v4454
    %4519 = vst [vmem:[#allocation4 + $0x1e8] sm:$0xff] %v4455
    %4520 = vst [vmem:[#allocation4 + $0x1f0] sm:$0xff] %v4456
    %4521 = vst [vmem:[#allocation4 + $0x1f8] sm:$0xff] %v4457
    // Predicated region
    $region22: #{_lambda_.1} parent=1 // pred_check
      _
    $region23: #{_lambda_.1} parent=1 // pred_check_branch
      %4523 = sbr.rel (0) target = $region25
    $region24: #{_lambda_.1} parent=1 // pred_region
      %s4525 = ssub.s32 8192, 8192
      %4526 = vsyncadd [#allocation5], %s4525
      %s4527 = sshll.u32 [#allocation4], 4
      %s4528 = int_to_ptr.vmem [resolvable:$true] %s4527
      %4533 = dma.vmem_to_hbm [thread:$0]  %s4528, 8192, %s5, [#allocation5], 128, 128, 8
    $region25: #{_lambda_.1} parent=1 // pred_fallthru
      _
    // Predicated region
    $region26: #{_lambda_.1} parent=1 // pred_check
      _
    $region27: #{_lambda_.1} parent=1 // pred_check_branch
      %4535 = sbr.rel (0) target = $region29
    $region28: #{_lambda_.1} parent=1 // pred_region
      %4536 = dma.done [#allocation5], 8192
    $region29: #{_lambda_.1} parent=1 // pred_fallthru
      _
    %4537 = vsyncpa [#allocation5], 1

</llo_original>
